<compile_context>
chip_gen: v7x
topology: tpu7x:2x2x1
jax: 0.10.0
libtpu: 0.0.40
codegen_flags: <defaults>
</compile_context>

<pallas_src>
import jax
import jax.numpy as jnp
from jax import lax
from jax.experimental import pallas as pl
from jax.experimental.pallas import tpu as pltpu

BN_EPS = 1e-5


# ------------------------------ fused Pallas kernel -------------------------------

def _fused_upconv_kernel(skip_ref,    # (1, 512, P)      channel-major skip (NCHW flat)
                         xlo_ref,     # (1, Cx, P_lo)    channel-major low-res x (NCHW flat)
                         a_lat_ref,   # (Cout, 512)      BN-folded lateral 1x1 weight^T
                         b_lat_ref,   # (Cout, 1)
                         w_up_ref,    # (Cs, Cx)         BN-scale-folded upsample 1x1 weight^T
                         b_up_ref,    # (Cs, 1)
                         ut_ref,      # (P_lo, P)        separable bilinear x2 operator^T
                         w_c0_ref,    # (9*Ccat, Cout)   BN-folded 3x3 conv0 (im2col form)
                         b_c0_ref,    # (1, Cout)
                         w_c1_ref,    # (9*Cout, Cout)   BN-folded 3x3 conv1 (im2col form)
                         b_c1_ref,    # (1, Cout)
                         o_ref,       # (1, Cout, P)     channel-major output (NCHW flat)
                         pad0_ref,    # VMEM (H+2, W+2, Ccat)  halo buffer == concat buffer
                         pad1_ref,    # VMEM (H+2, W+2, Cout)  halo buffer for conv1 input
                         col_ref):    # VMEM (P, 9*Ccat)       im2col staging
    Hp, Wp, Ccat = pad0_ref.shape
    H, W = Hp - 2, Wp - 2
    P = H * W
    Cout = o_ref.shape[1]
    Cs = w_up_ref.shape[0]

    # zero the halo buffers: the untouched 1-pixel border implements 'same' padding.
    pad0_ref[...] = jnp.zeros((Hp, Wp, Ccat), jnp.float32)
    pad1_ref[...] = jnp.zeros((Hp, Wp, Cout), jnp.float32)

    # ---- lateral branch: 1x1 conv (512 -> Cout) + folded BN + ReLU.
    # Channel-major matmul: K=512 MXU contraction, lane-dense (Cout, P) result,
    # skip consumed directly in NCHW layout.
    lat = jnp.dot(a_lat_ref[...], skip_ref[0], preferred_element_type=jnp.float32)
    lat = jnp.maximum(lat + b_lat_ref[...], 0.0)                       # (Cout, P)
    pad0_ref[1:H + 1, 1:W + 1, 0:Cout] = lat.T.reshape(H, W, Cout)

    # ---- upsample branch: 1x1 conv + BN-scale on the LOW-RES map (commutes with the
    # upsample), then bilinear x2 as one small operator matmul, then bias + ReLU.
    low = jnp.dot(w_up_ref[...], xlo_ref[0], preferred_element_type=jnp.float32)  # (Cs, P_lo)
    hi = jnp.dot(low, ut_ref[...], preferred_element_type=jnp.float32)            # (Cs, P)
    hi = jnp.maximum(hi + b_up_ref[...], 0.0)
    pad0_ref[1:H + 1, 1:W + 1, Cout:Ccat] = hi.T.reshape(H, W, Cs)
    # writing both branches into one halo buffer == torch.cat([skip, x], dim=1)

    def conv3x3(pad_ref, w_ref, b_ref):
        # im2col into VMEM scratch -> ONE contraction of depth K = 9*Cin.
        cin = pad_ref.shape[2]
        t = 0
        for dy in range(3):
            for dx in range(3):
                col_ref[:, t * cin:(t + 1) * cin] = (
                    pad_ref[dy:dy + H, dx:dx + W, :].reshape(P, cin))
                t += 1
        y = jnp.dot(col_ref[:, :9 * cin], w_ref[...],
                    preferred_element_type=jnp.float32)
        return jnp.maximum(y + b_ref[...], 0.0)                        # (P, Cout)

    out0 = conv3x3(pad0_ref, w_c0_ref, b_c0_ref)
    pad1_ref[1:H + 1, 1:W + 1, :] = out0.reshape(H, W, Cout)
    out1 = conv3x3(pad1_ref, w_c1_ref, b_c1_ref)

    # store channel-major (lane-dense, 256-wide): this IS flattened NCHW.
    o_ref[0] = out1.T


# ----------------------------------- wrapper ---------------------------------------

def _fold_bn(gamma, beta, mean, var, eps=BN_EPS):
    scale = gamma / jnp.sqrt(var + eps)
    bias = beta - mean * scale
    return scale, bias


def upconv_block_forward(skip_nchw, x_nchw, p, uh, uw):
    N, Cx, Hin, Win = x_nchw.shape
    _, Clat, H, W = skip_nchw.shape
    Cs = p['w_up'].shape[1]
    Cout = p['w_lat'].shape[1]
    P = H * W
    P_lo = Hin * Win
    Ccat = Cout + Cs

    # ---- fold BN (eval mode) into the conv weights / biases (trace-time, tiny).
    s_lat, b_lat = _fold_bn(*p['bn_lat'])
    s_up, b_up = _fold_bn(*p['bn_up'])
    s_c0, b_c0 = _fold_bn(*p['bn_c0'])
    s_c1, b_c1 = _fold_bn(*p['bn_c1'])

    a_lat = (p['w_lat'] * s_lat[None, :]).T            # (Cout, 512)  channel-major
    b_lat_c = b_lat.reshape(-1, 1)                     # (Cout, 1)
    w_up_cm = (p['w_up'] * s_up[None, :]).T            # (Cs, Cx)     channel-major, scale only
    b_up_c = b_up.reshape(-1, 1)                       # (Cs, 1)      added after the upsample
    w_c0_s = p['w_c0'].reshape(9 * Ccat, Cout) * s_c0[None, :]   # (9*Ccat, Cout)
    b_c0_r = b_c0.reshape(1, -1)
    w_c1_s = p['w_c1'].reshape(9 * Cout, Cout) * s_c1[None, :]   # (9*Cout, Cout)
    b_c1_r = b_c1.reshape(1, -1)

    # separable bilinear x2 operator, applied in-kernel as one (Cs, P_lo) @ (P_lo, P) dot.
    ut = jnp.kron(uh, uw).T                            # (P_lo, P) = (64, 256)

    # free (contiguous) NCHW views — no wrapper-side transposes / einsums.
    skip_f = skip_nchw.reshape(N, Clat, P)
    x_f = x_nchw.reshape(N, Cx, P_lo)

    def full_spec(arr):
        return pl.BlockSpec(arr.shape, lambda n, nd=arr.ndim: (0,) * nd)

    # TODO(synk): for production resolutions add a spatial tile axis (with halo
    # exchange) so a single frame no longer has to fit one VMEM block.
    out = pl.pallas_call(
        _fused_upconv_kernel,
        out_shape=jax.ShapeDtypeStruct((N, Cout, P), jnp.float32),
        grid=(N,),
        in_specs=[
            pl.BlockSpec((1, Clat, P), lambda n: (n, 0, 0)),    # skip (channel-major)
            pl.BlockSpec((1, Cx, P_lo), lambda n: (n, 0, 0)),   # low-res x (channel-major)
            full_spec(a_lat), full_spec(b_lat_c),
            full_spec(w_up_cm), full_spec(b_up_c), full_spec(ut),
            full_spec(w_c0_s), full_spec(b_c0_r),
            full_spec(w_c1_s), full_spec(b_c1_r),
        ],
        out_specs=pl.BlockSpec((1, Cout, P), lambda n: (n, 0, 0)),
        scratch_shapes=[
            pltpu.VMEM((H + 2, W + 2, Ccat), jnp.float32),
            pltpu.VMEM((H + 2, W + 2, Cout), jnp.float32),
            pltpu.VMEM((P, 9 * Ccat), jnp.float32),
        ],
        compiler_params=pltpu.CompilerParams(
            dimension_semantics=("parallel",),
            vmem_limit_bytes=32 * 1024 * 1024),
    )(skip_f, x_f, a_lat, b_lat_c, w_up_cm, b_up_c, ut,
      w_c0_s, b_c0_r, w_c1_s, b_c1_r)

    return out.reshape(N, Cout, H, W)                          # already NCHW


# --------------------------- parameter / operator setup ----------------------------

def bilinear_matrix(out_size, in_size):
    """Row-interpolation matrix matching torch Upsample(bilinear, align_corners=False)."""
    i = jnp.arange(out_size, dtype=jnp.float32)
    src = jnp.maximum((i + 0.5) * (in_size / out_size) - 0.5, 0.0)
    i0 = jnp.floor(src)
    w1 = src - i0
    i0 = i0.astype(jnp.int32)
    i1 = jnp.minimum(i0 + 1, in_size - 1)
    return (jax.nn.one_hot(i0, in_size, dtype=jnp.float32) * (1.0 - w1)[:, None]
            + jax.nn.one_hot(i1, in_size, dtype=jnp.float32) * w1[:, None])


def init_params(key, in_channels, skip_channels, out_channels, lateral_in=512):
    ks = jax.random.split(key, 8)

    def bn(k, c):
        k1, k2, k3, k4 = jax.random.split(k, 4)
        gamma = jax.random.uniform(k1, (c,), jnp.float32, 0.5, 1.5)
        beta = jax.random.normal(k2, (c,), jnp.float32) * 0.1
        mean = jax.random.normal(k3, (c,), jnp.float32) * 0.1
        var = jax.random.uniform(k4, (c,), jnp.float32, 0.5, 1.5)
        return (gamma, beta, mean, var)

    return {
        # InterpConv's 1x1 ConvModule (in_channels -> skip_channels), no conv bias (BN follows)
        'w_up': jax.random.normal(ks[0], (in_channels, skip_channels), jnp.float32) * 0.1,
        'bn_up': bn(ks[1], skip_channels),
        # conv_block_lateral: 1x1 ConvModule(512 -> out_channels)
        'w_lat': jax.random.normal(ks[2], (lateral_in, out_channels), jnp.float32) * 0.05,
        'bn_lat': bn(ks[3], out_channels),
        # BasicConvBlock (num_convs=2), weights in HWIO
        'w_c0': jax.random.normal(ks[4], (3, 3, 2 * skip_channels, out_channels), jnp.float32) * 0.1,
        'bn_c0': bn(ks[5], out_channels),
        'w_c1': jax.random.normal(ks[6], (3, 3, out_channels, out_channels), jnp.float32) * 0.1,
        'bn_c1': bn(ks[7], out_channels),
    }


# ------------------------------ pure-JAX reference ----------------------------------

def reference_forward(skip_nchw, x_nchw, p, uh, uw):
    hp = lax.Precision.HIGHEST
    dn = ('NHWC', 'HWIO', 'NHWC')

    def bn_relu(y, bn):
        gamma, beta, mean, var = bn
        s = gamma / jnp.sqrt(var + BN_EPS)
        return jnp.maximum(y * s + (beta - mean * s), 0.0)

    x = jnp.transpose(x_nchw, (0, 2, 3, 1))
    skip = jnp.transpose(skip_nchw, (0, 2, 3, 1))

    xu = jnp.einsum('nhwc,Hh,Ww->nHWc', x, uh, uw, precision=hp)
    xu = lax.conv_general_dilated(xu, p['w_up'].reshape(1, 1, *p['w_up'].shape),
                                  (1, 1), 'VALID', dimension_numbers=dn, precision=hp)
    xu = bn_relu(xu, p['bn_up'])

    lat = lax.conv_general_dilated(skip, p['w_lat'].reshape(1, 1, *p['w_lat'].shape),
                                   (1, 1), 'VALID', dimension_numbers=dn, precision=hp)
    lat = bn_relu(lat, p['bn_lat'])

    out = jnp.concatenate([lat, xu], axis=-1)
    out = lax.conv_general_dilated(out, p['w_c0'], (1, 1), 'SAME',
                                   dimension_numbers=dn, precision=hp)
    out = bn_relu(out, p['bn_c0'])
    out = lax.conv_general_dilated(out, p['w_c1'], (1, 1), 'SAME',
                                   dimension_numbers=dn, precision=hp)
    out = bn_relu(out, p['bn_c1'])
    return jnp.transpose(out, (0, 3, 1, 2))


# -------------------------------------- main ----------------------------------------

if __name__ == "__main__":
    key = jax.random.PRNGKey(0)
    kp, ksk, kx = jax.random.split(key, 3)

    N = 2
    in_channels = 8        # channels of `x`
    skip_channels = 8
    out_channels = 8       # must equal skip_channels so cat -> 2*skip_channels
    H = W = 16             # spatial size of `skip`
    LATERAL_IN = 512       # hard-coded in conv_block_lateral of the module
    assert out_channels == skip_channels

    skip = jax.random.normal(ksk, (N, LATERAL_IN, H, W), jnp.float32)
    x = jax.random.normal(kx, (N, in_channels, H // 2, W // 2), jnp.float32)

    params = init_params(kp, in_channels, skip_channels, out_channels, LATERAL_IN)
    uh = bilinear_matrix(H, H // 2)
    uw = bilinear_matrix(W, W // 2)

    out = jax.jit(upconv_block_forward)(skip, x, params, uh, uw)
    out = jax.block_until_ready(out)

    ref = reference_forward(skip, x, params, uh, uw)
    assert out.shape == (N, out_channels, H, W), out.shape
    assert bool(jnp.all(jnp.isfinite(out)))
    assert bool(jnp.allclose(out, ref, atol=5e-2, rtol=5e-2)), \
        float(jnp.max(jnp.abs(out - ref)))

    print("KERNEL_OK")
</pallas_src>

<mosaic_0001>
module attributes {stable_mosaic.version = 11 : i64} {
  func.func @_fused_upconv_kernel(%arg0: i32, %arg1: memref<1x512x256xf32, #tpu.memory_space<vmem>>, %arg2: memref<1x8x64xf32, #tpu.memory_space<vmem>>, %arg3: memref<8x512xf32, #tpu.memory_space<vmem>>, %arg4: memref<8x1xf32, #tpu.memory_space<vmem>>, %arg5: memref<8x8xf32, #tpu.memory_space<vmem>>, %arg6: memref<8x1xf32, #tpu.memory_space<vmem>>, %arg7: memref<64x256xf32, #tpu.memory_space<vmem>>, %arg8: memref<144x8xf32, #tpu.memory_space<vmem>>, %arg9: memref<1x8xf32, #tpu.memory_space<vmem>>, %arg10: memref<72x8xf32, #tpu.memory_space<vmem>>, %arg11: memref<1x8xf32, #tpu.memory_space<vmem>>, %arg12: memref<1x8x256xf32, #tpu.memory_space<vmem>>, %arg13: memref<18x18x16xf32, #tpu.memory_space<vmem>>, %arg14: memref<18x18x8xf32, #tpu.memory_space<vmem>>, %arg15: memref<256x144xf32, #tpu.memory_space<vmem>>) attributes {dimension_semantics = [#tpu.dimension_semantics<parallel>], iteration_bounds = array<i64: 2>, scalar_prefetch = 0 : i64, scratch_operands = 3 : i64, tpu.core_type = #tpu.core_type<tc>, window_params = [{transform_indices = @transform_0, window_bounds = array<i64: 1, 512, 256>}, {transform_indices = @transform_1, window_bounds = array<i64: 1, 8, 64>}, {pipeline_mode = #tpu.pipeline_mode<synchronous>, transform_indices = @transform_2, window_bounds = array<i64: 8, 512>}, {pipeline_mode = #tpu.pipeline_mode<synchronous>, transform_indices = @transform_3, window_bounds = array<i64: 8, 1>}, {pipeline_mode = #tpu.pipeline_mode<synchronous>, transform_indices = @transform_4, window_bounds = array<i64: 8, 8>}, {pipeline_mode = #tpu.pipeline_mode<synchronous>, transform_indices = @transform_5, window_bounds = array<i64: 8, 1>}, {pipeline_mode = #tpu.pipeline_mode<synchronous>, transform_indices = @transform_6, window_bounds = array<i64: 64, 256>}, {pipeline_mode = #tpu.pipeline_mode<synchronous>, transform_indices = @transform_7, window_bounds = array<i64: 144, 8>}, {pipeline_mode = #tpu.pipeline_mode<synchronous>, transform_indices = @transform_8, window_bounds = array<i64: 1, 8>}, {pipeline_mode = #tpu.pipeline_mode<synchronous>, transform_indices = @transform_9, window_bounds = array<i64: 72, 8>}, {pipeline_mode = #tpu.pipeline_mode<synchronous>, transform_indices = @transform_10, window_bounds = array<i64: 1, 8>}, {transform_indices = @transform_11, window_bounds = array<i64: 1, 8, 256>}]} {
    %cst = arith.constant 0.000000e+00 : f32
    %0 = vector.broadcast %cst : f32 to vector<18x18x16xf32>
    %c0 = arith.constant 0 : index
    %c0_0 = arith.constant 0 : index
    %c0_1 = arith.constant 0 : index
    %1 = vector.load %arg13[%c0, %c0_0, %c0_1] : memref<18x18x16xf32, #tpu.memory_space<vmem>>, vector<18x18x16xf32>
    tpu.vector_store %arg13[%c0, %c0_0, %c0_1], %0 {strides = array<i32>} : memref<18x18x16xf32, #tpu.memory_space<vmem>>, vector<18x18x16xf32>,
    %cst_2 = arith.constant 0.000000e+00 : f32
    %2 = vector.broadcast %cst_2 : f32 to vector<18x18x8xf32>
    %c0_3 = arith.constant 0 : index
    %c0_4 = arith.constant 0 : index
    %c0_5 = arith.constant 0 : index
    %3 = vector.load %arg14[%c0_3, %c0_4, %c0_5] : memref<18x18x8xf32, #tpu.memory_space<vmem>>, vector<18x18x8xf32>
    tpu.vector_store %arg14[%c0_3, %c0_4, %c0_5], %2 {strides = array<i32>} : memref<18x18x8xf32, #tpu.memory_space<vmem>>, vector<18x18x8xf32>,
    %c0_6 = arith.constant 0 : index
    %c0_7 = arith.constant 0 : index
    %4 = vector.load %arg3[%c0_6, %c0_7] : memref<8x512xf32, #tpu.memory_space<vmem>>, vector<8x512xf32>
    %c0_8 = arith.constant 0 : index
    %c0_9 = arith.constant 0 : index
    %c0_10 = arith.constant 0 : index
    %5 = vector.load %arg1[%c0_8, %c0_9, %c0_10] : memref<1x512x256xf32, #tpu.memory_space<vmem>>, vector<1x512x256xf32>
    %6 = vector.shape_cast %5 : vector<1x512x256xf32> to vector<512x256xf32>
    %cst_11 = arith.constant dense<0.000000e+00> : vector<8x256xf32>
    %7 = tpu.matmul %4, %6, %cst_11 {dimension_numbers = #tpu.dot_dimension_numbers<[1], [0], [0], [1], [0, 0, 1, 1], [], []>} : vector<8x512xf32>, vector<512x256xf32>, vector<8x256xf32> -> vector<8x256xf32>
    %c0_12 = arith.constant 0 : index
    %c0_13 = arith.constant 0 : index
    %8 = vector.load %arg4[%c0_12, %c0_13] : memref<8x1xf32, #tpu.memory_space<vmem>>, vector<8x1xf32>
    %9 = vector.broadcast %8 : vector<8x1xf32> to vector<8x256xf32>
    %10 = arith.addf %7, %9 : vector<8x256xf32>
    %cst_14 = arith.constant 0.000000e+00 : f32
    %11 = vector.broadcast %cst_14 : f32 to vector<8x256xf32>
    %12 = arith.maximumf %10, %11 : vector<8x256xf32>
    %13 = tpu.transpose %12, [1, 0] : vector<8x256xf32> -> vector<256x8xf32>
    %14 = vector.shape_cast %13 : vector<256x8xf32> to vector<16x16x8xf32>
    %c1 = arith.constant 1 : index
    %c1_15 = arith.constant 1 : index
    %c0_16 = arith.constant 0 : index
    %15 = vector.load %arg13[%c1, %c1_15, %c0_16] : memref<18x18x16xf32, #tpu.memory_space<vmem>>, vector<16x16x8xf32>
    tpu.vector_store %arg13[%c1, %c1_15, %c0_16], %14 {strides = array<i32>} : memref<18x18x16xf32, #tpu.memory_space<vmem>>, vector<16x16x8xf32>,
    %c0_17 = arith.constant 0 : index
    %c0_18 = arith.constant 0 : index
    %16 = vector.load %arg5[%c0_17, %c0_18] : memref<8x8xf32, #tpu.memory_space<vmem>>, vector<8x8xf32>
    %c0_19 = arith.constant 0 : index
    %c0_20 = arith.constant 0 : index
    %c0_21 = arith.constant 0 : index
    %17 = vector.load %arg2[%c0_19, %c0_20, %c0_21] : memref<1x8x64xf32, #tpu.memory_space<vmem>>, vector<1x8x64xf32>
    %18 = vector.shape_cast %17 : vector<1x8x64xf32> to vector<8x64xf32>
    %cst_22 = arith.constant dense<0.000000e+00> : vector<8x64xf32>
    %19 = tpu.matmul %16, %18, %cst_22 {dimension_numbers = #tpu.dot_dimension_numbers<[1], [0], [0], [1], [0, 0, 1, 1], [], []>} : vector<8x8xf32>, vector<8x64xf32>, vector<8x64xf32> -> vector<8x64xf32>
    %c0_23 = arith.constant 0 : index
    %c0_24 = arith.constant 0 : index
    %20 = vector.load %arg7[%c0_23, %c0_24] : memref<64x256xf32, #tpu.memory_space<vmem>>, vector<64x256xf32>
    %cst_25 = arith.constant dense<0.000000e+00> : vector<8x256xf32>
    %21 = tpu.matmul %19, %20, %cst_25 {dimension_numbers = #tpu.dot_dimension_numbers<[1], [0], [0], [1], [0, 0, 1, 1], [], []>} : vector<8x64xf32>, vector<64x256xf32>, vector<8x256xf32> -> vector<8x256xf32>
    %c0_26 = arith.constant 0 : index
    %c0_27 = arith.constant 0 : index
    %22 = vector.load %arg6[%c0_26, %c0_27] : memref<8x1xf32, #tpu.memory_space<vmem>>, vector<8x1xf32>
    %23 = vector.broadcast %22 : vector<8x1xf32> to vector<8x256xf32>
    %24 = arith.addf %21, %23 : vector<8x256xf32>
    %cst_28 = arith.constant 0.000000e+00 : f32
    %25 = vector.broadcast %cst_28 : f32 to vector<8x256xf32>
    %26 = arith.maximumf %24, %25 : vector<8x256xf32>
    %27 = tpu.transpose %26, [1, 0] : vector<8x256xf32> -> vector<256x8xf32>
    %28 = vector.shape_cast %27 : vector<256x8xf32> to vector<16x16x8xf32>
    %c1_29 = arith.constant 1 : index
    %c1_30 = arith.constant 1 : index
    %c8 = arith.constant 8 : index
    %29 = vector.load %arg13[%c1_29, %c1_30, %c8] : memref<18x18x16xf32, #tpu.memory_space<vmem>>, vector<16x16x8xf32>
    tpu.vector_store %arg13[%c1_29, %c1_30, %c8], %28 {strides = array<i32>} : memref<18x18x16xf32, #tpu.memory_space<vmem>>, vector<16x16x8xf32>,
    %c0_31 = arith.constant 0 : index
    %c0_32 = arith.constant 0 : index
    %c0_33 = arith.constant 0 : index
    %30 = vector.load %arg13[%c0_31, %c0_32, %c0_33] : memref<18x18x16xf32, #tpu.memory_space<vmem>>, vector<16x16x16xf32>
    %31 = vector.shape_cast %30 : vector<16x16x16xf32> to vector<256x16xf32>
    %c0_34 = arith.constant 0 : index
    %c0_35 = arith.constant 0 : index
    %32 = vector.load %arg15[%c0_34, %c0_35] : memref<256x144xf32, #tpu.memory_space<vmem>>, vector<256x16xf32>
    tpu.vector_store %arg15[%c0_34, %c0_35], %31 {strides = array<i32>} : memref<256x144xf32, #tpu.memory_space<vmem>>, vector<256x16xf32>,
    %c0_36 = arith.constant 0 : index
    %c1_37 = arith.constant 1 : index
    %c0_38 = arith.constant 0 : index
    %33 = vector.load %arg13[%c0_36, %c1_37, %c0_38] : memref<18x18x16xf32, #tpu.memory_space<vmem>>, vector<16x16x16xf32>
    %34 = vector.shape_cast %33 : vector<16x16x16xf32> to vector<256x16xf32>
    %c0_39 = arith.constant 0 : index
    %c16 = arith.constant 16 : index
    %35 = vector.load %arg15[%c0_39, %c16] : memref<256x144xf32, #tpu.memory_space<vmem>>, vector<256x16xf32>
    tpu.vector_store %arg15[%c0_39, %c16], %34 {strides = array<i32>} : memref<256x144xf32, #tpu.memory_space<vmem>>, vector<256x16xf32>,
    %c0_40 = arith.constant 0 : index
    %c2 = arith.constant 2 : index
    %c0_41 = arith.constant 0 : index
    %36 = vector.load %arg13[%c0_40, %c2, %c0_41] : memref<18x18x16xf32, #tpu.memory_space<vmem>>, vector<16x16x16xf32>
    %37 = vector.shape_cast %36 : vector<16x16x16xf32> to vector<256x16xf32>
    %c0_42 = arith.constant 0 : index
    %c32 = arith.constant 32 : index
    %38 = vector.load %arg15[%c0_42, %c32] : memref<256x144xf32, #tpu.memory_space<vmem>>, vector<256x16xf32>
    tpu.vector_store %arg15[%c0_42, %c32], %37 {strides = array<i32>} : memref<256x144xf32, #tpu.memory_space<vmem>>, vector<256x16xf32>,
    %c1_43 = arith.constant 1 : index
    %c0_44 = arith.constant 0 : index
    %c0_45 = arith.constant 0 : index
    %39 = vector.load %arg13[%c1_43, %c0_44, %c0_45] : memref<18x18x16xf32, #tpu.memory_space<vmem>>, vector<16x16x16xf32>
    %40 = vector.shape_cast %39 : vector<16x16x16xf32> to vector<256x16xf32>
    %c0_46 = arith.constant 0 : index
    %c48 = arith.constant 48 : index
    %41 = vector.load %arg15[%c0_46, %c48] : memref<256x144xf32, #tpu.memory_space<vmem>>, vector<256x16xf32>
    tpu.vector_store %arg15[%c0_46, %c48], %40 {strides = array<i32>} : memref<256x144xf32, #tpu.memory_space<vmem>>, vector<256x16xf32>,
    %c1_47 = arith.constant 1 : index
    %c1_48 = arith.constant 1 : index
    %c0_49 = arith.constant 0 : index
    %42 = vector.load %arg13[%c1_47, %c1_48, %c0_49] : memref<18x18x16xf32, #tpu.memory_space<vmem>>, vector<16x16x16xf32>
    %43 = vector.shape_cast %42 : vector<16x16x16xf32> to vector<256x16xf32>
    %c0_50 = arith.constant 0 : index
    %c64 = arith.constant 64 : index
    %44 = vector.load %arg15[%c0_50, %c64] : memref<256x144xf32, #tpu.memory_space<vmem>>, vector<256x16xf32>
    tpu.vector_store %arg15[%c0_50, %c64], %43 {strides = array<i32>} : memref<256x144xf32, #tpu.memory_space<vmem>>, vector<256x16xf32>,
    %c1_51 = arith.constant 1 : index
    %c2_52 = arith.constant 2 : index
    %c0_53 = arith.constant 0 : index
    %45 = vector.load %arg13[%c1_51, %c2_52, %c0_53] : memref<18x18x16xf32, #tpu.memory_space<vmem>>, vector<16x16x16xf32>
    %46 = vector.shape_cast %45 : vector<16x16x16xf32> to vector<256x16xf32>
    %c0_54 = arith.constant 0 : index
    %c80 = arith.constant 80 : index
    %47 = vector.load %arg15[%c0_54, %c80] : memref<256x144xf32, #tpu.memory_space<vmem>>, vector<256x16xf32>
    tpu.vector_store %arg15[%c0_54, %c80], %46 {strides = array<i32>} : memref<256x144xf32, #tpu.memory_space<vmem>>, vector<256x16xf32>,
    %c2_55 = arith.constant 2 : index
    %c0_56 = arith.constant 0 : index
    %c0_57 = arith.constant 0 : index
    %48 = vector.load %arg13[%c2_55, %c0_56, %c0_57] : memref<18x18x16xf32, #tpu.memory_space<vmem>>, vector<16x16x16xf32>
    %49 = vector.shape_cast %48 : vector<16x16x16xf32> to vector<256x16xf32>
    %c0_58 = arith.constant 0 : index
    %c96 = arith.constant 96 : index
    %50 = vector.load %arg15[%c0_58, %c96] : memref<256x144xf32, #tpu.memory_space<vmem>>, vector<256x16xf32>
    tpu.vector_store %arg15[%c0_58, %c96], %49 {strides = array<i32>} : memref<256x144xf32, #tpu.memory_space<vmem>>, vector<256x16xf32>,
    %c2_59 = arith.constant 2 : index
    %c1_60 = arith.constant 1 : index
    %c0_61 = arith.constant 0 : index
    %51 = vector.load %arg13[%c2_59, %c1_60, %c0_61] : memref<18x18x16xf32, #tpu.memory_space<vmem>>, vector<16x16x16xf32>
    %52 = vector.shape_cast %51 : vector<16x16x16xf32> to vector<256x16xf32>
    %c0_62 = arith.constant 0 : index
    %c112 = arith.constant 112 : index
    %53 = vector.load %arg15[%c0_62, %c112] : memref<256x144xf32, #tpu.memory_space<vmem>>, vector<256x16xf32>
    tpu.vector_store %arg15[%c0_62, %c112], %52 {strides = array<i32>} : memref<256x144xf32, #tpu.memory_space<vmem>>, vector<256x16xf32>,
    %c2_63 = arith.constant 2 : index
    %c2_64 = arith.constant 2 : index
    %c0_65 = arith.constant 0 : index
    %54 = vector.load %arg13[%c2_63, %c2_64, %c0_65] : memref<18x18x16xf32, #tpu.memory_space<vmem>>, vector<16x16x16xf32>
    %55 = vector.shape_cast %54 : vector<16x16x16xf32> to vector<256x16xf32>
    %c0_66 = arith.constant 0 : index
    %c128 = arith.constant 128 : index
    %56 = vector.load %arg15[%c0_66, %c128] : memref<256x144xf32, #tpu.memory_space<vmem>>, vector<256x16xf32>
    tpu.vector_store %arg15[%c0_66, %c128], %55 {strides = array<i32>} : memref<256x144xf32, #tpu.memory_space<vmem>>, vector<256x16xf32>,
    %c0_67 = arith.constant 0 : index
    %c0_68 = arith.constant 0 : index
    %57 = vector.load %arg15[%c0_67, %c0_68] : memref<256x144xf32, #tpu.memory_space<vmem>>, vector<256x144xf32>
    %c0_69 = arith.constant 0 : index
    %c0_70 = arith.constant 0 : index
    %58 = vector.load %arg8[%c0_69, %c0_70] : memref<144x8xf32, #tpu.memory_space<vmem>>, vector<144x8xf32>
    %cst_71 = arith.constant dense<0.000000e+00> : vector<256x8xf32>
    %59 = tpu.matmul %57, %58, %cst_71 {dimension_numbers = #tpu.dot_dimension_numbers<[1], [0], [0], [1], [0, 0, 1, 1], [], []>} : vector<256x144xf32>, vector<144x8xf32>, vector<256x8xf32> -> vector<256x8xf32>
    %c0_72 = arith.constant 0 : index
    %c0_73 = arith.constant 0 : index
    %60 = vector.load %arg9[%c0_72, %c0_73] : memref<1x8xf32, #tpu.memory_space<vmem>>, vector<1x8xf32>
    %61 = vector.broadcast %60 : vector<1x8xf32> to vector<256x8xf32>
    %62 = arith.addf %59, %61 : vector<256x8xf32>
    %cst_74 = arith.constant 0.000000e+00 : f32
    %63 = vector.broadcast %cst_74 : f32 to vector<256x8xf32>
    %64 = arith.maximumf %62, %63 : vector<256x8xf32>
    %65 = vector.shape_cast %64 : vector<256x8xf32> to vector<16x16x8xf32>
    %c1_75 = arith.constant 1 : index
    %c1_76 = arith.constant 1 : index
    %c0_77 = arith.constant 0 : index
    %66 = vector.load %arg14[%c1_75, %c1_76, %c0_77] : memref<18x18x8xf32, #tpu.memory_space<vmem>>, vector<16x16x8xf32>
    tpu.vector_store %arg14[%c1_75, %c1_76, %c0_77], %65 {strides = array<i32>} : memref<18x18x8xf32, #tpu.memory_space<vmem>>, vector<16x16x8xf32>,
    %c0_78 = arith.constant 0 : index
    %c0_79 = arith.constant 0 : index
    %c0_80 = arith.constant 0 : index
    %67 = vector.load %arg14[%c0_78, %c0_79, %c0_80] : memref<18x18x8xf32, #tpu.memory_space<vmem>>, vector<16x16x8xf32>
    %68 = vector.shape_cast %67 : vector<16x16x8xf32> to vector<256x8xf32>
    %c0_81 = arith.constant 0 : index
    %c0_82 = arith.constant 0 : index
    %69 = vector.load %arg15[%c0_81, %c0_82] : memref<256x144xf32, #tpu.memory_space<vmem>>, vector<256x8xf32>
    tpu.vector_store %arg15[%c0_81, %c0_82], %68 {strides = array<i32>} : memref<256x144xf32, #tpu.memory_space<vmem>>, vector<256x8xf32>,
    %c0_83 = arith.constant 0 : index
    %c1_84 = arith.constant 1 : index
    %c0_85 = arith.constant 0 : index
    %70 = vector.load %arg14[%c0_83, %c1_84, %c0_85] : memref<18x18x8xf32, #tpu.memory_space<vmem>>, vector<16x16x8xf32>
    %71 = vector.shape_cast %70 : vector<16x16x8xf32> to vector<256x8xf32>
    %c0_86 = arith.constant 0 : index
    %c8_87 = arith.constant 8 : index
    %72 = vector.load %arg15[%c0_86, %c8_87] : memref<256x144xf32, #tpu.memory_space<vmem>>, vector<256x8xf32>
    tpu.vector_store %arg15[%c0_86, %c8_87], %71 {strides = array<i32>} : memref<256x144xf32, #tpu.memory_space<vmem>>, vector<256x8xf32>,
    %c0_88 = arith.constant 0 : index
    %c2_89 = arith.constant 2 : index
    %c0_90 = arith.constant 0 : index
    %73 = vector.load %arg14[%c0_88, %c2_89, %c0_90] : memref<18x18x8xf32, #tpu.memory_space<vmem>>, vector<16x16x8xf32>
    %74 = vector.shape_cast %73 : vector<16x16x8xf32> to vector<256x8xf32>
    %c0_91 = arith.constant 0 : index
    %c16_92 = arith.constant 16 : index
    %75 = vector.load %arg15[%c0_91, %c16_92] : memref<256x144xf32, #tpu.memory_space<vmem>>, vector<256x8xf32>
    tpu.vector_store %arg15[%c0_91, %c16_92], %74 {strides = array<i32>} : memref<256x144xf32, #tpu.memory_space<vmem>>, vector<256x8xf32>,
    %c1_93 = arith.constant 1 : index
    %c0_94 = arith.constant 0 : index
    %c0_95 = arith.constant 0 : index
    %76 = vector.load %arg14[%c1_93, %c0_94, %c0_95] : memref<18x18x8xf32, #tpu.memory_space<vmem>>, vector<16x16x8xf32>
    %77 = vector.shape_cast %76 : vector<16x16x8xf32> to vector<256x8xf32>
    %c0_96 = arith.constant 0 : index
    %c24 = arith.constant 24 : index
    %78 = vector.load %arg15[%c0_96, %c24] : memref<256x144xf32, #tpu.memory_space<vmem>>, vector<256x8xf32>
    tpu.vector_store %arg15[%c0_96, %c24], %77 {strides = array<i32>} : memref<256x144xf32, #tpu.memory_space<vmem>>, vector<256x8xf32>,
    %c1_97 = arith.constant 1 : index
    %c1_98 = arith.constant 1 : index
    %c0_99 = arith.constant 0 : index
    %79 = vector.load %arg14[%c1_97, %c1_98, %c0_99] : memref<18x18x8xf32, #tpu.memory_space<vmem>>, vector<16x16x8xf32>
    %80 = vector.shape_cast %79 : vector<16x16x8xf32> to vector<256x8xf32>
    %c0_100 = arith.constant 0 : index
    %c32_101 = arith.constant 32 : index
    %81 = vector.load %arg15[%c0_100, %c32_101] : memref<256x144xf32, #tpu.memory_space<vmem>>, vector<256x8xf32>
    tpu.vector_store %arg15[%c0_100, %c32_101], %80 {strides = array<i32>} : memref<256x144xf32, #tpu.memory_space<vmem>>, vector<256x8xf32>,
    %c1_102 = arith.constant 1 : index
    %c2_103 = arith.constant 2 : index
    %c0_104 = arith.constant 0 : index
    %82 = vector.load %arg14[%c1_102, %c2_103, %c0_104] : memref<18x18x8xf32, #tpu.memory_space<vmem>>, vector<16x16x8xf32>
    %83 = vector.shape_cast %82 : vector<16x16x8xf32> to vector<256x8xf32>
    %c0_105 = arith.constant 0 : index
    %c40 = arith.constant 40 : index
    %84 = vector.load %arg15[%c0_105, %c40] : memref<256x144xf32, #tpu.memory_space<vmem>>, vector<256x8xf32>
    tpu.vector_store %arg15[%c0_105, %c40], %83 {strides = array<i32>} : memref<256x144xf32, #tpu.memory_space<vmem>>, vector<256x8xf32>,
    %c2_106 = arith.constant 2 : index
    %c0_107 = arith.constant 0 : index
    %c0_108 = arith.constant 0 : index
    %85 = vector.load %arg14[%c2_106, %c0_107, %c0_108] : memref<18x18x8xf32, #tpu.memory_space<vmem>>, vector<16x16x8xf32>
    %86 = vector.shape_cast %85 : vector<16x16x8xf32> to vector<256x8xf32>
    %c0_109 = arith.constant 0 : index
    %c48_110 = arith.constant 48 : index
    %87 = vector.load %arg15[%c0_109, %c48_110] : memref<256x144xf32, #tpu.memory_space<vmem>>, vector<256x8xf32>
    tpu.vector_store %arg15[%c0_109, %c48_110], %86 {strides = array<i32>} : memref<256x144xf32, #tpu.memory_space<vmem>>, vector<256x8xf32>,
    %c2_111 = arith.constant 2 : index
    %c1_112 = arith.constant 1 : index
    %c0_113 = arith.constant 0 : index
    %88 = vector.load %arg14[%c2_111, %c1_112, %c0_113] : memref<18x18x8xf32, #tpu.memory_space<vmem>>, vector<16x16x8xf32>
    %89 = vector.shape_cast %88 : vector<16x16x8xf32> to vector<256x8xf32>
    %c0_114 = arith.constant 0 : index
    %c56 = arith.constant 56 : index
    %90 = vector.load %arg15[%c0_114, %c56] : memref<256x144xf32, #tpu.memory_space<vmem>>, vector<256x8xf32>
    tpu.vector_store %arg15[%c0_114, %c56], %89 {strides = array<i32>} : memref<256x144xf32, #tpu.memory_space<vmem>>, vector<256x8xf32>,
    %c2_115 = arith.constant 2 : index
    %c2_116 = arith.constant 2 : index
    %c0_117 = arith.constant 0 : index
    %91 = vector.load %arg14[%c2_115, %c2_116, %c0_117] : memref<18x18x8xf32, #tpu.memory_space<vmem>>, vector<16x16x8xf32>
    %92 = vector.shape_cast %91 : vector<16x16x8xf32> to vector<256x8xf32>
    %c0_118 = arith.constant 0 : index
    %c64_119 = arith.constant 64 : index
    %93 = vector.load %arg15[%c0_118, %c64_119] : memref<256x144xf32, #tpu.memory_space<vmem>>, vector<256x8xf32>
    tpu.vector_store %arg15[%c0_118, %c64_119], %92 {strides = array<i32>} : memref<256x144xf32, #tpu.memory_space<vmem>>, vector<256x8xf32>,
    %c0_120 = arith.constant 0 : index
    %c0_121 = arith.constant 0 : index
    %94 = vector.load %arg15[%c0_120, %c0_121] : memref<256x144xf32, #tpu.memory_space<vmem>>, vector<256x72xf32>
    %c0_122 = arith.constant 0 : index
    %c0_123 = arith.constant 0 : index
    %95 = vector.load %arg10[%c0_122, %c0_123] : memref<72x8xf32, #tpu.memory_space<vmem>>, vector<72x8xf32>
    %cst_124 = arith.constant dense<0.000000e+00> : vector<256x8xf32>
    %96 = tpu.matmul %94, %95, %cst_124 {dimension_numbers = #tpu.dot_dimension_numbers<[1], [0], [0], [1], [0, 0, 1, 1], [], []>} : vector<256x72xf32>, vector<72x8xf32>, vector<256x8xf32> -> vector<256x8xf32>
    %c0_125 = arith.constant 0 : index
    %c0_126 = arith.constant 0 : index
    %97 = vector.load %arg11[%c0_125, %c0_126] : memref<1x8xf32, #tpu.memory_space<vmem>>, vector<1x8xf32>
    %98 = vector.broadcast %97 : vector<1x8xf32> to vector<256x8xf32>
    %99 = arith.addf %96, %98 : vector<256x8xf32>
    %cst_127 = arith.constant 0.000000e+00 : f32
    %100 = vector.broadcast %cst_127 : f32 to vector<256x8xf32>
    %101 = arith.maximumf %99, %100 : vector<256x8xf32>
    %102 = tpu.transpose %101, [1, 0] : vector<256x8xf32> -> vector<8x256xf32>
    %c0_128 = arith.constant 0 : index
    %c0_129 = arith.constant 0 : index
    %c0_130 = arith.constant 0 : index
    %103 = vector.load %arg12[%c0_128, %c0_129, %c0_130] : memref<1x8x256xf32, #tpu.memory_space<vmem>>, vector<1x8x256xf32>
    %104 = vector.shape_cast %103 : vector<1x8x256xf32> to vector<8x256xf32>
    %105 = vector.shape_cast %102 : vector<8x256xf32> to vector<1x8x256xf32>
    tpu.vector_store %arg12[%c0_128, %c0_129, %c0_130], %105 {strides = array<i32>} : memref<1x8x256xf32, #tpu.memory_space<vmem>>, vector<1x8x256xf32>,
    return
  }
  func.func @transform_0(%arg0: i32) -> (i32, i32, i32) {
    %c0_i32 = arith.constant 0 : i32
    %c0_i32_0 = arith.constant 0 : i32
    %c0_i32_1 = arith.constant 0 : i32
    return %arg0, %c0_i32, %c0_i32_0 : i32, i32, i32
  }
  func.func @transform_1(%arg0: i32) -> (i32, i32, i32) {
    %c0_i32 = arith.constant 0 : i32
    %c0_i32_0 = arith.constant 0 : i32
    %c0_i32_1 = arith.constant 0 : i32
    return %arg0, %c0_i32, %c0_i32_0 : i32, i32, i32
  }
  func.func @transform_2(%arg0: i32) -> (i32, i32) {
    %c0_i32 = arith.constant 0 : i32
    %c0_i32_0 = arith.constant 0 : i32
    %c0_i32_1 = arith.constant 0 : i32
    return %c0_i32, %c0_i32_0 : i32, i32
  }
  func.func @transform_3(%arg0: i32) -> (i32, i32) {
    %c0_i32 = arith.constant 0 : i32
    %c0_i32_0 = arith.constant 0 : i32
    %c0_i32_1 = arith.constant 0 : i32
    return %c0_i32, %c0_i32_0 : i32, i32
  }
  func.func @transform_4(%arg0: i32) -> (i32, i32) {
    %c0_i32 = arith.constant 0 : i32
    %c0_i32_0 = arith.constant 0 : i32
    %c0_i32_1 = arith.constant 0 : i32
    return %c0_i32, %c0_i32_0 : i32, i32
  }
  func.func @transform_5(%arg0: i32) -> (i32, i32) {
    %c0_i32 = arith.constant 0 : i32
    %c0_i32_0 = arith.constant 0 : i32
    %c0_i32_1 = arith.constant 0 : i32
    return %c0_i32, %c0_i32_0 : i32, i32
  }
  func.func @transform_6(%arg0: i32) -> (i32, i32) {
    %c0_i32 = arith.constant 0 : i32
    %c0_i32_0 = arith.constant 0 : i32
    %c0_i32_1 = arith.constant 0 : i32
    return %c0_i32, %c0_i32_0 : i32, i32
  }
  func.func @transform_7(%arg0: i32) -> (i32, i32) {
    %c0_i32 = arith.constant 0 : i32
    %c0_i32_0 = arith.constant 0 : i32
    %c0_i32_1 = arith.constant 0 : i32
    return %c0_i32, %c0_i32_0 : i32, i32
  }
  func.func @transform_8(%arg0: i32) -> (i32, i32) {
    %c0_i32 = arith.constant 0 : i32
    %c0_i32_0 = arith.constant 0 : i32
    %c0_i32_1 = arith.constant 0 : i32
    return %c0_i32, %c0_i32_0 : i32, i32
  }
  func.func @transform_9(%arg0: i32) -> (i32, i32) {
    %c0_i32 = arith.constant 0 : i32
    %c0_i32_0 = arith.constant 0 : i32
    %c0_i32_1 = arith.constant 0 : i32
    return %c0_i32, %c0_i32_0 : i32, i32
  }
  func.func @transform_10(%arg0: i32) -> (i32, i32) {
    %c0_i32 = arith.constant 0 : i32
    %c0_i32_0 = arith.constant 0 : i32
    %c0_i32_1 = arith.constant 0 : i32
    return %c0_i32, %c0_i32_0 : i32, i32
  }
  func.func @transform_11(%arg0: i32) -> (i32, i32, i32) {
    %c0_i32 = arith.constant 0 : i32
    %c0_i32_0 = arith.constant 0 : i32
    %c0_i32_1 = arith.constant 0 : i32
    return %arg0, %c0_i32, %c0_i32_0 : i32, i32, i32
  }
}

</mosaic_0001>

<llo_original>
// kernel: upconv_block_forward.1
$region0: #{upconv_block_forward.1}
  #allocation0 [shape = 'u32[]', space=smem, size = 0x4, offset = 0x4, fixed_abs, tag = 'smem constant byte address 0x4 - core index']
  #allocation1 [shape = 'u32[144,128]{1,0:T(1,128)}', space=vmem, size = 0x12000, scoped, tag = 'internal scratch']
  #allocation2 [shape = 'f32[18,18,16]{2,1,0:T(8,128)}', space=vmem, size = 0x36000, scoped, tag = 'scratch operand']
  #allocation3 [shape = 'f32[18,18,8]{2,1,0:T(8,128)}', space=vmem, size = 0x36000, scoped, tag = 'scratch operand']
  #allocation4 [shape = 'f32[256,144]{1,0:T(8,128)}', space=vmem, size = 0x40000, scoped, tag = 'scratch operand']
  %s0 = inlined_call_operand.vmem [shape: f32[2,512,256], index: 0, kind: input, shape index: {}]
  %s1 = inlined_call_operand.vmem [shape: f32[2,8,64], index: 1, kind: input, shape index: {}]
  %s2 = inlined_call_operand.vmem [shape: f32[8,512], index: 2, kind: input, shape index: {}]
  %s3 = inlined_call_operand.vmem [shape: f32[8,1], index: 3, kind: input, shape index: {}]
  %s4 = inlined_call_operand.vmem [shape: f32[8,8], index: 4, kind: input, shape index: {}]
  %s5 = inlined_call_operand.vmem [shape: f32[8,1], index: 5, kind: input, shape index: {}]
  %s6 = inlined_call_operand.vmem [shape: f32[64,256], index: 6, kind: input, shape index: {}]
  %s7 = inlined_call_operand.vmem [shape: f32[144,8], index: 7, kind: input, shape index: {}]
  %s8 = inlined_call_operand.vmem [shape: f32[1,8], index: 8, kind: input, shape index: {}]
  %s9 = inlined_call_operand.vmem [shape: f32[72,8], index: 9, kind: input, shape index: {}]
  %s10 = inlined_call_operand.vmem [shape: f32[1,8], index: 10, kind: input, shape index: {}]
  %s11 = inlined_call_operand.vmem [shape: f32[2,8,256], index: 11, kind: output, shape index: {}]
  %s12 = sld [smem:[#allocation0]]
  $region77: #{upconv_block_forward.1} parent=0
    _
  %s14 = ssub.s32 1, %s12
  %s15 = scalar_select 0, %s14, %s12
  loop: start=0, step=1, limit=4
  $region2: #{upconv_block_forward.1} parent=0 // loop_pre_header
    _
  $region3: #{upconv_block_forward.1} parent=0 // loop_header
    %s17 = sphi 0, %s21
    %p18 = scmp.ge.s32.totalorder %s17, 4
    %s27 = sphi 0, %s29
    %s30 = sphi 0, %s27
    %s31 = sphi 0, %s30
    %s47 = sphi 0, %s31
    %s53 = sphi 0, %s55
    %s56 = sphi 0, %s53
    %s57 = sphi 0, %s56
    %s73 = sphi 0, %s57
    %s77 = sphi 0, %s77
    %s79 = sphi 0, %s77
    %s80 = sphi 0, %s79
    %s94 = sphi 0, %s80
    %s98 = sphi 0, %s98
    %s100 = sphi 0, %s98
    %s101 = sphi 0, %s100
    %s115 = sphi 0, %s101
    %s119 = sphi 0, %s119
    %s121 = sphi 0, %s119
    %s122 = sphi 0, %s121
    %s136 = sphi 0, %s122
    %s140 = sphi 0, %s140
    %s142 = sphi 0, %s140
    %s143 = sphi 0, %s142
    %s157 = sphi 0, %s143
    %s161 = sphi 0, %s161
    %s163 = sphi 0, %s161
    %s164 = sphi 0, %s163
    %s178 = sphi 0, %s164
    %s182 = sphi 0, %s182
    %s184 = sphi 0, %s182
    %s185 = sphi 0, %s184
    %s199 = sphi 0, %s185
    %s203 = sphi 0, %s203
    %s205 = sphi 0, %s203
    %s206 = sphi 0, %s205
    %s220 = sphi 0, %s206
    %s224 = sphi 0, %s224
    %s226 = sphi 0, %s224
    %s227 = sphi 0, %s226
    %s241 = sphi 0, %s227
    %s245 = sphi 0, %s245
    %s247 = sphi 0, %s245
    %s248 = sphi 0, %s247
    %s262 = sphi 0, %s248
    %s268 = sphi 0, %s270
    %s271 = sphi 0, %s268
    %s272 = sphi 0, %s271
    %s288 = sphi 0, %s272
  $region4: #{upconv_block_forward.1} parent=0 // loop_header_branch
    %20 = sbr.rel (%p18) target = $region8
  $region5: #{upconv_block_forward.1} parent=0 // loop_body
    %s22 = ssub.s32 %s17, 1
    %s23 = ssub.s32 %s17, 2
    %s24 = sadd.s32 %s17, 1
    %s25 = ssub.s32 %s17, %s24
    %p26 = scmp.eq.s32.totalorder %s25, 0
    %s28 = sadd.s32 %s27, 1
    %s29 = scalar_select %p26, %s27, %s28
    %p32 = pneg %p26
    %p33 = scmp.eq.s32.totalorder %s17, 1
    %p34 = por %p32, %p33
    %p35 = scmp.ne.s32.totalorder %s27, %s30
    %p36 = scmp.eq.s32.totalorder %s17, 0
    %p37 = por %p35, %p36
    %p38 = scmp.ne.s32.totalorder %s27, %s30
    %p39 = scmp.eq.s32.totalorder %s22, 1
    %p40 = por %p38, %p39
    %p41 = scmp.ne.s32.totalorder %s30, %s31
    %p42 = scmp.eq.s32.totalorder %s22, 0
    %p43 = por %p41, %p42
    %p44 = scmp.ne.s32.totalorder %s30, %s31
    %p45 = scmp.eq.s32.totalorder %s23, 1
    %p46 = por %p44, %p45
    %p48 = scmp.ne.s32.totalorder %s31, %s47
    %p49 = scmp.eq.s32.totalorder %s23, 0
    %p50 = por %p48, %p49
    %s51 = ssub.s32 %s17, %s24
    %p52 = scmp.eq.s32.totalorder %s51, 0
    %s54 = sadd.s32 %s53, 1
    %s55 = scalar_select %p52, %s53, %s54
    %p58 = pneg %p52
    %p59 = scmp.eq.s32.totalorder %s17, 1
    %p60 = por %p58, %p59
    %p61 = scmp.ne.s32.totalorder %s53, %s56
    %p62 = scmp.eq.s32.totalorder %s17, 0
    %p63 = por %p61, %p62
    %p64 = scmp.ne.s32.totalorder %s53, %s56
    %p65 = scmp.eq.s32.totalorder %s22, 1
    %p66 = por %p64, %p65
    %p67 = scmp.ne.s32.totalorder %s56, %s57
    %p68 = scmp.eq.s32.totalorder %s22, 0
    %p69 = por %p67, %p68
    %p70 = scmp.ne.s32.totalorder %s56, %s57
    %p71 = scmp.eq.s32.totalorder %s23, 1
    %p72 = por %p70, %p71
    %p74 = scmp.ne.s32.totalorder %s57, %s73
    %p75 = scmp.eq.s32.totalorder %s23, 0
    %p76 = por %p74, %p75
    %s78 = sadd.s32 %s77, 1
    %p81 = scmp.eq.s32.totalorder %s17, 1
    %p82 = scmp.ne.s32.totalorder %s77, %s79
    %p83 = scmp.eq.s32.totalorder %s17, 0
    %p84 = por %p82, %p83
    %p85 = scmp.ne.s32.totalorder %s77, %s79
    %p86 = scmp.eq.s32.totalorder %s22, 1
    %p87 = por %p85, %p86
    %p88 = scmp.ne.s32.totalorder %s79, %s80
    %p89 = scmp.eq.s32.totalorder %s22, 0
    %p90 = por %p88, %p89
    %p91 = scmp.ne.s32.totalorder %s79, %s80
    %p92 = scmp.eq.s32.totalorder %s23, 1
    %p93 = por %p91, %p92
    %p95 = scmp.ne.s32.totalorder %s80, %s94
    %p96 = scmp.eq.s32.totalorder %s23, 0
    %p97 = por %p95, %p96
    %s99 = sadd.s32 %s98, 1
    %p102 = scmp.eq.s32.totalorder %s17, 1
    %p103 = scmp.ne.s32.totalorder %s98, %s100
    %p104 = scmp.eq.s32.totalorder %s17, 0
    %p105 = por %p103, %p104
    %p106 = scmp.ne.s32.totalorder %s98, %s100
    %p107 = scmp.eq.s32.totalorder %s22, 1
    %p108 = por %p106, %p107
    %p109 = scmp.ne.s32.totalorder %s100, %s101
    %p110 = scmp.eq.s32.totalorder %s22, 0
    %p111 = por %p109, %p110
    %p112 = scmp.ne.s32.totalorder %s100, %s101
    %p113 = scmp.eq.s32.totalorder %s23, 1
    %p114 = por %p112, %p113
    %p116 = scmp.ne.s32.totalorder %s101, %s115
    %p117 = scmp.eq.s32.totalorder %s23, 0
    %p118 = por %p116, %p117
    %s120 = sadd.s32 %s119, 1
    %p123 = scmp.eq.s32.totalorder %s17, 1
    %p124 = scmp.ne.s32.totalorder %s119, %s121
    %p125 = scmp.eq.s32.totalorder %s17, 0
    %p126 = por %p124, %p125
    %p127 = scmp.ne.s32.totalorder %s119, %s121
    %p128 = scmp.eq.s32.totalorder %s22, 1
    %p129 = por %p127, %p128
    %p130 = scmp.ne.s32.totalorder %s121, %s122
    %p131 = scmp.eq.s32.totalorder %s22, 0
    %p132 = por %p130, %p131
    %p133 = scmp.ne.s32.totalorder %s121, %s122
    %p134 = scmp.eq.s32.totalorder %s23, 1
    %p135 = por %p133, %p134
    %p137 = scmp.ne.s32.totalorder %s122, %s136
    %p138 = scmp.eq.s32.totalorder %s23, 0
    %p139 = por %p137, %p138
    %s141 = sadd.s32 %s140, 1
    %p144 = scmp.eq.s32.totalorder %s17, 1
    %p145 = scmp.ne.s32.totalorder %s140, %s142
    %p146 = scmp.eq.s32.totalorder %s17, 0
    %p147 = por %p145, %p146
    %p148 = scmp.ne.s32.totalorder %s140, %s142
    %p149 = scmp.eq.s32.totalorder %s22, 1
    %p150 = por %p148, %p149
    %p151 = scmp.ne.s32.totalorder %s142, %s143
    %p152 = scmp.eq.s32.totalorder %s22, 0
    %p153 = por %p151, %p152
    %p154 = scmp.ne.s32.totalorder %s142, %s143
    %p155 = scmp.eq.s32.totalorder %s23, 1
    %p156 = por %p154, %p155
    %p158 = scmp.ne.s32.totalorder %s143, %s157
    %p159 = scmp.eq.s32.totalorder %s23, 0
    %p160 = por %p158, %p159
    %s162 = sadd.s32 %s161, 1
    %p165 = scmp.eq.s32.totalorder %s17, 1
    %p166 = scmp.ne.s32.totalorder %s161, %s163
    %p167 = scmp.eq.s32.totalorder %s17, 0
    %p168 = por %p166, %p167
    %p169 = scmp.ne.s32.totalorder %s161, %s163
    %p170 = scmp.eq.s32.totalorder %s22, 1
    %p171 = por %p169, %p170
    %p172 = scmp.ne.s32.totalorder %s163, %s164
    %p173 = scmp.eq.s32.totalorder %s22, 0
    %p174 = por %p172, %p173
    %p175 = scmp.ne.s32.totalorder %s163, %s164
    %p176 = scmp.eq.s32.totalorder %s23, 1
    %p177 = por %p175, %p176
    %p179 = scmp.ne.s32.totalorder %s164, %s178
    %p180 = scmp.eq.s32.totalorder %s23, 0
    %p181 = por %p179, %p180
    %s183 = sadd.s32 %s182, 1
    %p186 = scmp.eq.s32.totalorder %s17, 1
    %p187 = scmp.ne.s32.totalorder %s182, %s184
    %p188 = scmp.eq.s32.totalorder %s17, 0
    %p189 = por %p187, %p188
    %p190 = scmp.ne.s32.totalorder %s182, %s184
    %p191 = scmp.eq.s32.totalorder %s22, 1
    %p192 = por %p190, %p191
    %p193 = scmp.ne.s32.totalorder %s184, %s185
    %p194 = scmp.eq.s32.totalorder %s22, 0
    %p195 = por %p193, %p194
    %p196 = scmp.ne.s32.totalorder %s184, %s185
    %p197 = scmp.eq.s32.totalorder %s23, 1
    %p198 = por %p196, %p197
    %p200 = scmp.ne.s32.totalorder %s185, %s199
    %p201 = scmp.eq.s32.totalorder %s23, 0
    %p202 = por %p200, %p201
    %s204 = sadd.s32 %s203, 1
    %p207 = scmp.eq.s32.totalorder %s17, 1
    %p208 = scmp.ne.s32.totalorder %s203, %s205
    %p209 = scmp.eq.s32.totalorder %s17, 0
    %p210 = por %p208, %p209
    %p211 = scmp.ne.s32.totalorder %s203, %s205
    %p212 = scmp.eq.s32.totalorder %s22, 1
    %p213 = por %p211, %p212
    %p214 = scmp.ne.s32.totalorder %s205, %s206
    %p215 = scmp.eq.s32.totalorder %s22, 0
    %p216 = por %p214, %p215
    %p217 = scmp.ne.s32.totalorder %s205, %s206
    %p218 = scmp.eq.s32.totalorder %s23, 1
    %p219 = por %p217, %p218
    %p221 = scmp.ne.s32.totalorder %s206, %s220
    %p222 = scmp.eq.s32.totalorder %s23, 0
    %p223 = por %p221, %p222
    %s225 = sadd.s32 %s224, 1
    %p228 = scmp.eq.s32.totalorder %s17, 1
    %p229 = scmp.ne.s32.totalorder %s224, %s226
    %p230 = scmp.eq.s32.totalorder %s17, 0
    %p231 = por %p229, %p230
    %p232 = scmp.ne.s32.totalorder %s224, %s226
    %p233 = scmp.eq.s32.totalorder %s22, 1
    %p234 = por %p232, %p233
    %p235 = scmp.ne.s32.totalorder %s226, %s227
    %p236 = scmp.eq.s32.totalorder %s22, 0
    %p237 = por %p235, %p236
    %p238 = scmp.ne.s32.totalorder %s226, %s227
    %p239 = scmp.eq.s32.totalorder %s23, 1
    %p240 = por %p238, %p239
    %p242 = scmp.ne.s32.totalorder %s227, %s241
    %p243 = scmp.eq.s32.totalorder %s23, 0
    %p244 = por %p242, %p243
    %s246 = sadd.s32 %s245, 1
    %p249 = scmp.eq.s32.totalorder %s17, 1
    %p250 = scmp.ne.s32.totalorder %s245, %s247
    %p251 = scmp.eq.s32.totalorder %s17, 0
    %p252 = por %p250, %p251
    %p253 = scmp.ne.s32.totalorder %s245, %s247
    %p254 = scmp.eq.s32.totalorder %s22, 1
    %p255 = por %p253, %p254
    %p256 = scmp.ne.s32.totalorder %s247, %s248
    %p257 = scmp.eq.s32.totalorder %s22, 0
    %p258 = por %p256, %p257
    %p259 = scmp.ne.s32.totalorder %s247, %s248
    %p260 = scmp.eq.s32.totalorder %s23, 1
    %p261 = por %p259, %p260
    %p263 = scmp.ne.s32.totalorder %s248, %s262
    %p264 = scmp.eq.s32.totalorder %s23, 0
    %p265 = por %p263, %p264
    %s266 = ssub.s32 %s17, %s24
    %p267 = scmp.eq.s32.totalorder %s266, 0
    %s269 = sadd.s32 %s268, 1
    %s270 = scalar_select %p267, %s268, %s269
    %p273 = pneg %p267
    %p274 = scmp.eq.s32.totalorder %s17, 1
    %p275 = por %p273, %p274
    %p276 = scmp.ne.s32.totalorder %s268, %s271
    %p277 = scmp.eq.s32.totalorder %s17, 0
    %p278 = por %p276, %p277
    %p279 = scmp.ne.s32.totalorder %s268, %s271
    %p280 = scmp.eq.s32.totalorder %s22, 1
    %p281 = por %p279, %p280
    %p282 = scmp.ne.s32.totalorder %s271, %s272
    %p283 = scmp.eq.s32.totalorder %s22, 0
    %p284 = por %p282, %p283
    %p285 = scmp.ne.s32.totalorder %s271, %s272
    %p286 = scmp.eq.s32.totalorder %s23, 1
    %p287 = por %p285, %p286
    %p289 = scmp.ne.s32.totalorder %s272, %s288
    %p290 = scmp.eq.s32.totalorder %s23, 0
    %p291 = por %p289, %p290
    %p292 = scmp.le.s32.totalorder 1, %s17
    %p293 = scmp.lt.s32.totalorder %s17, 3
    %p294 = pnand %p292, %p293
    %p295 = pneg %p294
    // Predicated region
    $region9: #{upconv_block_forward.1} parent=5 // pred_check
      _
    $region10: #{upconv_block_forward.1} parent=5 // pred_check_branch
      %297 = sbr.rel (%p294) target = $region12
    $region11: #{upconv_block_forward.1} parent=5 // pred_region
      %s298 = ssub.s32 %s17, 1
      // Predicated region
      $region13: #{upconv_block_forward.1} parent=11 // pred_check
        %p299 = pneg %p90
      $region14: #{upconv_block_forward.1} parent=11 // pred_check_branch
        %301 = sbr.rel (%p299) target = $region16
      $region15: #{upconv_block_forward.1} parent=11 // pred_region
        _
      $region16: #{upconv_block_forward.1} parent=11 // pred_fallthru
        _
      // Predicated region
      $region17: #{upconv_block_forward.1} parent=11 // pred_check
        %p302 = pneg %p111
      $region18: #{upconv_block_forward.1} parent=11 // pred_check_branch
        %304 = sbr.rel (%p302) target = $region20
      $region19: #{upconv_block_forward.1} parent=11 // pred_region
        _
      $region20: #{upconv_block_forward.1} parent=11 // pred_fallthru
        _
      // Predicated region
      $region21: #{upconv_block_forward.1} parent=11 // pred_check
        %p305 = pneg %p132
      $region22: #{upconv_block_forward.1} parent=11 // pred_check_branch
        %307 = sbr.rel (%p305) target = $region24
      $region23: #{upconv_block_forward.1} parent=11 // pred_region
        _
      $region24: #{upconv_block_forward.1} parent=11 // pred_fallthru
        _
      // Predicated region
      $region25: #{upconv_block_forward.1} parent=11 // pred_check
        %p308 = pneg %p153
      $region26: #{upconv_block_forward.1} parent=11 // pred_check_branch
        %310 = sbr.rel (%p308) target = $region28
      $region27: #{upconv_block_forward.1} parent=11 // pred_region
        _
      $region28: #{upconv_block_forward.1} parent=11 // pred_fallthru
        _
      // Predicated region
      $region29: #{upconv_block_forward.1} parent=11 // pred_check
        %p311 = pneg %p174
      $region30: #{upconv_block_forward.1} parent=11 // pred_check_branch
        %313 = sbr.rel (%p311) target = $region32
      $region31: #{upconv_block_forward.1} parent=11 // pred_region
        _
      $region32: #{upconv_block_forward.1} parent=11 // pred_fallthru
        _
      // Predicated region
      $region33: #{upconv_block_forward.1} parent=11 // pred_check
        %p314 = pneg %p195
      $region34: #{upconv_block_forward.1} parent=11 // pred_check_branch
        %316 = sbr.rel (%p314) target = $region36
      $region35: #{upconv_block_forward.1} parent=11 // pred_region
        _
      $region36: #{upconv_block_forward.1} parent=11 // pred_fallthru
        _
      // Predicated region
      $region37: #{upconv_block_forward.1} parent=11 // pred_check
        %p317 = pneg %p216
      $region38: #{upconv_block_forward.1} parent=11 // pred_check_branch
        %319 = sbr.rel (%p317) target = $region40
      $region39: #{upconv_block_forward.1} parent=11 // pred_region
        _
      $region40: #{upconv_block_forward.1} parent=11 // pred_fallthru
        _
      // Predicated region
      $region41: #{upconv_block_forward.1} parent=11 // pred_check
        %p320 = pneg %p237
      $region42: #{upconv_block_forward.1} parent=11 // pred_check_branch
        %322 = sbr.rel (%p320) target = $region44
      $region43: #{upconv_block_forward.1} parent=11 // pred_region
        _
      $region44: #{upconv_block_forward.1} parent=11 // pred_fallthru
        _
      // Predicated region
      $region45: #{upconv_block_forward.1} parent=11 // pred_check
        %p323 = pneg %p258
      $region46: #{upconv_block_forward.1} parent=11 // pred_check_branch
        %325 = sbr.rel (%p323) target = $region48
      $region47: #{upconv_block_forward.1} parent=11 // pred_region
        _
      $region48: #{upconv_block_forward.1} parent=11 // pred_fallthru
        _
    $region12: #{upconv_block_forward.1} parent=5 // pred_fallthru
      _
    %p326 = scmp.lt.s32.totalorder %s17, 2
    // Predicated region
    $region49: #{upconv_block_forward.1} parent=5 // pred_check
      %p327 = pneg %p326
    $region50: #{upconv_block_forward.1} parent=5 // pred_check_branch
      %329 = sbr.rel (%p327) target = $region52
    $region51: #{upconv_block_forward.1} parent=5 // pred_region
      // Predicated region
      $region53: #{upconv_block_forward.1} parent=51 // pred_check
        %p330 = pneg %p37
      $region54: #{upconv_block_forward.1} parent=51 // pred_check_branch
        %332 = sbr.rel (%p330) target = $region56
      $region55: #{upconv_block_forward.1} parent=51 // pred_region
        %p333 = scmp.lt.s32.totalorder %s17, 1
        %s334 = scalar_select %p333, %s17, 1
        %s335 = smul.addr %s334, 128
        %s336 = smul.addr %s335, 8
        %s337 = scalar_lea.vmem %s0, %s336
      $region56: #{upconv_block_forward.1} parent=51 // pred_fallthru
        _
      // Predicated region
      $region57: #{upconv_block_forward.1} parent=51 // pred_check
        %p338 = pneg %p63
      $region58: #{upconv_block_forward.1} parent=51 // pred_check_branch
        %340 = sbr.rel (%p338) target = $region60
      $region59: #{upconv_block_forward.1} parent=51 // pred_region
        %p341 = scmp.lt.s32.totalorder %s17, 1
        %s342 = scalar_select %p341, %s17, 1
        %s343 = smul.addr %s342, 8
        %s344 = scalar_lea.vmem %s1, %s343
      $region60: #{upconv_block_forward.1} parent=51 // pred_fallthru
        _
    $region52: #{upconv_block_forward.1} parent=5 // pred_fallthru
      _
    %p345 = scmp.le.s32.totalorder 1, %s17
    %p346 = scmp.lt.s32.totalorder %s17, 3
    %p347 = pnand %p345, %p346
    %p348 = pneg %p347
    // Predicated region
    $region61: #{upconv_block_forward.1} parent=5 // pred_check
      _
    $region62: #{upconv_block_forward.1} parent=5 // pred_check_branch
      %350 = sbr.rel (%p347) target = $region64
    $region63: #{upconv_block_forward.1} parent=5 // pred_region
      %s351 = ssub.s32 %s17, 1
      %p352 = scmp.lt.s32.totalorder %s22, 1
      %s353 = scalar_select %p352, %s22, 1
      %s354 = smul.addr %s353, 128
      %s355 = smul.addr %s354, 8
      %s356 = scalar_lea.vmem %s0, %s355
      %p357 = pneg %p43
      %p358 = pneg %p40
      %p359 = scmp.lt.s32.totalorder %s22, 1
      %s360 = scalar_select %p359, %s22, 1
      %s361 = smul.addr %s360, 8
      %s362 = scalar_lea.vmem %s1, %s361
      %p363 = pneg %p69
      %p364 = pneg %p66
      %p365 = pneg %p90
      %p366 = pneg %p87
      %p367 = pneg %p111
      %p368 = pneg %p108
      %p369 = pneg %p132
      %p370 = pneg %p129
      %p371 = pneg %p153
      %p372 = pneg %p150
      %p373 = pneg %p174
      %p374 = pneg %p171
      %p375 = pneg %p195
      %p376 = pneg %p192
      %p377 = pneg %p216
      %p378 = pneg %p213
      %p379 = pneg %p237
      %p380 = pneg %p234
      %p381 = pneg %p258
      %p382 = pneg %p255
      %p383 = pneg %p284
      %p384 = pneg %p281
      %p385 = scmp.lt.s32.totalorder %s22, 1
      %s386 = scalar_select %p385, %s22, 1
      %s387 = smul.addr %s386, 2
      %s388 = smul.addr %s387, 8
      %s389 = scalar_lea.vmem %s11, %s388
      %p390 = scmp.lt.s32.totalorder %s22, 1
      %s391 = scalar_select %p390, %s22, 1
      %s392 = smul.addr %s391, 128
      %s393 = smul.addr %s392, 8
      %s394 = scalar_lea.vmem %s0, %s393
      %p395 = scmp.lt.s32.totalorder %s22, 1
      %s396 = scalar_select %p395, %s22, 1
      %s397 = smul.addr %s396, 8
      %s398 = scalar_lea.vmem %s1, %s397
      %p399 = scmp.lt.s32.totalorder %s22, 1
      %s400 = scalar_select %p399, %s22, 1
      %s401 = smul.addr %s400, 2
      %s402 = smul.addr %s401, 8
      %s403 = scalar_lea.vmem %s11, %s402
      %vm404 = vcmask 130048
      %405 = vst.msk [vmem:[#allocation2] sm:$0xff] %vm404, 0.0
      %406 = vst.msk [vmem:[#allocation2 + $0x8] sm:$0xff] %vm404, 0.0
      %vm407 = vcmask 123904
      %408 = vst.msk [vmem:[#allocation2 + $0x10] sm:$0x3] %vm407, 0.0
      %409 = vst.msk [vmem:[#allocation2 + $0x18] sm:$0xff] %vm404, 0.0
      %410 = vst.msk [vmem:[#allocation2 + $0x20] sm:$0xff] %vm404, 0.0
      %411 = vst.msk [vmem:[#allocation2 + $0x28] sm:$0x3] %vm407, 0.0
      %412 = vst.msk [vmem:[#allocation2 + $0x30] sm:$0xff] %vm404, 0.0
      %413 = vst.msk [vmem:[#allocation2 + $0x38] sm:$0xff] %vm404, 0.0
      %414 = vst.msk [vmem:[#allocation2 + $0x40] sm:$0x3] %vm407, 0.0
      %415 = vst.msk [vmem:[#allocation2 + $0x48] sm:$0xff] %vm404, 0.0
      %416 = vst.msk [vmem:[#allocation2 + $0x50] sm:$0xff] %vm404, 0.0
      %417 = vst.msk [vmem:[#allocation2 + $0x58] sm:$0x3] %vm407, 0.0
      %418 = vst.msk [vmem:[#allocation2 + $0x60] sm:$0xff] %vm404, 0.0
      %419 = vst.msk [vmem:[#allocation2 + $0x68] sm:$0xff] %vm404, 0.0
      %420 = vst.msk [vmem:[#allocation2 + $0x70] sm:$0x3] %vm407, 0.0
      %421 = vst.msk [vmem:[#allocation2 + $0x78] sm:$0xff] %vm404, 0.0
      %422 = vst.msk [vmem:[#allocation2 + $0x80] sm:$0xff] %vm404, 0.0
      %423 = vst.msk [vmem:[#allocation2 + $0x88] sm:$0x3] %vm407, 0.0
      %424 = vst.msk [vmem:[#allocation2 + $0x90] sm:$0xff] %vm404, 0.0
      %425 = vst.msk [vmem:[#allocation2 + $0x98] sm:$0xff] %vm404, 0.0
      %426 = vst.msk [vmem:[#allocation2 + $0xa0] sm:$0x3] %vm407, 0.0
      %427 = vst.msk [vmem:[#allocation2 + $0xa8] sm:$0xff] %vm404, 0.0
      %428 = vst.msk [vmem:[#allocation2 + $0xb0] sm:$0xff] %vm404, 0.0
      %429 = vst.msk [vmem:[#allocation2 + $0xb8] sm:$0x3] %vm407, 0.0
      %430 = vst.msk [vmem:[#allocation2 + $0xc0] sm:$0xff] %vm404, 0.0
      %431 = vst.msk [vmem:[#allocation2 + $0xc8] sm:$0xff] %vm404, 0.0
      %432 = vst.msk [vmem:[#allocation2 + $0xd0] sm:$0x3] %vm407, 0.0
      %433 = vst.msk [vmem:[#allocation2 + $0xd8] sm:$0xff] %vm404, 0.0
      %434 = vst.msk [vmem:[#allocation2 + $0xe0] sm:$0xff] %vm404, 0.0
      %435 = vst.msk [vmem:[#allocation2 + $0xe8] sm:$0x3] %vm407, 0.0
      %436 = vst.msk [vmem:[#allocation2 + $0xf0] sm:$0xff] %vm404, 0.0
      %437 = vst.msk [vmem:[#allocation2 + $0xf8] sm:$0xff] %vm404, 0.0
      %438 = vst.msk [vmem:[#allocation2 + $0x100] sm:$0x3] %vm407, 0.0
      %439 = vst.msk [vmem:[#allocation2 + $0x108] sm:$0xff] %vm404, 0.0
      %440 = vst.msk [vmem:[#allocation2 + $0x110] sm:$0xff] %vm404, 0.0
      %441 = vst.msk [vmem:[#allocation2 + $0x118] sm:$0x3] %vm407, 0.0
      %442 = vst.msk [vmem:[#allocation2 + $0x120] sm:$0xff] %vm404, 0.0
      %443 = vst.msk [vmem:[#allocation2 + $0x128] sm:$0xff] %vm404, 0.0
      %444 = vst.msk [vmem:[#allocation2 + $0x130] sm:$0x3] %vm407, 0.0
      %445 = vst.msk [vmem:[#allocation2 + $0x138] sm:$0xff] %vm404, 0.0
      %446 = vst.msk [vmem:[#allocation2 + $0x140] sm:$0xff] %vm404, 0.0
      %447 = vst.msk [vmem:[#allocation2 + $0x148] sm:$0x3] %vm407, 0.0
      %448 = vst.msk [vmem:[#allocation2 + $0x150] sm:$0xff] %vm404, 0.0
      %449 = vst.msk [vmem:[#allocation2 + $0x158] sm:$0xff] %vm404, 0.0
      %450 = vst.msk [vmem:[#allocation2 + $0x160] sm:$0x3] %vm407, 0.0
      %451 = vst.msk [vmem:[#allocation2 + $0x168] sm:$0xff] %vm404, 0.0
      %452 = vst.msk [vmem:[#allocation2 + $0x170] sm:$0xff] %vm404, 0.0
      %453 = vst.msk [vmem:[#allocation2 + $0x178] sm:$0x3] %vm407, 0.0
      %454 = vst.msk [vmem:[#allocation2 + $0x180] sm:$0xff] %vm404, 0.0
      %455 = vst.msk [vmem:[#allocation2 + $0x188] sm:$0xff] %vm404, 0.0
      %456 = vst.msk [vmem:[#allocation2 + $0x190] sm:$0x3] %vm407, 0.0
      %457 = vst.msk [vmem:[#allocation2 + $0x198] sm:$0xff] %vm404, 0.0
      %458 = vst.msk [vmem:[#allocation2 + $0x1a0] sm:$0xff] %vm404, 0.0
      %459 = vst.msk [vmem:[#allocation2 + $0x1a8] sm:$0x3] %vm407, 0.0
      %vm460 = vcmask 64512
      %461 = vst.msk [vmem:[#allocation3] sm:$0xff] %vm460, 0.0
      %462 = vst.msk [vmem:[#allocation3 + $0x8] sm:$0xff] %vm460, 0.0
      %vm463 = vcmask 58368
      %464 = vst.msk [vmem:[#allocation3 + $0x10] sm:$0x3] %vm463, 0.0
      %465 = vst.msk [vmem:[#allocation3 + $0x18] sm:$0xff] %vm460, 0.0
      %466 = vst.msk [vmem:[#allocation3 + $0x20] sm:$0xff] %vm460, 0.0
      %467 = vst.msk [vmem:[#allocation3 + $0x28] sm:$0x3] %vm463, 0.0
      %468 = vst.msk [vmem:[#allocation3 + $0x30] sm:$0xff] %vm460, 0.0
      %469 = vst.msk [vmem:[#allocation3 + $0x38] sm:$0xff] %vm460, 0.0
      %470 = vst.msk [vmem:[#allocation3 + $0x40] sm:$0x3] %vm463, 0.0
      %471 = vst.msk [vmem:[#allocation3 + $0x48] sm:$0xff] %vm460, 0.0
      %472 = vst.msk [vmem:[#allocation3 + $0x50] sm:$0xff] %vm460, 0.0
      %473 = vst.msk [vmem:[#allocation3 + $0x58] sm:$0x3] %vm463, 0.0
      %474 = vst.msk [vmem:[#allocation3 + $0x60] sm:$0xff] %vm460, 0.0
      %475 = vst.msk [vmem:[#allocation3 + $0x68] sm:$0xff] %vm460, 0.0
      %476 = vst.msk [vmem:[#allocation3 + $0x70] sm:$0x3] %vm463, 0.0
      %477 = vst.msk [vmem:[#allocation3 + $0x78] sm:$0xff] %vm460, 0.0
      %478 = vst.msk [vmem:[#allocation3 + $0x80] sm:$0xff] %vm460, 0.0
      %479 = vst.msk [vmem:[#allocation3 + $0x88] sm:$0x3] %vm463, 0.0
      %480 = vst.msk [vmem:[#allocation3 + $0x90] sm:$0xff] %vm460, 0.0
      %481 = vst.msk [vmem:[#allocation3 + $0x98] sm:$0xff] %vm460, 0.0
      %482 = vst.msk [vmem:[#allocation3 + $0xa0] sm:$0x3] %vm463, 0.0
      %483 = vst.msk [vmem:[#allocation3 + $0xa8] sm:$0xff] %vm460, 0.0
      %484 = vst.msk [vmem:[#allocation3 + $0xb0] sm:$0xff] %vm460, 0.0
      %485 = vst.msk [vmem:[#allocation3 + $0xb8] sm:$0x3] %vm463, 0.0
      %486 = vst.msk [vmem:[#allocation3 + $0xc0] sm:$0xff] %vm460, 0.0
      %487 = vst.msk [vmem:[#allocation3 + $0xc8] sm:$0xff] %vm460, 0.0
      %488 = vst.msk [vmem:[#allocation3 + $0xd0] sm:$0x3] %vm463, 0.0
      %489 = vst.msk [vmem:[#allocation3 + $0xd8] sm:$0xff] %vm460, 0.0
      %490 = vst.msk [vmem:[#allocation3 + $0xe0] sm:$0xff] %vm460, 0.0
      %491 = vst.msk [vmem:[#allocation3 + $0xe8] sm:$0x3] %vm463, 0.0
      %492 = vst.msk [vmem:[#allocation3 + $0xf0] sm:$0xff] %vm460, 0.0
      %493 = vst.msk [vmem:[#allocation3 + $0xf8] sm:$0xff] %vm460, 0.0
      %494 = vst.msk [vmem:[#allocation3 + $0x100] sm:$0x3] %vm463, 0.0
      %495 = vst.msk [vmem:[#allocation3 + $0x108] sm:$0xff] %vm460, 0.0
      %496 = vst.msk [vmem:[#allocation3 + $0x110] sm:$0xff] %vm460, 0.0
      %497 = vst.msk [vmem:[#allocation3 + $0x118] sm:$0x3] %vm463, 0.0
      %498 = vst.msk [vmem:[#allocation3 + $0x120] sm:$0xff] %vm460, 0.0
      %499 = vst.msk [vmem:[#allocation3 + $0x128] sm:$0xff] %vm460, 0.0
      %500 = vst.msk [vmem:[#allocation3 + $0x130] sm:$0x3] %vm463, 0.0
      %501 = vst.msk [vmem:[#allocation3 + $0x138] sm:$0xff] %vm460, 0.0
      %502 = vst.msk [vmem:[#allocation3 + $0x140] sm:$0xff] %vm460, 0.0
      %503 = vst.msk [vmem:[#allocation3 + $0x148] sm:$0x3] %vm463, 0.0
      %504 = vst.msk [vmem:[#allocation3 + $0x150] sm:$0xff] %vm460, 0.0
      %505 = vst.msk [vmem:[#allocation3 + $0x158] sm:$0xff] %vm460, 0.0
      %506 = vst.msk [vmem:[#allocation3 + $0x160] sm:$0x3] %vm463, 0.0
      %507 = vst.msk [vmem:[#allocation3 + $0x168] sm:$0xff] %vm460, 0.0
      %508 = vst.msk [vmem:[#allocation3 + $0x170] sm:$0xff] %vm460, 0.0
      %509 = vst.msk [vmem:[#allocation3 + $0x178] sm:$0x3] %vm463, 0.0
      %510 = vst.msk [vmem:[#allocation3 + $0x180] sm:$0xff] %vm460, 0.0
      %511 = vst.msk [vmem:[#allocation3 + $0x188] sm:$0xff] %vm460, 0.0
      %512 = vst.msk [vmem:[#allocation3 + $0x190] sm:$0x3] %vm463, 0.0
      %513 = vst.msk [vmem:[#allocation3 + $0x198] sm:$0xff] %vm460, 0.0
      %514 = vst.msk [vmem:[#allocation3 + $0x1a0] sm:$0xff] %vm460, 0.0
      %515 = vst.msk [vmem:[#allocation3 + $0x1a8] sm:$0x3] %vm463, 0.0
      %v516 = vld [vmem:[%s2] sm:$0xff]
      %v517 = vld [vmem:[%s2 + $0x8] sm:$0xff]
      %v518 = vld [vmem:[%s2 + $0x10] sm:$0xff]
      %v519 = vld [vmem:[%s2 + $0x18] sm:$0xff]
      %v520 = vld [vmem:[%s394] sm:$0xff]
      %v521 = vld [vmem:[%s394 + $0x8] sm:$0xff]
      %v522 = vld [vmem:[%s394 + $0x10] sm:$0xff]
      %v523 = vld [vmem:[%s394 + $0x18] sm:$0xff]
      %v524 = vld [vmem:[%s394 + $0x20] sm:$0xff]
      %v525 = vld [vmem:[%s394 + $0x28] sm:$0xff]
      %v526 = vld [vmem:[%s394 + $0x30] sm:$0xff]
      %v527 = vld [vmem:[%s394 + $0x38] sm:$0xff]
      %v528 = vld [vmem:[%s394 + $0x40] sm:$0xff]
      %v529 = vld [vmem:[%s394 + $0x48] sm:$0xff]
      %v530 = vld [vmem:[%s394 + $0x50] sm:$0xff]
      %v531 = vld [vmem:[%s394 + $0x58] sm:$0xff]
      %v532 = vld [vmem:[%s394 + $0x60] sm:$0xff]
      %v533 = vld [vmem:[%s394 + $0x68] sm:$0xff]
      %v534 = vld [vmem:[%s394 + $0x70] sm:$0xff]
      %v535 = vld [vmem:[%s394 + $0x78] sm:$0xff]
      %v536 = vld [vmem:[%s394 + $0x80] sm:$0xff]
      %v537 = vld [vmem:[%s394 + $0x88] sm:$0xff]
      %v538 = vld [vmem:[%s394 + $0x90] sm:$0xff]
      %v539 = vld [vmem:[%s394 + $0x98] sm:$0xff]
      %v540 = vld [vmem:[%s394 + $0xa0] sm:$0xff]
      %v541 = vld [vmem:[%s394 + $0xa8] sm:$0xff]
      %v542 = vld [vmem:[%s394 + $0xb0] sm:$0xff]
      %v543 = vld [vmem:[%s394 + $0xb8] sm:$0xff]
      %v544 = vld [vmem:[%s394 + $0xc0] sm:$0xff]
      %v545 = vld [vmem:[%s394 + $0xc8] sm:$0xff]
      %v546 = vld [vmem:[%s394 + $0xd0] sm:$0xff]
      %v547 = vld [vmem:[%s394 + $0xd8] sm:$0xff]
      %v548 = vld [vmem:[%s394 + $0xe0] sm:$0xff]
      %v549 = vld [vmem:[%s394 + $0xe8] sm:$0xff]
      %v550 = vld [vmem:[%s394 + $0xf0] sm:$0xff]
      %v551 = vld [vmem:[%s394 + $0xf8] sm:$0xff]
      %v552 = vld [vmem:[%s394 + $0x100] sm:$0xff]
      %v553 = vld [vmem:[%s394 + $0x108] sm:$0xff]
      %v554 = vld [vmem:[%s394 + $0x110] sm:$0xff]
      %v555 = vld [vmem:[%s394 + $0x118] sm:$0xff]
      %v556 = vld [vmem:[%s394 + $0x120] sm:$0xff]
      %v557 = vld [vmem:[%s394 + $0x128] sm:$0xff]
      %v558 = vld [vmem:[%s394 + $0x130] sm:$0xff]
      %v559 = vld [vmem:[%s394 + $0x138] sm:$0xff]
      %v560 = vld [vmem:[%s394 + $0x140] sm:$0xff]
      %v561 = vld [vmem:[%s394 + $0x148] sm:$0xff]
      %v562 = vld [vmem:[%s394 + $0x150] sm:$0xff]
      %v563 = vld [vmem:[%s394 + $0x158] sm:$0xff]
      %v564 = vld [vmem:[%s394 + $0x160] sm:$0xff]
      %v565 = vld [vmem:[%s394 + $0x168] sm:$0xff]
      %v566 = vld [vmem:[%s394 + $0x170] sm:$0xff]
      %v567 = vld [vmem:[%s394 + $0x178] sm:$0xff]
      %v568 = vld [vmem:[%s394 + $0x180] sm:$0xff]
      %v569 = vld [vmem:[%s394 + $0x188] sm:$0xff]
      %v570 = vld [vmem:[%s394 + $0x190] sm:$0xff]
      %v571 = vld [vmem:[%s394 + $0x198] sm:$0xff]
      %v572 = vld [vmem:[%s394 + $0x1a0] sm:$0xff]
      %v573 = vld [vmem:[%s394 + $0x1a8] sm:$0xff]
      %v574 = vld [vmem:[%s394 + $0x1b0] sm:$0xff]
      %v575 = vld [vmem:[%s394 + $0x1b8] sm:$0xff]
      %v576 = vld [vmem:[%s394 + $0x1c0] sm:$0xff]
      %v577 = vld [vmem:[%s394 + $0x1c8] sm:$0xff]
      %v578 = vld [vmem:[%s394 + $0x1d0] sm:$0xff]
      %v579 = vld [vmem:[%s394 + $0x1d8] sm:$0xff]
      %v580 = vld [vmem:[%s394 + $0x1e0] sm:$0xff]
      %v581 = vld [vmem:[%s394 + $0x1e8] sm:$0xff]
      %v582 = vld [vmem:[%s394 + $0x1f0] sm:$0xff]
      %v583 = vld [vmem:[%s394 + $0x1f8] sm:$0xff]
      %v584 = vld [vmem:[%s394 + $0x200] sm:$0xff]
      %v585 = vld [vmem:[%s394 + $0x208] sm:$0xff]
      %v586 = vld [vmem:[%s394 + $0x210] sm:$0xff]
      %v587 = vld [vmem:[%s394 + $0x218] sm:$0xff]
      %v588 = vld [vmem:[%s394 + $0x220] sm:$0xff]
      %v589 = vld [vmem:[%s394 + $0x228] sm:$0xff]
      %v590 = vld [vmem:[%s394 + $0x230] sm:$0xff]
      %v591 = vld [vmem:[%s394 + $0x238] sm:$0xff]
      %v592 = vld [vmem:[%s394 + $0x240] sm:$0xff]
      %v593 = vld [vmem:[%s394 + $0x248] sm:$0xff]
      %v594 = vld [vmem:[%s394 + $0x250] sm:$0xff]
      %v595 = vld [vmem:[%s394 + $0x258] sm:$0xff]
      %v596 = vld [vmem:[%s394 + $0x260] sm:$0xff]
      %v597 = vld [vmem:[%s394 + $0x268] sm:$0xff]
      %v598 = vld [vmem:[%s394 + $0x270] sm:$0xff]
      %v599 = vld [vmem:[%s394 + $0x278] sm:$0xff]
      %v600 = vld [vmem:[%s394 + $0x280] sm:$0xff]
      %v601 = vld [vmem:[%s394 + $0x288] sm:$0xff]
      %v602 = vld [vmem:[%s394 + $0x290] sm:$0xff]
      %v603 = vld [vmem:[%s394 + $0x298] sm:$0xff]
      %v604 = vld [vmem:[%s394 + $0x2a0] sm:$0xff]
      %v605 = vld [vmem:[%s394 + $0x2a8] sm:$0xff]
      %v606 = vld [vmem:[%s394 + $0x2b0] sm:$0xff]
      %v607 = vld [vmem:[%s394 + $0x2b8] sm:$0xff]
      %v608 = vld [vmem:[%s394 + $0x2c0] sm:$0xff]
      %v609 = vld [vmem:[%s394 + $0x2c8] sm:$0xff]
      %v610 = vld [vmem:[%s394 + $0x2d0] sm:$0xff]
      %v611 = vld [vmem:[%s394 + $0x2d8] sm:$0xff]
      %v612 = vld [vmem:[%s394 + $0x2e0] sm:$0xff]
      %v613 = vld [vmem:[%s394 + $0x2e8] sm:$0xff]
      %v614 = vld [vmem:[%s394 + $0x2f0] sm:$0xff]
      %v615 = vld [vmem:[%s394 + $0x2f8] sm:$0xff]
      %v616 = vld [vmem:[%s394 + $0x300] sm:$0xff]
      %v617 = vld [vmem:[%s394 + $0x308] sm:$0xff]
      %v618 = vld [vmem:[%s394 + $0x310] sm:$0xff]
      %v619 = vld [vmem:[%s394 + $0x318] sm:$0xff]
      %v620 = vld [vmem:[%s394 + $0x320] sm:$0xff]
      %v621 = vld [vmem:[%s394 + $0x328] sm:$0xff]
      %v622 = vld [vmem:[%s394 + $0x330] sm:$0xff]
      %v623 = vld [vmem:[%s394 + $0x338] sm:$0xff]
      %v624 = vld [vmem:[%s394 + $0x340] sm:$0xff]
      %v625 = vld [vmem:[%s394 + $0x348] sm:$0xff]
      %v626 = vld [vmem:[%s394 + $0x350] sm:$0xff]
      %v627 = vld [vmem:[%s394 + $0x358] sm:$0xff]
      %v628 = vld [vmem:[%s394 + $0x360] sm:$0xff]
      %v629 = vld [vmem:[%s394 + $0x368] sm:$0xff]
      %v630 = vld [vmem:[%s394 + $0x370] sm:$0xff]
      %v631 = vld [vmem:[%s394 + $0x378] sm:$0xff]
      %v632 = vld [vmem:[%s394 + $0x380] sm:$0xff]
      %v633 = vld [vmem:[%s394 + $0x388] sm:$0xff]
      %v634 = vld [vmem:[%s394 + $0x390] sm:$0xff]
      %v635 = vld [vmem:[%s394 + $0x398] sm:$0xff]
      %v636 = vld [vmem:[%s394 + $0x3a0] sm:$0xff]
      %v637 = vld [vmem:[%s394 + $0x3a8] sm:$0xff]
      %v638 = vld [vmem:[%s394 + $0x3b0] sm:$0xff]
      %v639 = vld [vmem:[%s394 + $0x3b8] sm:$0xff]
      %v640 = vld [vmem:[%s394 + $0x3c0] sm:$0xff]
      %v641 = vld [vmem:[%s394 + $0x3c8] sm:$0xff]
      %v642 = vld [vmem:[%s394 + $0x3d0] sm:$0xff]
      %v643 = vld [vmem:[%s394 + $0x3d8] sm:$0xff]
      %v644 = vld [vmem:[%s394 + $0x3e0] sm:$0xff]
      %v645 = vld [vmem:[%s394 + $0x3e8] sm:$0xff]
      %v646 = vld [vmem:[%s394 + $0x3f0] sm:$0xff]
      %v647 = vld [vmem:[%s394 + $0x3f8] sm:$0xff]
      %v648 = vld [vmem:[%s3] sm:$0xff]
      %650 = vset.pattern.permute.xlu0 0
      %651 = vperm.xlu0 %650, %v648
      %v652 = vpop.permute.xlu0 %651
      %654 = vmatprep.subr.mxu0 %v521
      %655 = vmatpush1.msra.mxu0 %v520
      %656 = vmatprep.subr.mxu0 %v523
      %657 = vmatpush1.msra.mxu0 %v522
      %658 = vmatprep.subr.mxu0 %v525
      %659 = vmatpush1.msra.mxu0 %v524
      %660 = vmatprep.subr.mxu0 %v527
      %661 = vmatpush1.msra.mxu0 %v526
      %662 = vmatprep.subr.mxu0 %v529
      %663 = vmatpush1.msra.mxu0 %v528
      %664 = vmatprep.subr.mxu0 %v531
      %665 = vmatpush1.msra.mxu0 %v530
      %666 = vmatprep.subr.mxu0 %v533
      %667 = vmatpush1.msra.mxu0 %v532
      %668 = vmatprep.subr.mxu0 %v535
      %669 = vmatpush1.msra.mxu0 %v534
      %670 = vmatprep.subr.mxu0 %v537
      %671 = vmatpush1.msra.mxu0 %v536
      %672 = vmatprep.subr.mxu0 %v539
      %673 = vmatpush1.msra.mxu0 %v538
      %674 = vmatprep.subr.mxu0 %v541
      %675 = vmatpush1.msra.mxu0 %v540
      %676 = vmatprep.subr.mxu0 %v543
      %677 = vmatpush1.msra.mxu0 %v542
      %678 = vmatprep.subr.mxu0 %v545
      %679 = vmatpush1.msra.mxu0 %v544
      %680 = vmatprep.subr.mxu0 %v547
      %681 = vmatpush1.msra.mxu0 %v546
      %682 = vmatprep.subr.mxu0 %v549
      %683 = vmatpush1.msra.mxu0 %v548
      %684 = vmatprep.subr.mxu0 %v551
      %685 = vmatpush1.msra.mxu0 %v550
      %686 = vmatprep.subr.mxu0 %v553
      %687 = vmatpush1.msra.mxu0 %v552
      %688 = vmatprep.subr.mxu0 %v555
      %689 = vmatpush1.msra.mxu0 %v554
      %690 = vmatprep.subr.mxu0 %v557
      %691 = vmatpush1.msra.mxu0 %v556
      %692 = vmatprep.subr.mxu0 %v559
      %693 = vmatpush1.msra.mxu0 %v558
      %694 = vmatprep.subr.mxu0 %v561
      %695 = vmatpush1.msra.mxu0 %v560
      %696 = vmatprep.subr.mxu0 %v563
      %697 = vmatpush1.msra.mxu0 %v562
      %698 = vmatprep.subr.mxu0 %v565
      %699 = vmatpush1.msra.mxu0 %v564
      %700 = vmatprep.subr.mxu0 %v567
      %701 = vmatpush1.msra.mxu0 %v566
      %702 = vmatprep.subr.mxu0 %v569
      %703 = vmatpush1.msra.mxu0 %v568
      %704 = vmatprep.subr.mxu0 %v571
      %705 = vmatpush1.msra.mxu0 %v570
      %706 = vmatprep.subr.mxu0 %v573
      %707 = vmatpush1.msra.mxu0 %v572
      %708 = vmatprep.subr.mxu0 %v575
      %709 = vmatpush1.msra.mxu0 %v574
      %710 = vmatprep.subr.mxu0 %v577
      %711 = vmatpush1.msra.mxu0 %v576
      %712 = vmatprep.subr.mxu0 %v579
      %713 = vmatpush1.msra.mxu0 %v578
      %714 = vmatprep.subr.mxu0 %v581
      %715 = vmatpush1.msra.mxu0 %v580
      %716 = vmatprep.subr.mxu0 %v583
      %717 = vmatpush1.msra.mxu0 %v582
      %718 = vmatprep.mubr.f32.mxu0 %v517
      %719 = vmatmul.mubr.f32.gmra.mrb[0].mxu0 %v516
      %v720 = vpop.f32.mrb[0].mxu0
      %v721 = vadd.f32 %v652, %v720
      %v722 = vpop.f32.mrb[0].mxu0
      %v723 = vadd.f32 %v652, %v722
      %724 = vdwg.mxu0
      %725 = vmatprep.subr.mxu0 %v585
      %726 = vmatpush1.msra.mxu0 %v584
      %727 = vmatprep.subr.mxu0 %v587
      %728 = vmatpush1.msra.mxu0 %v586
      %729 = vmatprep.subr.mxu0 %v589
      %730 = vmatpush1.msra.mxu0 %v588
      %731 = vmatprep.subr.mxu0 %v591
      %732 = vmatpush1.msra.mxu0 %v590
      %733 = vmatprep.subr.mxu0 %v593
      %734 = vmatpush1.msra.mxu0 %v592
      %735 = vmatprep.subr.mxu0 %v595
      %736 = vmatpush1.msra.mxu0 %v594
      %737 = vmatprep.subr.mxu0 %v597
      %738 = vmatpush1.msra.mxu0 %v596
      %739 = vmatprep.subr.mxu0 %v599
      %740 = vmatpush1.msra.mxu0 %v598
      %741 = vmatprep.subr.mxu0 %v601
      %742 = vmatpush1.msra.mxu0 %v600
      %743 = vmatprep.subr.mxu0 %v603
      %744 = vmatpush1.msra.mxu0 %v602
      %745 = vmatprep.subr.mxu0 %v605
      %746 = vmatpush1.msra.mxu0 %v604
      %747 = vmatprep.subr.mxu0 %v607
      %748 = vmatpush1.msra.mxu0 %v606
      %749 = vmatprep.subr.mxu0 %v609
      %750 = vmatpush1.msra.mxu0 %v608
      %751 = vmatprep.subr.mxu0 %v611
      %752 = vmatpush1.msra.mxu0 %v610
      %753 = vmatprep.subr.mxu0 %v613
      %754 = vmatpush1.msra.mxu0 %v612
      %755 = vmatprep.subr.mxu0 %v615
      %756 = vmatpush1.msra.mxu0 %v614
      %757 = vmatprep.subr.mxu0 %v617
      %758 = vmatpush1.msra.mxu0 %v616
      %759 = vmatprep.subr.mxu0 %v619
      %760 = vmatpush1.msra.mxu0 %v618
      %761 = vmatprep.subr.mxu0 %v621
      %762 = vmatpush1.msra.mxu0 %v620
      %763 = vmatprep.subr.mxu0 %v623
      %764 = vmatpush1.msra.mxu0 %v622
      %765 = vmatprep.subr.mxu0 %v625
      %766 = vmatpush1.msra.mxu0 %v624
      %767 = vmatprep.subr.mxu0 %v627
      %768 = vmatpush1.msra.mxu0 %v626
      %769 = vmatprep.subr.mxu0 %v629
      %770 = vmatpush1.msra.mxu0 %v628
      %771 = vmatprep.subr.mxu0 %v631
      %772 = vmatpush1.msra.mxu0 %v630
      %773 = vmatprep.subr.mxu0 %v633
      %774 = vmatpush1.msra.mxu0 %v632
      %775 = vmatprep.subr.mxu0 %v635
      %776 = vmatpush1.msra.mxu0 %v634
      %777 = vmatprep.subr.mxu0 %v637
      %778 = vmatpush1.msra.mxu0 %v636
      %779 = vmatprep.subr.mxu0 %v639
      %780 = vmatpush1.msra.mxu0 %v638
      %781 = vmatprep.subr.mxu0 %v641
      %782 = vmatpush1.msra.mxu0 %v640
      %783 = vmatprep.subr.mxu0 %v643
      %784 = vmatpush1.msra.mxu0 %v642
      %785 = vmatprep.subr.mxu0 %v645
      %786 = vmatpush1.msra.mxu0 %v644
      %787 = vmatprep.subr.mxu0 %v647
      %788 = vmatpush1.msra.mxu0 %v646
      %789 = vmatprep.mubr.f32.mxu0 %v519
      %790 = vmatmul.mubr.f32.gmra.mrb[0].mxu0 %v518
      %v791 = vpop.f32.mrb[0].mxu0
      %v792 = vadd.f32 %v721, %v791
      %v793 = vpop.f32.mrb[0].mxu0
      %v794 = vadd.f32 %v723, %v793
      %795 = vdwg.mxu0
      %v796 = vmax.f32 %v792, 0.0
      %v797 = vmax.f32 %v794, 0.0
      %798 = vxpose.xlu0.b32.start [1/16] %v796, 128
      %799 = vxpose.xlu0.b32.cont [2/16] 0.0, 128
      %800 = vxpose.xlu0.b32.cont [3/16] 0.0, 128
      %801 = vxpose.xlu0.b32.cont [4/16] 0.0, 128
      %802 = vxpose.xlu0.b32.cont [5/16] 0.0, 128
      %803 = vxpose.xlu0.b32.cont [6/16] 0.0, 128
      %804 = vxpose.xlu0.b32.cont [7/16] 0.0, 128
      %805 = vxpose.xlu0.b32.cont [8/16] 0.0, 128
      %806 = vxpose.xlu0.b32.cont [9/16] 0.0, 128
      %807 = vxpose.xlu0.b32.cont [10/16] 0.0, 128
      %808 = vxpose.xlu0.b32.cont [11/16] 0.0, 128
      %809 = vxpose.xlu0.b32.cont [12/16] 0.0, 128
      %810 = vxpose.xlu0.b32.cont [13/16] 0.0, 128
      %811 = vxpose.xlu0.b32.cont [14/16] 0.0, 128
      %812 = vxpose.xlu0.b32.cont [15/16] 0.0, 128
      %813 = vxpose.xlu0.b32.end [16/16] 0.0, 128
      %v814 = vpop.trf.xlu0
      %v815 = vpop.trf.xlu0
      %v816 = vpop.trf.xlu0
      %v817 = vpop.trf.xlu0
      %v818 = vpop.trf.xlu0
      %v819 = vpop.trf.xlu0
      %v820 = vpop.trf.xlu0
      %v821 = vpop.trf.xlu0
      %v822 = vpop.trf.xlu0
      %v823 = vpop.trf.xlu0
      %v824 = vpop.trf.xlu0
      %v825 = vpop.trf.xlu0
      %v826 = vpop.trf.xlu0
      %v827 = vpop.trf.xlu0
      %v828 = vpop.trf.xlu0
      %v829 = vpop.trf.xlu0
      %830 = vxpose.xlu0.b32.start [1/16] %v797, 128
      %831 = vxpose.xlu0.b32.cont [2/16] 0.0, 128
      %832 = vxpose.xlu0.b32.cont [3/16] 0.0, 128
      %833 = vxpose.xlu0.b32.cont [4/16] 0.0, 128
      %834 = vxpose.xlu0.b32.cont [5/16] 0.0, 128
      %835 = vxpose.xlu0.b32.cont [6/16] 0.0, 128
      %836 = vxpose.xlu0.b32.cont [7/16] 0.0, 128
      %837 = vxpose.xlu0.b32.cont [8/16] 0.0, 128
      %838 = vxpose.xlu0.b32.cont [9/16] 0.0, 128
      %839 = vxpose.xlu0.b32.cont [10/16] 0.0, 128
      %840 = vxpose.xlu0.b32.cont [11/16] 0.0, 128
      %841 = vxpose.xlu0.b32.cont [12/16] 0.0, 128
      %842 = vxpose.xlu0.b32.cont [13/16] 0.0, 128
      %843 = vxpose.xlu0.b32.cont [14/16] 0.0, 128
      %844 = vxpose.xlu0.b32.cont [15/16] 0.0, 128
      %845 = vxpose.xlu0.b32.end [16/16] 0.0, 128
      %v846 = vpop.trf.xlu0
      %v847 = vpop.trf.xlu0
      %v848 = vpop.trf.xlu0
      %v849 = vpop.trf.xlu0
      %v850 = vpop.trf.xlu0
      %v851 = vpop.trf.xlu0
      %v852 = vpop.trf.xlu0
      %v853 = vpop.trf.xlu0
      %v854 = vpop.trf.xlu0
      %v855 = vpop.trf.xlu0
      %v856 = vpop.trf.xlu0
      %v857 = vpop.trf.xlu0
      %v858 = vpop.trf.xlu0
      %v859 = vpop.trf.xlu0
      %v860 = vpop.trf.xlu0
      %v861 = vpop.trf.xlu0
      %s862 = scalar_lea.vmem [#allocation2], 24
      %863 = vst.msk [vmem:[%s862 + $0x1] sm:$0xff] %vm460, %v814
      %864 = vst.msk [vmem:[%s862 + $0x9] sm:$0xff] %vm460, %v815
      %865 = vst.msk [vmem:[%s862 + $0x19] sm:$0xff] %vm460, %v816
      %866 = vst.msk [vmem:[%s862 + $0x21] sm:$0xff] %vm460, %v817
      %867 = vst.msk [vmem:[%s862 + $0x31] sm:$0xff] %vm460, %v818
      %868 = vst.msk [vmem:[%s862 + $0x39] sm:$0xff] %vm460, %v819
      %869 = vst.msk [vmem:[%s862 + $0x49] sm:$0xff] %vm460, %v820
      %870 = vst.msk [vmem:[%s862 + $0x51] sm:$0xff] %vm460, %v821
      %871 = vst.msk [vmem:[%s862 + $0x61] sm:$0xff] %vm460, %v822
      %872 = vst.msk [vmem:[%s862 + $0x69] sm:$0xff] %vm460, %v823
      %873 = vst.msk [vmem:[%s862 + $0x79] sm:$0xff] %vm460, %v824
      %874 = vst.msk [vmem:[%s862 + $0x81] sm:$0xff] %vm460, %v825
      %875 = vst.msk [vmem:[%s862 + $0x91] sm:$0xff] %vm460, %v826
      %876 = vst.msk [vmem:[%s862 + $0x99] sm:$0xff] %vm460, %v827
      %877 = vst.msk [vmem:[%s862 + $0xa9] sm:$0xff] %vm460, %v828
      %878 = vst.msk [vmem:[%s862 + $0xb1] sm:$0xff] %vm460, %v829
      %879 = vst.msk [vmem:[%s862 + $0xc1] sm:$0xff] %vm460, %v846
      %880 = vst.msk [vmem:[%s862 + $0xc9] sm:$0xff] %vm460, %v847
      %881 = vst.msk [vmem:[%s862 + $0xd9] sm:$0xff] %vm460, %v848
      %882 = vst.msk [vmem:[%s862 + $0xe1] sm:$0xff] %vm460, %v849
      %883 = vst.msk [vmem:[%s862 + $0xf1] sm:$0xff] %vm460, %v850
      %884 = vst.msk [vmem:[%s862 + $0xf9] sm:$0xff] %vm460, %v851
      %885 = vst.msk [vmem:[%s862 + $0x109] sm:$0xff] %vm460, %v852
      %886 = vst.msk [vmem:[%s862 + $0x111] sm:$0xff] %vm460, %v853
      %887 = vst.msk [vmem:[%s862 + $0x121] sm:$0xff] %vm460, %v854
      %888 = vst.msk [vmem:[%s862 + $0x129] sm:$0xff] %vm460, %v855
      %889 = vst.msk [vmem:[%s862 + $0x139] sm:$0xff] %vm460, %v856
      %890 = vst.msk [vmem:[%s862 + $0x141] sm:$0xff] %vm460, %v857
      %891 = vst.msk [vmem:[%s862 + $0x151] sm:$0xff] %vm460, %v858
      %892 = vst.msk [vmem:[%s862 + $0x159] sm:$0xff] %vm460, %v859
      %893 = vst.msk [vmem:[%s862 + $0x169] sm:$0xff] %vm460, %v860
      %894 = vst.msk [vmem:[%s862 + $0x171] sm:$0xff] %vm460, %v861
      %v895 = vld [vmem:[%s4] sm:$0xff]
      %v896 = vld [vmem:[%s398] sm:$0xff]
      %v898 = vsel %vm460, %v895, 0
      %900 = vmatprep.subr.mxu0 0.0
      %901 = vmatpush1.msra.mxu0 %v896
      %902 = vmatprep.subr.mxu0 0.0
      %903 = vmatpush1.msra.mxu0 0.0
      %904 = vmatprep.subr.mxu0 0.0
      %905 = vmatpush1.msra.mxu0 0.0
      %906 = vmatprep.subr.mxu0 0.0
      %907 = vmatpush1.msra.mxu0 0.0
      %908 = vmatprep.subr.mxu0 0.0
      %909 = vmatpush1.msra.mxu0 0.0
      %910 = vmatprep.subr.mxu0 0.0
      %911 = vmatpush1.msra.mxu0 0.0
      %912 = vmatprep.subr.mxu0 0.0
      %913 = vmatpush1.msra.mxu0 0.0
      %914 = vmatprep.subr.mxu0 0.0
      %915 = vmatpush1.msra.mxu0 0.0
      %916 = vmatprep.subr.mxu0 0.0
      %917 = vmatpush1.msra.mxu0 0.0
      %918 = vmatprep.subr.mxu0 0.0
      %919 = vmatpush1.msra.mxu0 0.0
      %920 = vmatprep.subr.mxu0 0.0
      %921 = vmatpush1.msra.mxu0 0.0
      %922 = vmatprep.subr.mxu0 0.0
      %923 = vmatpush1.msra.mxu0 0.0
      %924 = vmatprep.subr.mxu0 0.0
      %925 = vmatpush1.msra.mxu0 0.0
      %926 = vmatprep.subr.mxu0 0.0
      %927 = vmatpush1.msra.mxu0 0.0
      %928 = vmatprep.subr.mxu0 0.0
      %929 = vmatpush1.msra.mxu0 0.0
      %930 = vmatprep.subr.mxu0 0.0
      %931 = vmatpush1.msra.mxu0 0.0
      %932 = vmatprep.subr.mxu0 0.0
      %933 = vmatpush1.msra.mxu0 0.0
      %934 = vmatprep.subr.mxu0 0.0
      %935 = vmatpush1.msra.mxu0 0.0
      %936 = vmatprep.subr.mxu0 0.0
      %937 = vmatpush1.msra.mxu0 0.0
      %938 = vmatprep.subr.mxu0 0.0
      %939 = vmatpush1.msra.mxu0 0.0
      %940 = vmatprep.subr.mxu0 0.0
      %941 = vmatpush1.msra.mxu0 0.0
      %942 = vmatprep.subr.mxu0 0.0
      %943 = vmatpush1.msra.mxu0 0.0
      %944 = vmatprep.subr.mxu0 0.0
      %945 = vmatpush1.msra.mxu0 0.0
      %946 = vmatprep.subr.mxu0 0.0
      %947 = vmatpush1.msra.mxu0 0.0
      %948 = vmatprep.subr.mxu0 0.0
      %949 = vmatpush1.msra.mxu0 0.0
      %950 = vmatprep.subr.mxu0 0.0
      %951 = vmatpush1.msra.mxu0 0.0
      %952 = vmatprep.subr.mxu0 0.0
      %953 = vmatpush1.msra.mxu0 0.0
      %954 = vmatprep.subr.mxu0 0.0
      %955 = vmatpush1.msra.mxu0 0.0
      %956 = vmatprep.subr.mxu0 0.0
      %957 = vmatpush1.msra.mxu0 0.0
      %958 = vmatprep.subr.mxu0 0.0
      %959 = vmatpush1.msra.mxu0 0.0
      %960 = vmatprep.subr.mxu0 0.0
      %961 = vmatpush1.msra.mxu0 0.0
      %962 = vmatprep.subr.mxu0 0.0
      %963 = vmatpush1.msra.mxu0 0.0
      %964 = vmatprep.mubr.f32.mxu0 0.0
      %965 = vmatmul.mubr.f32.gmra.mrb[0].mxu0 %v898
      %v966 = vpop.f32.mrb[0].mxu0
      %v967 = vadd.f32 0.0, %v966
      %v968 = vpop.f32.mrb[0].mxu0
      %969 = vdwg.mxu0
      %v970 = vld [vmem:[%s6] sm:$0xff]
      %v971 = vld [vmem:[%s6 + $0x8] sm:$0xff]
      %v972 = vld [vmem:[%s6 + $0x10] sm:$0xff]
      %v973 = vld [vmem:[%s6 + $0x18] sm:$0xff]
      %v974 = vld [vmem:[%s6 + $0x20] sm:$0xff]
      %v975 = vld [vmem:[%s6 + $0x28] sm:$0xff]
      %v976 = vld [vmem:[%s6 + $0x30] sm:$0xff]
      %v977 = vld [vmem:[%s6 + $0x38] sm:$0xff]
      %v978 = vld [vmem:[%s6 + $0x40] sm:$0xff]
      %v979 = vld [vmem:[%s6 + $0x48] sm:$0xff]
      %v980 = vld [vmem:[%s6 + $0x50] sm:$0xff]
      %v981 = vld [vmem:[%s6 + $0x58] sm:$0xff]
      %v982 = vld [vmem:[%s6 + $0x60] sm:$0xff]
      %v983 = vld [vmem:[%s6 + $0x68] sm:$0xff]
      %v984 = vld [vmem:[%s6 + $0x70] sm:$0xff]
      %v985 = vld [vmem:[%s6 + $0x78] sm:$0xff]
      %v986 = vld [vmem:[%s5] sm:$0xff]
      %988 = vset.pattern.permute.xlu0 0
      %989 = vperm.xlu0 %988, %v986
      %v990 = vpop.permute.xlu0 %989
      %vm992 = vcmask 523264
      %v994 = vsel %vm992, %v967, 0
      %996 = vmatprep.subr.mxu0 %v971
      %997 = vmatpush1.msra.mxu0 %v970
      %998 = vmatprep.subr.mxu0 %v973
      %999 = vmatpush1.msra.mxu0 %v972
      %1000 = vmatprep.subr.mxu0 %v975
      %1001 = vmatpush1.msra.mxu0 %v974
      %1002 = vmatprep.subr.mxu0 %v977
      %1003 = vmatpush1.msra.mxu0 %v976
      %1004 = vmatprep.subr.mxu0 %v979
      %1005 = vmatpush1.msra.mxu0 %v978
      %1006 = vmatprep.subr.mxu0 %v981
      %1007 = vmatpush1.msra.mxu0 %v980
      %1008 = vmatprep.subr.mxu0 %v983
      %1009 = vmatpush1.msra.mxu0 %v982
      %1010 = vmatprep.subr.mxu0 %v985
      %1011 = vmatpush1.msra.mxu0 %v984
      %1012 = vmatprep.subr.mxu0 0.0
      %1013 = vmatpush1.msra.mxu0 0.0
      %1014 = vmatprep.subr.mxu0 0.0
      %1015 = vmatpush1.msra.mxu0 0.0
      %1016 = vmatprep.subr.mxu0 0.0
      %1017 = vmatpush1.msra.mxu0 0.0
      %1018 = vmatprep.subr.mxu0 0.0
      %1019 = vmatpush1.msra.mxu0 0.0
      %1020 = vmatprep.subr.mxu0 0.0
      %1021 = vmatpush1.msra.mxu0 0.0
      %1022 = vmatprep.subr.mxu0 0.0
      %1023 = vmatpush1.msra.mxu0 0.0
      %1024 = vmatprep.subr.mxu0 0.0
      %1025 = vmatpush1.msra.mxu0 0.0
      %1026 = vmatprep.subr.mxu0 0.0
      %1027 = vmatpush1.msra.mxu0 0.0
      %1028 = vmatprep.subr.mxu0 0.0
      %1029 = vmatpush1.msra.mxu0 0.0
      %1030 = vmatprep.subr.mxu0 0.0
      %1031 = vmatpush1.msra.mxu0 0.0
      %1032 = vmatprep.subr.mxu0 0.0
      %1033 = vmatpush1.msra.mxu0 0.0
      %1034 = vmatprep.subr.mxu0 0.0
      %1035 = vmatpush1.msra.mxu0 0.0
      %1036 = vmatprep.subr.mxu0 0.0
      %1037 = vmatpush1.msra.mxu0 0.0
      %1038 = vmatprep.subr.mxu0 0.0
      %1039 = vmatpush1.msra.mxu0 0.0
      %1040 = vmatprep.subr.mxu0 0.0
      %1041 = vmatpush1.msra.mxu0 0.0
      %1042 = vmatprep.subr.mxu0 0.0
      %1043 = vmatpush1.msra.mxu0 0.0
      %1044 = vmatprep.subr.mxu0 0.0
      %1045 = vmatpush1.msra.mxu0 0.0
      %1046 = vmatprep.subr.mxu0 0.0
      %1047 = vmatpush1.msra.mxu0 0.0
      %1048 = vmatprep.subr.mxu0 0.0
      %1049 = vmatpush1.msra.mxu0 0.0
      %1050 = vmatprep.subr.mxu0 0.0
      %1051 = vmatpush1.msra.mxu0 0.0
      %1052 = vmatprep.subr.mxu0 0.0
      %1053 = vmatpush1.msra.mxu0 0.0
      %1054 = vmatprep.subr.mxu0 0.0
      %1055 = vmatpush1.msra.mxu0 0.0
      %1056 = vmatprep.subr.mxu0 0.0
      %1057 = vmatpush1.msra.mxu0 0.0
      %1058 = vmatprep.subr.mxu0 0.0
      %1059 = vmatpush1.msra.mxu0 0.0
      %1060 = vmatprep.mubr.f32.mxu0 0.0
      %1061 = vmatmul.mubr.f32.gmra.mrb[0].mxu0 %v994
      %v1062 = vpop.f32.mrb[0].mxu0
      %v1063 = vadd.f32 %v990, %v1062
      %v1064 = vpop.f32.mrb[0].mxu0
      %v1065 = vadd.f32 %v990, %v1064
      %1066 = vdwg.mxu0
      %v1067 = vmax.f32 %v1063, 0.0
      %v1068 = vmax.f32 %v1065, 0.0
      %1069 = vxpose.xlu0.b32.start [1/16] %v1067, 128
      %1070 = vxpose.xlu0.b32.cont [2/16] 0.0, 128
      %1071 = vxpose.xlu0.b32.cont [3/16] 0.0, 128
      %1072 = vxpose.xlu0.b32.cont [4/16] 0.0, 128
      %1073 = vxpose.xlu0.b32.cont [5/16] 0.0, 128
      %1074 = vxpose.xlu0.b32.cont [6/16] 0.0, 128
      %1075 = vxpose.xlu0.b32.cont [7/16] 0.0, 128
      %1076 = vxpose.xlu0.b32.cont [8/16] 0.0, 128
      %1077 = vxpose.xlu0.b32.cont [9/16] 0.0, 128
      %1078 = vxpose.xlu0.b32.cont [10/16] 0.0, 128
      %1079 = vxpose.xlu0.b32.cont [11/16] 0.0, 128
      %1080 = vxpose.xlu0.b32.cont [12/16] 0.0, 128
      %1081 = vxpose.xlu0.b32.cont [13/16] 0.0, 128
      %1082 = vxpose.xlu0.b32.cont [14/16] 0.0, 128
      %1083 = vxpose.xlu0.b32.cont [15/16] 0.0, 128
      %1084 = vxpose.xlu0.b32.end [16/16] 0.0, 128
      %v1085 = vpop.trf.xlu0
      %v1086 = vpop.trf.xlu0
      %v1087 = vpop.trf.xlu0
      %v1088 = vpop.trf.xlu0
      %v1089 = vpop.trf.xlu0
      %v1090 = vpop.trf.xlu0
      %v1091 = vpop.trf.xlu0
      %v1092 = vpop.trf.xlu0
      %v1093 = vpop.trf.xlu0
      %v1094 = vpop.trf.xlu0
      %v1095 = vpop.trf.xlu0
      %v1096 = vpop.trf.xlu0
      %v1097 = vpop.trf.xlu0
      %v1098 = vpop.trf.xlu0
      %v1099 = vpop.trf.xlu0
      %v1100 = vpop.trf.xlu0
      %1101 = vxpose.xlu0.b32.start [1/16] %v1068, 128
      %1102 = vxpose.xlu0.b32.cont [2/16] 0.0, 128
      %1103 = vxpose.xlu0.b32.cont [3/16] 0.0, 128
      %1104 = vxpose.xlu0.b32.cont [4/16] 0.0, 128
      %1105 = vxpose.xlu0.b32.cont [5/16] 0.0, 128
      %1106 = vxpose.xlu0.b32.cont [6/16] 0.0, 128
      %1107 = vxpose.xlu0.b32.cont [7/16] 0.0, 128
      %1108 = vxpose.xlu0.b32.cont [8/16] 0.0, 128
      %1109 = vxpose.xlu0.b32.cont [9/16] 0.0, 128
      %1110 = vxpose.xlu0.b32.cont [10/16] 0.0, 128
      %1111 = vxpose.xlu0.b32.cont [11/16] 0.0, 128
      %1112 = vxpose.xlu0.b32.cont [12/16] 0.0, 128
      %1113 = vxpose.xlu0.b32.cont [13/16] 0.0, 128
      %1114 = vxpose.xlu0.b32.cont [14/16] 0.0, 128
      %1115 = vxpose.xlu0.b32.cont [15/16] 0.0, 128
      %1116 = vxpose.xlu0.b32.end [16/16] 0.0, 128
      %v1117 = vpop.trf.xlu0
      %v1118 = vpop.trf.xlu0
      %v1119 = vpop.trf.xlu0
      %v1120 = vpop.trf.xlu0
      %v1121 = vpop.trf.xlu0
      %v1122 = vpop.trf.xlu0
      %v1123 = vpop.trf.xlu0
      %v1124 = vpop.trf.xlu0
      %v1125 = vpop.trf.xlu0
      %v1126 = vpop.trf.xlu0
      %v1127 = vpop.trf.xlu0
      %v1128 = vpop.trf.xlu0
      %v1129 = vpop.trf.xlu0
      %v1130 = vpop.trf.xlu0
      %v1131 = vpop.trf.xlu0
      %v1132 = vpop.trf.xlu0
      %1165 = vrot.lane.b32.xlu0 %v1085, 8
      %v1166 = vpop.permute.xlu0 %1165
      %1167 = vrot.lane.b32.xlu0 %v1086, 8
      %v1168 = vpop.permute.xlu0 %1167
      %1169 = vrot.lane.b32.xlu0 %v1087, 8
      %v1170 = vpop.permute.xlu0 %1169
      %1171 = vrot.lane.b32.xlu0 %v1088, 8
      %v1172 = vpop.permute.xlu0 %1171
      %1173 = vrot.lane.b32.xlu0 %v1089, 8
      %v1174 = vpop.permute.xlu0 %1173
      %1175 = vrot.lane.b32.xlu0 %v1090, 8
      %v1176 = vpop.permute.xlu0 %1175
      %1177 = vrot.lane.b32.xlu0 %v1091, 8
      %v1178 = vpop.permute.xlu0 %1177
      %1179 = vrot.lane.b32.xlu0 %v1092, 8
      %v1180 = vpop.permute.xlu0 %1179
      %1181 = vrot.lane.b32.xlu0 %v1093, 8
      %v1182 = vpop.permute.xlu0 %1181
      %1183 = vrot.lane.b32.xlu0 %v1094, 8
      %v1184 = vpop.permute.xlu0 %1183
      %1185 = vrot.lane.b32.xlu0 %v1095, 8
      %v1186 = vpop.permute.xlu0 %1185
      %1187 = vrot.lane.b32.xlu0 %v1096, 8
      %v1188 = vpop.permute.xlu0 %1187
      %1189 = vrot.lane.b32.xlu0 %v1097, 8
      %v1190 = vpop.permute.xlu0 %1189
      %1191 = vrot.lane.b32.xlu0 %v1098, 8
      %v1192 = vpop.permute.xlu0 %1191
      %1193 = vrot.lane.b32.xlu0 %v1099, 8
      %v1194 = vpop.permute.xlu0 %1193
      %1195 = vrot.lane.b32.xlu0 %v1100, 8
      %v1196 = vpop.permute.xlu0 %1195
      %1197 = vrot.lane.b32.xlu0 %v1117, 8
      %v1198 = vpop.permute.xlu0 %1197
      %1199 = vrot.lane.b32.xlu0 %v1118, 8
      %v1200 = vpop.permute.xlu0 %1199
      %1201 = vrot.lane.b32.xlu0 %v1119, 8
      %v1202 = vpop.permute.xlu0 %1201
      %1203 = vrot.lane.b32.xlu0 %v1120, 8
      %v1204 = vpop.permute.xlu0 %1203
      %1205 = vrot.lane.b32.xlu0 %v1121, 8
      %v1206 = vpop.permute.xlu0 %1205
      %1207 = vrot.lane.b32.xlu0 %v1122, 8
      %v1208 = vpop.permute.xlu0 %1207
      %1209 = vrot.lane.b32.xlu0 %v1123, 8
      %v1210 = vpop.permute.xlu0 %1209
      %1211 = vrot.lane.b32.xlu0 %v1124, 8
      %v1212 = vpop.permute.xlu0 %1211
      %1213 = vrot.lane.b32.xlu0 %v1125, 8
      %v1214 = vpop.permute.xlu0 %1213
      %1215 = vrot.lane.b32.xlu0 %v1126, 8
      %v1216 = vpop.permute.xlu0 %1215
      %1217 = vrot.lane.b32.xlu0 %v1127, 8
      %v1218 = vpop.permute.xlu0 %1217
      %1219 = vrot.lane.b32.xlu0 %v1128, 8
      %v1220 = vpop.permute.xlu0 %1219
      %1221 = vrot.lane.b32.xlu0 %v1129, 8
      %v1222 = vpop.permute.xlu0 %1221
      %1223 = vrot.lane.b32.xlu0 %v1130, 8
      %v1224 = vpop.permute.xlu0 %1223
      %1225 = vrot.lane.b32.xlu0 %v1131, 8
      %v1226 = vpop.permute.xlu0 %1225
      %1227 = vrot.lane.b32.xlu0 %v1132, 8
      %v1228 = vpop.permute.xlu0 %1227
      %vm1261 = vcmask 130112
      %1262 = vst.msk [vmem:[%s862 + $0x1] sm:$0xff] %vm1261, %v1166
      %1263 = vst.msk [vmem:[%s862 + $0x9] sm:$0xff] %vm1261, %v1168
      %1264 = vst.msk [vmem:[%s862 + $0x19] sm:$0xff] %vm1261, %v1170
      %1265 = vst.msk [vmem:[%s862 + $0x21] sm:$0xff] %vm1261, %v1172
      %1266 = vst.msk [vmem:[%s862 + $0x31] sm:$0xff] %vm1261, %v1174
      %1267 = vst.msk [vmem:[%s862 + $0x39] sm:$0xff] %vm1261, %v1176
      %1268 = vst.msk [vmem:[%s862 + $0x49] sm:$0xff] %vm1261, %v1178
      %1269 = vst.msk [vmem:[%s862 + $0x51] sm:$0xff] %vm1261, %v1180
      %1270 = vst.msk [vmem:[%s862 + $0x61] sm:$0xff] %vm1261, %v1182
      %1271 = vst.msk [vmem:[%s862 + $0x69] sm:$0xff] %vm1261, %v1184
      %1272 = vst.msk [vmem:[%s862 + $0x79] sm:$0xff] %vm1261, %v1186
      %1273 = vst.msk [vmem:[%s862 + $0x81] sm:$0xff] %vm1261, %v1188
      %1274 = vst.msk [vmem:[%s862 + $0x91] sm:$0xff] %vm1261, %v1190
      %1275 = vst.msk [vmem:[%s862 + $0x99] sm:$0xff] %vm1261, %v1192
      %1276 = vst.msk [vmem:[%s862 + $0xa9] sm:$0xff] %vm1261, %v1194
      %1277 = vst.msk [vmem:[%s862 + $0xb1] sm:$0xff] %vm1261, %v1196
      %1278 = vst.msk [vmem:[%s862 + $0xc1] sm:$0xff] %vm1261, %v1198
      %1279 = vst.msk [vmem:[%s862 + $0xc9] sm:$0xff] %vm1261, %v1200
      %1280 = vst.msk [vmem:[%s862 + $0xd9] sm:$0xff] %vm1261, %v1202
      %1281 = vst.msk [vmem:[%s862 + $0xe1] sm:$0xff] %vm1261, %v1204
      %1282 = vst.msk [vmem:[%s862 + $0xf1] sm:$0xff] %vm1261, %v1206
      %1283 = vst.msk [vmem:[%s862 + $0xf9] sm:$0xff] %vm1261, %v1208
      %1284 = vst.msk [vmem:[%s862 + $0x109] sm:$0xff] %vm1261, %v1210
      %1285 = vst.msk [vmem:[%s862 + $0x111] sm:$0xff] %vm1261, %v1212
      %1286 = vst.msk [vmem:[%s862 + $0x121] sm:$0xff] %vm1261, %v1214
      %1287 = vst.msk [vmem:[%s862 + $0x129] sm:$0xff] %vm1261, %v1216
      %1288 = vst.msk [vmem:[%s862 + $0x139] sm:$0xff] %vm1261, %v1218
      %1289 = vst.msk [vmem:[%s862 + $0x141] sm:$0xff] %vm1261, %v1220
      %1290 = vst.msk [vmem:[%s862 + $0x151] sm:$0xff] %vm1261, %v1222
      %1291 = vst.msk [vmem:[%s862 + $0x159] sm:$0xff] %vm1261, %v1224
      %1292 = vst.msk [vmem:[%s862 + $0x169] sm:$0xff] %vm1261, %v1226
      %1293 = vst.msk [vmem:[%s862 + $0x171] sm:$0xff] %vm1261, %v1228
      %v1294 = vld [vmem:[#allocation2] sm:$0xff]
      %v1295 = vld [vmem:[#allocation2 + $0x8] sm:$0xff]
      %v1296 = vld [vmem:[#allocation2 + $0x18] sm:$0xff]
      %v1297 = vld [vmem:[#allocation2 + $0x20] sm:$0xff]
      %v1298 = vld [vmem:[#allocation2 + $0x30] sm:$0xff]
      %v1299 = vld [vmem:[#allocation2 + $0x38] sm:$0xff]
      %v1300 = vld [vmem:[#allocation2 + $0x48] sm:$0xff]
      %v1301 = vld [vmem:[#allocation2 + $0x50] sm:$0xff]
      %v1302 = vld [vmem:[#allocation2 + $0x60] sm:$0xff]
      %v1303 = vld [vmem:[#allocation2 + $0x68] sm:$0xff]
      %v1304 = vld [vmem:[#allocation2 + $0x78] sm:$0xff]
      %v1305 = vld [vmem:[#allocation2 + $0x80] sm:$0xff]
      %v1306 = vld [vmem:[#allocation2 + $0x90] sm:$0xff]
      %v1307 = vld [vmem:[#allocation2 + $0x98] sm:$0xff]
      %v1308 = vld [vmem:[#allocation2 + $0xa8] sm:$0xff]
      %v1309 = vld [vmem:[#allocation2 + $0xb0] sm:$0xff]
      %v1310 = vld [vmem:[#allocation2 + $0xc0] sm:$0xff]
      %v1311 = vld [vmem:[#allocation2 + $0xc8] sm:$0xff]
      %v1312 = vld [vmem:[#allocation2 + $0xd8] sm:$0xff]
      %v1313 = vld [vmem:[#allocation2 + $0xe0] sm:$0xff]
      %v1314 = vld [vmem:[#allocation2 + $0xf0] sm:$0xff]
      %v1315 = vld [vmem:[#allocation2 + $0xf8] sm:$0xff]
      %v1316 = vld [vmem:[#allocation2 + $0x108] sm:$0xff]
      %v1317 = vld [vmem:[#allocation2 + $0x110] sm:$0xff]
      %v1318 = vld [vmem:[#allocation2 + $0x120] sm:$0xff]
      %v1319 = vld [vmem:[#allocation2 + $0x128] sm:$0xff]
      %v1320 = vld [vmem:[#allocation2 + $0x138] sm:$0xff]
      %v1321 = vld [vmem:[#allocation2 + $0x140] sm:$0xff]
      %v1322 = vld [vmem:[#allocation2 + $0x150] sm:$0xff]
      %v1323 = vld [vmem:[#allocation2 + $0x158] sm:$0xff]
      %v1324 = vld [vmem:[#allocation2 + $0x168] sm:$0xff]
      %v1325 = vld [vmem:[#allocation2 + $0x170] sm:$0xff]
      %1326 = vst.msk [vmem:[#allocation4] sm:$0xff] %vm404, %v1294
      %1327 = vst.msk [vmem:[#allocation4 + $0x10] sm:$0xff] %vm404, %v1295
      %1328 = vst.msk [vmem:[#allocation4 + $0x20] sm:$0xff] %vm404, %v1296
      %1329 = vst.msk [vmem:[#allocation4 + $0x30] sm:$0xff] %vm404, %v1297
      %1330 = vst.msk [vmem:[#allocation4 + $0x40] sm:$0xff] %vm404, %v1298
      %1331 = vst.msk [vmem:[#allocation4 + $0x50] sm:$0xff] %vm404, %v1299
      %1332 = vst.msk [vmem:[#allocation4 + $0x60] sm:$0xff] %vm404, %v1300
      %1333 = vst.msk [vmem:[#allocation4 + $0x70] sm:$0xff] %vm404, %v1301
      %1334 = vst.msk [vmem:[#allocation4 + $0x80] sm:$0xff] %vm404, %v1302
      %1335 = vst.msk [vmem:[#allocation4 + $0x90] sm:$0xff] %vm404, %v1303
      %1336 = vst.msk [vmem:[#allocation4 + $0xa0] sm:$0xff] %vm404, %v1304
      %1337 = vst.msk [vmem:[#allocation4 + $0xb0] sm:$0xff] %vm404, %v1305
      %1338 = vst.msk [vmem:[#allocation4 + $0xc0] sm:$0xff] %vm404, %v1306
      %1339 = vst.msk [vmem:[#allocation4 + $0xd0] sm:$0xff] %vm404, %v1307
      %1340 = vst.msk [vmem:[#allocation4 + $0xe0] sm:$0xff] %vm404, %v1308
      %1341 = vst.msk [vmem:[#allocation4 + $0xf0] sm:$0xff] %vm404, %v1309
      %1342 = vst.msk [vmem:[#allocation4 + $0x100] sm:$0xff] %vm404, %v1310
      %1343 = vst.msk [vmem:[#allocation4 + $0x110] sm:$0xff] %vm404, %v1311
      %1344 = vst.msk [vmem:[#allocation4 + $0x120] sm:$0xff] %vm404, %v1312
      %1345 = vst.msk [vmem:[#allocation4 + $0x130] sm:$0xff] %vm404, %v1313
      %1346 = vst.msk [vmem:[#allocation4 + $0x140] sm:$0xff] %vm404, %v1314
      %1347 = vst.msk [vmem:[#allocation4 + $0x150] sm:$0xff] %vm404, %v1315
      %1348 = vst.msk [vmem:[#allocation4 + $0x160] sm:$0xff] %vm404, %v1316
      %1349 = vst.msk [vmem:[#allocation4 + $0x170] sm:$0xff] %vm404, %v1317
      %1350 = vst.msk [vmem:[#allocation4 + $0x180] sm:$0xff] %vm404, %v1318
      %1351 = vst.msk [vmem:[#allocation4 + $0x190] sm:$0xff] %vm404, %v1319
      %1352 = vst.msk [vmem:[#allocation4 + $0x1a0] sm:$0xff] %vm404, %v1320
      %1353 = vst.msk [vmem:[#allocation4 + $0x1b0] sm:$0xff] %vm404, %v1321
      %1354 = vst.msk [vmem:[#allocation4 + $0x1c0] sm:$0xff] %vm404, %v1322
      %1355 = vst.msk [vmem:[#allocation4 + $0x1d0] sm:$0xff] %vm404, %v1323
      %1356 = vst.msk [vmem:[#allocation4 + $0x1e0] sm:$0xff] %vm404, %v1324
      %1357 = vst.msk [vmem:[#allocation4 + $0x1f0] sm:$0xff] %vm404, %v1325
      %v1358 = vld [vmem:[#allocation2 + $0x1] sm:$0xff]
      %v1359 = vld [vmem:[#allocation2 + $0x9] sm:$0xff]
      %v1360 = vld [vmem:[#allocation2 + $0x19] sm:$0xff]
      %v1361 = vld [vmem:[#allocation2 + $0x21] sm:$0xff]
      %v1362 = vld [vmem:[#allocation2 + $0x31] sm:$0xff]
      %v1363 = vld [vmem:[#allocation2 + $0x39] sm:$0xff]
      %v1364 = vld [vmem:[#allocation2 + $0x49] sm:$0xff]
      %v1365 = vld [vmem:[#allocation2 + $0x51] sm:$0xff]
      %v1366 = vld [vmem:[#allocation2 + $0x61] sm:$0xff]
      %v1367 = vld [vmem:[#allocation2 + $0x69] sm:$0xff]
      %v1368 = vld [vmem:[#allocation2 + $0x79] sm:$0xff]
      %v1369 = vld [vmem:[#allocation2 + $0x81] sm:$0xff]
      %v1370 = vld [vmem:[#allocation2 + $0x91] sm:$0xff]
      %v1371 = vld [vmem:[#allocation2 + $0x99] sm:$0xff]
      %v1372 = vld [vmem:[#allocation2 + $0xa9] sm:$0xff]
      %v1373 = vld [vmem:[#allocation2 + $0xb1] sm:$0xff]
      %v1374 = vld [vmem:[#allocation2 + $0xc1] sm:$0xff]
      %v1375 = vld [vmem:[#allocation2 + $0xc9] sm:$0xff]
      %v1376 = vld [vmem:[#allocation2 + $0xd9] sm:$0xff]
      %v1377 = vld [vmem:[#allocation2 + $0xe1] sm:$0xff]
      %v1378 = vld [vmem:[#allocation2 + $0xf1] sm:$0xff]
      %v1379 = vld [vmem:[#allocation2 + $0xf9] sm:$0xff]
      %v1380 = vld [vmem:[#allocation2 + $0x109] sm:$0xff]
      %v1381 = vld [vmem:[#allocation2 + $0x111] sm:$0xff]
      %v1382 = vld [vmem:[#allocation2 + $0x121] sm:$0xff]
      %v1383 = vld [vmem:[#allocation2 + $0x129] sm:$0xff]
      %v1384 = vld [vmem:[#allocation2 + $0x139] sm:$0xff]
      %v1385 = vld [vmem:[#allocation2 + $0x141] sm:$0xff]
      %v1386 = vld [vmem:[#allocation2 + $0x151] sm:$0xff]
      %v1387 = vld [vmem:[#allocation2 + $0x159] sm:$0xff]
      %v1388 = vld [vmem:[#allocation2 + $0x169] sm:$0xff]
      %v1389 = vld [vmem:[#allocation2 + $0x171] sm:$0xff]
      %1422 = vrot.lane.b32.xlu0 %v1358, 16
      %v1423 = vpop.permute.xlu0 %1422
      %1424 = vrot.lane.b32.xlu0 %v1359, 16
      %v1425 = vpop.permute.xlu0 %1424
      %1426 = vrot.lane.b32.xlu0 %v1360, 16
      %v1427 = vpop.permute.xlu0 %1426
      %1428 = vrot.lane.b32.xlu0 %v1361, 16
      %v1429 = vpop.permute.xlu0 %1428
      %1430 = vrot.lane.b32.xlu0 %v1362, 16
      %v1431 = vpop.permute.xlu0 %1430
      %1432 = vrot.lane.b32.xlu0 %v1363, 16
      %v1433 = vpop.permute.xlu0 %1432
      %1434 = vrot.lane.b32.xlu0 %v1364, 16
      %v1435 = vpop.permute.xlu0 %1434
      %1436 = vrot.lane.b32.xlu0 %v1365, 16
      %v1437 = vpop.permute.xlu0 %1436
      %1438 = vrot.lane.b32.xlu0 %v1366, 16
      %v1439 = vpop.permute.xlu0 %1438
      %1440 = vrot.lane.b32.xlu0 %v1367, 16
      %v1441 = vpop.permute.xlu0 %1440
      %1442 = vrot.lane.b32.xlu0 %v1368, 16
      %v1443 = vpop.permute.xlu0 %1442
      %1444 = vrot.lane.b32.xlu0 %v1369, 16
      %v1445 = vpop.permute.xlu0 %1444
      %1446 = vrot.lane.b32.xlu0 %v1370, 16
      %v1447 = vpop.permute.xlu0 %1446
      %1448 = vrot.lane.b32.xlu0 %v1371, 16
      %v1449 = vpop.permute.xlu0 %1448
      %1450 = vrot.lane.b32.xlu0 %v1372, 16
      %v1451 = vpop.permute.xlu0 %1450
      %1452 = vrot.lane.b32.xlu0 %v1373, 16
      %v1453 = vpop.permute.xlu0 %1452
      %1454 = vrot.lane.b32.xlu0 %v1374, 16
      %v1455 = vpop.permute.xlu0 %1454
      %1456 = vrot.lane.b32.xlu0 %v1375, 16
      %v1457 = vpop.permute.xlu0 %1456
      %1458 = vrot.lane.b32.xlu0 %v1376, 16
      %v1459 = vpop.permute.xlu0 %1458
      %1460 = vrot.lane.b32.xlu0 %v1377, 16
      %v1461 = vpop.permute.xlu0 %1460
      %1462 = vrot.lane.b32.xlu0 %v1378, 16
      %v1463 = vpop.permute.xlu0 %1462
      %1464 = vrot.lane.b32.xlu0 %v1379, 16
      %v1465 = vpop.permute.xlu0 %1464
      %1466 = vrot.lane.b32.xlu0 %v1380, 16
      %v1467 = vpop.permute.xlu0 %1466
      %1468 = vrot.lane.b32.xlu0 %v1381, 16
      %v1469 = vpop.permute.xlu0 %1468
      %1470 = vrot.lane.b32.xlu0 %v1382, 16
      %v1471 = vpop.permute.xlu0 %1470
      %1472 = vrot.lane.b32.xlu0 %v1383, 16
      %v1473 = vpop.permute.xlu0 %1472
      %1474 = vrot.lane.b32.xlu0 %v1384, 16
      %v1475 = vpop.permute.xlu0 %1474
      %1476 = vrot.lane.b32.xlu0 %v1385, 16
      %v1477 = vpop.permute.xlu0 %1476
      %1478 = vrot.lane.b32.xlu0 %v1386, 16
      %v1479 = vpop.permute.xlu0 %1478
      %1480 = vrot.lane.b32.xlu0 %v1387, 16
      %v1481 = vpop.permute.xlu0 %1480
      %1482 = vrot.lane.b32.xlu0 %v1388, 16
      %v1483 = vpop.permute.xlu0 %1482
      %1484 = vrot.lane.b32.xlu0 %v1389, 16
      %v1485 = vpop.permute.xlu0 %1484
      %vm1518 = vcmask 261248
      %1519 = vst.msk [vmem:[#allocation4] sm:$0xff] %vm1518, %v1423
      %1520 = vst.msk [vmem:[#allocation4 + $0x10] sm:$0xff] %vm1518, %v1425
      %1521 = vst.msk [vmem:[#allocation4 + $0x20] sm:$0xff] %vm1518, %v1427
      %1522 = vst.msk [vmem:[#allocation4 + $0x30] sm:$0xff] %vm1518, %v1429
      %1523 = vst.msk [vmem:[#allocation4 + $0x40] sm:$0xff] %vm1518, %v1431
      %1524 = vst.msk [vmem:[#allocation4 + $0x50] sm:$0xff] %vm1518, %v1433
      %1525 = vst.msk [vmem:[#allocation4 + $0x60] sm:$0xff] %vm1518, %v1435
      %1526 = vst.msk [vmem:[#allocation4 + $0x70] sm:$0xff] %vm1518, %v1437
      %1527 = vst.msk [vmem:[#allocation4 + $0x80] sm:$0xff] %vm1518, %v1439
      %1528 = vst.msk [vmem:[#allocation4 + $0x90] sm:$0xff] %vm1518, %v1441
      %1529 = vst.msk [vmem:[#allocation4 + $0xa0] sm:$0xff] %vm1518, %v1443
      %1530 = vst.msk [vmem:[#allocation4 + $0xb0] sm:$0xff] %vm1518, %v1445
      %1531 = vst.msk [vmem:[#allocation4 + $0xc0] sm:$0xff] %vm1518, %v1447
      %1532 = vst.msk [vmem:[#allocation4 + $0xd0] sm:$0xff] %vm1518, %v1449
      %1533 = vst.msk [vmem:[#allocation4 + $0xe0] sm:$0xff] %vm1518, %v1451
      %1534 = vst.msk [vmem:[#allocation4 + $0xf0] sm:$0xff] %vm1518, %v1453
      %1535 = vst.msk [vmem:[#allocation4 + $0x100] sm:$0xff] %vm1518, %v1455
      %1536 = vst.msk [vmem:[#allocation4 + $0x110] sm:$0xff] %vm1518, %v1457
      %1537 = vst.msk [vmem:[#allocation4 + $0x120] sm:$0xff] %vm1518, %v1459
      %1538 = vst.msk [vmem:[#allocation4 + $0x130] sm:$0xff] %vm1518, %v1461
      %1539 = vst.msk [vmem:[#allocation4 + $0x140] sm:$0xff] %vm1518, %v1463
      %1540 = vst.msk [vmem:[#allocation4 + $0x150] sm:$0xff] %vm1518, %v1465
      %1541 = vst.msk [vmem:[#allocation4 + $0x160] sm:$0xff] %vm1518, %v1467
      %1542 = vst.msk [vmem:[#allocation4 + $0x170] sm:$0xff] %vm1518, %v1469
      %1543 = vst.msk [vmem:[#allocation4 + $0x180] sm:$0xff] %vm1518, %v1471
      %1544 = vst.msk [vmem:[#allocation4 + $0x190] sm:$0xff] %vm1518, %v1473
      %1545 = vst.msk [vmem:[#allocation4 + $0x1a0] sm:$0xff] %vm1518, %v1475
      %1546 = vst.msk [vmem:[#allocation4 + $0x1b0] sm:$0xff] %vm1518, %v1477
      %1547 = vst.msk [vmem:[#allocation4 + $0x1c0] sm:$0xff] %vm1518, %v1479
      %1548 = vst.msk [vmem:[#allocation4 + $0x1d0] sm:$0xff] %vm1518, %v1481
      %1549 = vst.msk [vmem:[#allocation4 + $0x1e0] sm:$0xff] %vm1518, %v1483
      %1550 = vst.msk [vmem:[#allocation4 + $0x1f0] sm:$0xff] %vm1518, %v1485
      %v1551 = vld [vmem:[#allocation2 + $0x2] sm:$0xff]
      %v1552 = vld [vmem:[#allocation2 + $0xa] sm:$0xff]
      %v1553 = vld [vmem:[#allocation2 + $0x1a] sm:$0xff]
      %v1554 = vld [vmem:[#allocation2 + $0x22] sm:$0xff]
      %v1555 = vld [vmem:[#allocation2 + $0x32] sm:$0xff]
      %v1556 = vld [vmem:[#allocation2 + $0x3a] sm:$0xff]
      %v1557 = vld [vmem:[#allocation2 + $0x4a] sm:$0xff]
      %v1558 = vld [vmem:[#allocation2 + $0x52] sm:$0xff]
      %v1559 = vld [vmem:[#allocation2 + $0x62] sm:$0xff]
      %v1560 = vld [vmem:[#allocation2 + $0x6a] sm:$0xff]
      %v1561 = vld [vmem:[#allocation2 + $0x7a] sm:$0xff]
      %v1562 = vld [vmem:[#allocation2 + $0x82] sm:$0xff]
      %v1563 = vld [vmem:[#allocation2 + $0x92] sm:$0xff]
      %v1564 = vld [vmem:[#allocation2 + $0x9a] sm:$0xff]
      %v1565 = vld [vmem:[#allocation2 + $0xaa] sm:$0xff]
      %v1566 = vld [vmem:[#allocation2 + $0xb2] sm:$0xff]
      %v1567 = vld [vmem:[#allocation2 + $0xc2] sm:$0xff]
      %v1568 = vld [vmem:[#allocation2 + $0xca] sm:$0xff]
      %v1569 = vld [vmem:[#allocation2 + $0xda] sm:$0xff]
      %v1570 = vld [vmem:[#allocation2 + $0xe2] sm:$0xff]
      %v1571 = vld [vmem:[#allocation2 + $0xf2] sm:$0xff]
      %v1572 = vld [vmem:[#allocation2 + $0xfa] sm:$0xff]
      %v1573 = vld [vmem:[#allocation2 + $0x10a] sm:$0xff]
      %v1574 = vld [vmem:[#allocation2 + $0x112] sm:$0xff]
      %v1575 = vld [vmem:[#allocation2 + $0x122] sm:$0xff]
      %v1576 = vld [vmem:[#allocation2 + $0x12a] sm:$0xff]
      %v1577 = vld [vmem:[#allocation2 + $0x13a] sm:$0xff]
      %v1578 = vld [vmem:[#allocation2 + $0x142] sm:$0xff]
      %v1579 = vld [vmem:[#allocation2 + $0x152] sm:$0xff]
      %v1580 = vld [vmem:[#allocation2 + $0x15a] sm:$0xff]
      %v1581 = vld [vmem:[#allocation2 + $0x16a] sm:$0xff]
      %v1582 = vld [vmem:[#allocation2 + $0x172] sm:$0xff]
      %1615 = vrot.lane.b32.xlu0 %v1551, 32
      %v1616 = vpop.permute.xlu0 %1615
      %1617 = vrot.lane.b32.xlu0 %v1552, 32
      %v1618 = vpop.permute.xlu0 %1617
      %1619 = vrot.lane.b32.xlu0 %v1553, 32
      %v1620 = vpop.permute.xlu0 %1619
      %1621 = vrot.lane.b32.xlu0 %v1554, 32
      %v1622 = vpop.permute.xlu0 %1621
      %1623 = vrot.lane.b32.xlu0 %v1555, 32
      %v1624 = vpop.permute.xlu0 %1623
      %1625 = vrot.lane.b32.xlu0 %v1556, 32
      %v1626 = vpop.permute.xlu0 %1625
      %1627 = vrot.lane.b32.xlu0 %v1557, 32
      %v1628 = vpop.permute.xlu0 %1627
      %1629 = vrot.lane.b32.xlu0 %v1558, 32
      %v1630 = vpop.permute.xlu0 %1629
      %1631 = vrot.lane.b32.xlu0 %v1559, 32
      %v1632 = vpop.permute.xlu0 %1631
      %1633 = vrot.lane.b32.xlu0 %v1560, 32
      %v1634 = vpop.permute.xlu0 %1633
      %1635 = vrot.lane.b32.xlu0 %v1561, 32
      %v1636 = vpop.permute.xlu0 %1635
      %1637 = vrot.lane.b32.xlu0 %v1562, 32
      %v1638 = vpop.permute.xlu0 %1637
      %1639 = vrot.lane.b32.xlu0 %v1563, 32
      %v1640 = vpop.permute.xlu0 %1639
      %1641 = vrot.lane.b32.xlu0 %v1564, 32
      %v1642 = vpop.permute.xlu0 %1641
      %1643 = vrot.lane.b32.xlu0 %v1565, 32
      %v1644 = vpop.permute.xlu0 %1643
      %1645 = vrot.lane.b32.xlu0 %v1566, 32
      %v1646 = vpop.permute.xlu0 %1645
      %1647 = vrot.lane.b32.xlu0 %v1567, 32
      %v1648 = vpop.permute.xlu0 %1647
      %1649 = vrot.lane.b32.xlu0 %v1568, 32
      %v1650 = vpop.permute.xlu0 %1649
      %1651 = vrot.lane.b32.xlu0 %v1569, 32
      %v1652 = vpop.permute.xlu0 %1651
      %1653 = vrot.lane.b32.xlu0 %v1570, 32
      %v1654 = vpop.permute.xlu0 %1653
      %1655 = vrot.lane.b32.xlu0 %v1571, 32
      %v1656 = vpop.permute.xlu0 %1655
      %1657 = vrot.lane.b32.xlu0 %v1572, 32
      %v1658 = vpop.permute.xlu0 %1657
      %1659 = vrot.lane.b32.xlu0 %v1573, 32
      %v1660 = vpop.permute.xlu0 %1659
      %1661 = vrot.lane.b32.xlu0 %v1574, 32
      %v1662 = vpop.permute.xlu0 %1661
      %1663 = vrot.lane.b32.xlu0 %v1575, 32
      %v1664 = vpop.permute.xlu0 %1663
      %1665 = vrot.lane.b32.xlu0 %v1576, 32
      %v1666 = vpop.permute.xlu0 %1665
      %1667 = vrot.lane.b32.xlu0 %v1577, 32
      %v1668 = vpop.permute.xlu0 %1667
      %1669 = vrot.lane.b32.xlu0 %v1578, 32
      %v1670 = vpop.permute.xlu0 %1669
      %1671 = vrot.lane.b32.xlu0 %v1579, 32
      %v1672 = vpop.permute.xlu0 %1671
      %1673 = vrot.lane.b32.xlu0 %v1580, 32
      %v1674 = vpop.permute.xlu0 %1673
      %1675 = vrot.lane.b32.xlu0 %v1581, 32
      %v1676 = vpop.permute.xlu0 %1675
      %1677 = vrot.lane.b32.xlu0 %v1582, 32
      %v1678 = vpop.permute.xlu0 %1677
      %vm1711 = vcmask 392448
      %1712 = vst.msk [vmem:[#allocation4] sm:$0xff] %vm1711, %v1616
      %1713 = vst.msk [vmem:[#allocation4 + $0x10] sm:$0xff] %vm1711, %v1618
      %1714 = vst.msk [vmem:[#allocation4 + $0x20] sm:$0xff] %vm1711, %v1620
      %1715 = vst.msk [vmem:[#allocation4 + $0x30] sm:$0xff] %vm1711, %v1622
      %1716 = vst.msk [vmem:[#allocation4 + $0x40] sm:$0xff] %vm1711, %v1624
      %1717 = vst.msk [vmem:[#allocation4 + $0x50] sm:$0xff] %vm1711, %v1626
      %1718 = vst.msk [vmem:[#allocation4 + $0x60] sm:$0xff] %vm1711, %v1628
      %1719 = vst.msk [vmem:[#allocation4 + $0x70] sm:$0xff] %vm1711, %v1630
      %1720 = vst.msk [vmem:[#allocation4 + $0x80] sm:$0xff] %vm1711, %v1632
      %1721 = vst.msk [vmem:[#allocation4 + $0x90] sm:$0xff] %vm1711, %v1634
      %1722 = vst.msk [vmem:[#allocation4 + $0xa0] sm:$0xff] %vm1711, %v1636
      %1723 = vst.msk [vmem:[#allocation4 + $0xb0] sm:$0xff] %vm1711, %v1638
      %1724 = vst.msk [vmem:[#allocation4 + $0xc0] sm:$0xff] %vm1711, %v1640
      %1725 = vst.msk [vmem:[#allocation4 + $0xd0] sm:$0xff] %vm1711, %v1642
      %1726 = vst.msk [vmem:[#allocation4 + $0xe0] sm:$0xff] %vm1711, %v1644
      %1727 = vst.msk [vmem:[#allocation4 + $0xf0] sm:$0xff] %vm1711, %v1646
      %1728 = vst.msk [vmem:[#allocation4 + $0x100] sm:$0xff] %vm1711, %v1648
      %1729 = vst.msk [vmem:[#allocation4 + $0x110] sm:$0xff] %vm1711, %v1650
      %1730 = vst.msk [vmem:[#allocation4 + $0x120] sm:$0xff] %vm1711, %v1652
      %1731 = vst.msk [vmem:[#allocation4 + $0x130] sm:$0xff] %vm1711, %v1654
      %1732 = vst.msk [vmem:[#allocation4 + $0x140] sm:$0xff] %vm1711, %v1656
      %1733 = vst.msk [vmem:[#allocation4 + $0x150] sm:$0xff] %vm1711, %v1658
      %1734 = vst.msk [vmem:[#allocation4 + $0x160] sm:$0xff] %vm1711, %v1660
      %1735 = vst.msk [vmem:[#allocation4 + $0x170] sm:$0xff] %vm1711, %v1662
      %1736 = vst.msk [vmem:[#allocation4 + $0x180] sm:$0xff] %vm1711, %v1664
      %1737 = vst.msk [vmem:[#allocation4 + $0x190] sm:$0xff] %vm1711, %v1666
      %1738 = vst.msk [vmem:[#allocation4 + $0x1a0] sm:$0xff] %vm1711, %v1668
      %1739 = vst.msk [vmem:[#allocation4 + $0x1b0] sm:$0xff] %vm1711, %v1670
      %1740 = vst.msk [vmem:[#allocation4 + $0x1c0] sm:$0xff] %vm1711, %v1672
      %1741 = vst.msk [vmem:[#allocation4 + $0x1d0] sm:$0xff] %vm1711, %v1674
      %1742 = vst.msk [vmem:[#allocation4 + $0x1e0] sm:$0xff] %vm1711, %v1676
      %1743 = vst.msk [vmem:[#allocation4 + $0x1f0] sm:$0xff] %vm1711, %v1678
      %v1744 = vld [vmem:[%s862] sm:$0xff]
      %v1745 = vld [vmem:[%s862 + $0x8] sm:$0xff]
      %v1746 = vld [vmem:[%s862 + $0x18] sm:$0xff]
      %v1747 = vld [vmem:[%s862 + $0x20] sm:$0xff]
      %v1748 = vld [vmem:[%s862 + $0x30] sm:$0xff]
      %v1749 = vld [vmem:[%s862 + $0x38] sm:$0xff]
      %v1750 = vld [vmem:[%s862 + $0x48] sm:$0xff]
      %v1751 = vld [vmem:[%s862 + $0x50] sm:$0xff]
      %v1752 = vld [vmem:[%s862 + $0x60] sm:$0xff]
      %v1753 = vld [vmem:[%s862 + $0x68] sm:$0xff]
      %v1754 = vld [vmem:[%s862 + $0x78] sm:$0xff]
      %v1755 = vld [vmem:[%s862 + $0x80] sm:$0xff]
      %v1756 = vld [vmem:[%s862 + $0x90] sm:$0xff]
      %v1757 = vld [vmem:[%s862 + $0x98] sm:$0xff]
      %v1758 = vld [vmem:[%s862 + $0xa8] sm:$0xff]
      %v1759 = vld [vmem:[%s862 + $0xb0] sm:$0xff]
      %v1760 = vld [vmem:[%s862 + $0xc0] sm:$0xff]
      %v1761 = vld [vmem:[%s862 + $0xc8] sm:$0xff]
      %v1762 = vld [vmem:[%s862 + $0xd8] sm:$0xff]
      %v1763 = vld [vmem:[%s862 + $0xe0] sm:$0xff]
      %v1764 = vld [vmem:[%s862 + $0xf0] sm:$0xff]
      %v1765 = vld [vmem:[%s862 + $0xf8] sm:$0xff]
      %v1766 = vld [vmem:[%s862 + $0x108] sm:$0xff]
      %v1767 = vld [vmem:[%s862 + $0x110] sm:$0xff]
      %v1768 = vld [vmem:[%s862 + $0x120] sm:$0xff]
      %v1769 = vld [vmem:[%s862 + $0x128] sm:$0xff]
      %v1770 = vld [vmem:[%s862 + $0x138] sm:$0xff]
      %v1771 = vld [vmem:[%s862 + $0x140] sm:$0xff]
      %v1772 = vld [vmem:[%s862 + $0x150] sm:$0xff]
      %v1773 = vld [vmem:[%s862 + $0x158] sm:$0xff]
      %v1774 = vld [vmem:[%s862 + $0x168] sm:$0xff]
      %v1775 = vld [vmem:[%s862 + $0x170] sm:$0xff]
      %1808 = vrot.lane.b32.xlu0 %v1744, 48
      %v1809 = vpop.permute.xlu0 %1808
      %1810 = vrot.lane.b32.xlu0 %v1745, 48
      %v1811 = vpop.permute.xlu0 %1810
      %1812 = vrot.lane.b32.xlu0 %v1746, 48
      %v1813 = vpop.permute.xlu0 %1812
      %1814 = vrot.lane.b32.xlu0 %v1747, 48
      %v1815 = vpop.permute.xlu0 %1814
      %1816 = vrot.lane.b32.xlu0 %v1748, 48
      %v1817 = vpop.permute.xlu0 %1816
      %1818 = vrot.lane.b32.xlu0 %v1749, 48
      %v1819 = vpop.permute.xlu0 %1818
      %1820 = vrot.lane.b32.xlu0 %v1750, 48
      %v1821 = vpop.permute.xlu0 %1820
      %1822 = vrot.lane.b32.xlu0 %v1751, 48
      %v1823 = vpop.permute.xlu0 %1822
      %1824 = vrot.lane.b32.xlu0 %v1752, 48
      %v1825 = vpop.permute.xlu0 %1824
      %1826 = vrot.lane.b32.xlu0 %v1753, 48
      %v1827 = vpop.permute.xlu0 %1826
      %1828 = vrot.lane.b32.xlu0 %v1754, 48
      %v1829 = vpop.permute.xlu0 %1828
      %1830 = vrot.lane.b32.xlu0 %v1755, 48
      %v1831 = vpop.permute.xlu0 %1830
      %1832 = vrot.lane.b32.xlu0 %v1756, 48
      %v1833 = vpop.permute.xlu0 %1832
      %1834 = vrot.lane.b32.xlu0 %v1757, 48
      %v1835 = vpop.permute.xlu0 %1834
      %1836 = vrot.lane.b32.xlu0 %v1758, 48
      %v1837 = vpop.permute.xlu0 %1836
      %1838 = vrot.lane.b32.xlu0 %v1759, 48
      %v1839 = vpop.permute.xlu0 %1838
      %1840 = vrot.lane.b32.xlu0 %v1760, 48
      %v1841 = vpop.permute.xlu0 %1840
      %1842 = vrot.lane.b32.xlu0 %v1761, 48
      %v1843 = vpop.permute.xlu0 %1842
      %1844 = vrot.lane.b32.xlu0 %v1762, 48
      %v1845 = vpop.permute.xlu0 %1844
      %1846 = vrot.lane.b32.xlu0 %v1763, 48
      %v1847 = vpop.permute.xlu0 %1846
      %1848 = vrot.lane.b32.xlu0 %v1764, 48
      %v1849 = vpop.permute.xlu0 %1848
      %1850 = vrot.lane.b32.xlu0 %v1765, 48
      %v1851 = vpop.permute.xlu0 %1850
      %1852 = vrot.lane.b32.xlu0 %v1766, 48
      %v1853 = vpop.permute.xlu0 %1852
      %1854 = vrot.lane.b32.xlu0 %v1767, 48
      %v1855 = vpop.permute.xlu0 %1854
      %1856 = vrot.lane.b32.xlu0 %v1768, 48
      %v1857 = vpop.permute.xlu0 %1856
      %1858 = vrot.lane.b32.xlu0 %v1769, 48
      %v1859 = vpop.permute.xlu0 %1858
      %1860 = vrot.lane.b32.xlu0 %v1770, 48
      %v1861 = vpop.permute.xlu0 %1860
      %1862 = vrot.lane.b32.xlu0 %v1771, 48
      %v1863 = vpop.permute.xlu0 %1862
      %1864 = vrot.lane.b32.xlu0 %v1772, 48
      %v1865 = vpop.permute.xlu0 %1864
      %1866 = vrot.lane.b32.xlu0 %v1773, 48
      %v1867 = vpop.permute.xlu0 %1866
      %1868 = vrot.lane.b32.xlu0 %v1774, 48
      %v1869 = vpop.permute.xlu0 %1868
      %1870 = vrot.lane.b32.xlu0 %v1775, 48
      %v1871 = vpop.permute.xlu0 %1870
      %vm1904 = vcmask 523648
      %1905 = vst.msk [vmem:[#allocation4] sm:$0xff] %vm1904, %v1809
      %1906 = vst.msk [vmem:[#allocation4 + $0x10] sm:$0xff] %vm1904, %v1811
      %1907 = vst.msk [vmem:[#allocation4 + $0x20] sm:$0xff] %vm1904, %v1813
      %1908 = vst.msk [vmem:[#allocation4 + $0x30] sm:$0xff] %vm1904, %v1815
      %1909 = vst.msk [vmem:[#allocation4 + $0x40] sm:$0xff] %vm1904, %v1817
      %1910 = vst.msk [vmem:[#allocation4 + $0x50] sm:$0xff] %vm1904, %v1819
      %1911 = vst.msk [vmem:[#allocation4 + $0x60] sm:$0xff] %vm1904, %v1821
      %1912 = vst.msk [vmem:[#allocation4 + $0x70] sm:$0xff] %vm1904, %v1823
      %1913 = vst.msk [vmem:[#allocation4 + $0x80] sm:$0xff] %vm1904, %v1825
      %1914 = vst.msk [vmem:[#allocation4 + $0x90] sm:$0xff] %vm1904, %v1827
      %1915 = vst.msk [vmem:[#allocation4 + $0xa0] sm:$0xff] %vm1904, %v1829
      %1916 = vst.msk [vmem:[#allocation4 + $0xb0] sm:$0xff] %vm1904, %v1831
      %1917 = vst.msk [vmem:[#allocation4 + $0xc0] sm:$0xff] %vm1904, %v1833
      %1918 = vst.msk [vmem:[#allocation4 + $0xd0] sm:$0xff] %vm1904, %v1835
      %1919 = vst.msk [vmem:[#allocation4 + $0xe0] sm:$0xff] %vm1904, %v1837
      %1920 = vst.msk [vmem:[#allocation4 + $0xf0] sm:$0xff] %vm1904, %v1839
      %1921 = vst.msk [vmem:[#allocation4 + $0x100] sm:$0xff] %vm1904, %v1841
      %1922 = vst.msk [vmem:[#allocation4 + $0x110] sm:$0xff] %vm1904, %v1843
      %1923 = vst.msk [vmem:[#allocation4 + $0x120] sm:$0xff] %vm1904, %v1845
      %1924 = vst.msk [vmem:[#allocation4 + $0x130] sm:$0xff] %vm1904, %v1847
      %1925 = vst.msk [vmem:[#allocation4 + $0x140] sm:$0xff] %vm1904, %v1849
      %1926 = vst.msk [vmem:[#allocation4 + $0x150] sm:$0xff] %vm1904, %v1851
      %1927 = vst.msk [vmem:[#allocation4 + $0x160] sm:$0xff] %vm1904, %v1853
      %1928 = vst.msk [vmem:[#allocation4 + $0x170] sm:$0xff] %vm1904, %v1855
      %1929 = vst.msk [vmem:[#allocation4 + $0x180] sm:$0xff] %vm1904, %v1857
      %1930 = vst.msk [vmem:[#allocation4 + $0x190] sm:$0xff] %vm1904, %v1859
      %1931 = vst.msk [vmem:[#allocation4 + $0x1a0] sm:$0xff] %vm1904, %v1861
      %1932 = vst.msk [vmem:[#allocation4 + $0x1b0] sm:$0xff] %vm1904, %v1863
      %1933 = vst.msk [vmem:[#allocation4 + $0x1c0] sm:$0xff] %vm1904, %v1865
      %1934 = vst.msk [vmem:[#allocation4 + $0x1d0] sm:$0xff] %vm1904, %v1867
      %1935 = vst.msk [vmem:[#allocation4 + $0x1e0] sm:$0xff] %vm1904, %v1869
      %1936 = vst.msk [vmem:[#allocation4 + $0x1f0] sm:$0xff] %vm1904, %v1871
      %v1937 = vld [vmem:[%s862 + $0x1] sm:$0xff]
      %v1938 = vld [vmem:[%s862 + $0x9] sm:$0xff]
      %v1939 = vld [vmem:[%s862 + $0x19] sm:$0xff]
      %v1940 = vld [vmem:[%s862 + $0x21] sm:$0xff]
      %v1941 = vld [vmem:[%s862 + $0x31] sm:$0xff]
      %v1942 = vld [vmem:[%s862 + $0x39] sm:$0xff]
      %v1943 = vld [vmem:[%s862 + $0x49] sm:$0xff]
      %v1944 = vld [vmem:[%s862 + $0x51] sm:$0xff]
      %v1945 = vld [vmem:[%s862 + $0x61] sm:$0xff]
      %v1946 = vld [vmem:[%s862 + $0x69] sm:$0xff]
      %v1947 = vld [vmem:[%s862 + $0x79] sm:$0xff]
      %v1948 = vld [vmem:[%s862 + $0x81] sm:$0xff]
      %v1949 = vld [vmem:[%s862 + $0x91] sm:$0xff]
      %v1950 = vld [vmem:[%s862 + $0x99] sm:$0xff]
      %v1951 = vld [vmem:[%s862 + $0xa9] sm:$0xff]
      %v1952 = vld [vmem:[%s862 + $0xb1] sm:$0xff]
      %v1953 = vld [vmem:[%s862 + $0xc1] sm:$0xff]
      %v1954 = vld [vmem:[%s862 + $0xc9] sm:$0xff]
      %v1955 = vld [vmem:[%s862 + $0xd9] sm:$0xff]
      %v1956 = vld [vmem:[%s862 + $0xe1] sm:$0xff]
      %v1957 = vld [vmem:[%s862 + $0xf1] sm:$0xff]
      %v1958 = vld [vmem:[%s862 + $0xf9] sm:$0xff]
      %v1959 = vld [vmem:[%s862 + $0x109] sm:$0xff]
      %v1960 = vld [vmem:[%s862 + $0x111] sm:$0xff]
      %v1961 = vld [vmem:[%s862 + $0x121] sm:$0xff]
      %v1962 = vld [vmem:[%s862 + $0x129] sm:$0xff]
      %v1963 = vld [vmem:[%s862 + $0x139] sm:$0xff]
      %v1964 = vld [vmem:[%s862 + $0x141] sm:$0xff]
      %v1965 = vld [vmem:[%s862 + $0x151] sm:$0xff]
      %v1966 = vld [vmem:[%s862 + $0x159] sm:$0xff]
      %v1967 = vld [vmem:[%s862 + $0x169] sm:$0xff]
      %v1968 = vld [vmem:[%s862 + $0x171] sm:$0xff]
      %2001 = vrot.lane.b32.xlu0 %v1937, 64
      %v2002 = vpop.permute.xlu0 %2001
      %2003 = vrot.lane.b32.xlu0 %v1938, 64
      %v2004 = vpop.permute.xlu0 %2003
      %2005 = vrot.lane.b32.xlu0 %v1939, 64
      %v2006 = vpop.permute.xlu0 %2005
      %2007 = vrot.lane.b32.xlu0 %v1940, 64
      %v2008 = vpop.permute.xlu0 %2007
      %2009 = vrot.lane.b32.xlu0 %v1941, 64
      %v2010 = vpop.permute.xlu0 %2009
      %2011 = vrot.lane.b32.xlu0 %v1942, 64
      %v2012 = vpop.permute.xlu0 %2011
      %2013 = vrot.lane.b32.xlu0 %v1943, 64
      %v2014 = vpop.permute.xlu0 %2013
      %2015 = vrot.lane.b32.xlu0 %v1944, 64
      %v2016 = vpop.permute.xlu0 %2015
      %2017 = vrot.lane.b32.xlu0 %v1945, 64
      %v2018 = vpop.permute.xlu0 %2017
      %2019 = vrot.lane.b32.xlu0 %v1946, 64
      %v2020 = vpop.permute.xlu0 %2019
      %2021 = vrot.lane.b32.xlu0 %v1947, 64
      %v2022 = vpop.permute.xlu0 %2021
      %2023 = vrot.lane.b32.xlu0 %v1948, 64
      %v2024 = vpop.permute.xlu0 %2023
      %2025 = vrot.lane.b32.xlu0 %v1949, 64
      %v2026 = vpop.permute.xlu0 %2025
      %2027 = vrot.lane.b32.xlu0 %v1950, 64
      %v2028 = vpop.permute.xlu0 %2027
      %2029 = vrot.lane.b32.xlu0 %v1951, 64
      %v2030 = vpop.permute.xlu0 %2029
      %2031 = vrot.lane.b32.xlu0 %v1952, 64
      %v2032 = vpop.permute.xlu0 %2031
      %2033 = vrot.lane.b32.xlu0 %v1953, 64
      %v2034 = vpop.permute.xlu0 %2033
      %2035 = vrot.lane.b32.xlu0 %v1954, 64
      %v2036 = vpop.permute.xlu0 %2035
      %2037 = vrot.lane.b32.xlu0 %v1955, 64
      %v2038 = vpop.permute.xlu0 %2037
      %2039 = vrot.lane.b32.xlu0 %v1956, 64
      %v2040 = vpop.permute.xlu0 %2039
      %2041 = vrot.lane.b32.xlu0 %v1957, 64
      %v2042 = vpop.permute.xlu0 %2041
      %2043 = vrot.lane.b32.xlu0 %v1958, 64
      %v2044 = vpop.permute.xlu0 %2043
      %2045 = vrot.lane.b32.xlu0 %v1959, 64
      %v2046 = vpop.permute.xlu0 %2045
      %2047 = vrot.lane.b32.xlu0 %v1960, 64
      %v2048 = vpop.permute.xlu0 %2047
      %2049 = vrot.lane.b32.xlu0 %v1961, 64
      %v2050 = vpop.permute.xlu0 %2049
      %2051 = vrot.lane.b32.xlu0 %v1962, 64
      %v2052 = vpop.permute.xlu0 %2051
      %2053 = vrot.lane.b32.xlu0 %v1963, 64
      %v2054 = vpop.permute.xlu0 %2053
      %2055 = vrot.lane.b32.xlu0 %v1964, 64
      %v2056 = vpop.permute.xlu0 %2055
      %2057 = vrot.lane.b32.xlu0 %v1965, 64
      %v2058 = vpop.permute.xlu0 %2057
      %2059 = vrot.lane.b32.xlu0 %v1966, 64
      %v2060 = vpop.permute.xlu0 %2059
      %2061 = vrot.lane.b32.xlu0 %v1967, 64
      %v2062 = vpop.permute.xlu0 %2061
      %2063 = vrot.lane.b32.xlu0 %v1968, 64
      %v2064 = vpop.permute.xlu0 %2063
      %vm2097 = vcmask 654848
      %2098 = vst.msk [vmem:[#allocation4] sm:$0xff] %vm2097, %v2002
      %2099 = vst.msk [vmem:[#allocation4 + $0x10] sm:$0xff] %vm2097, %v2004
      %2100 = vst.msk [vmem:[#allocation4 + $0x20] sm:$0xff] %vm2097, %v2006
      %2101 = vst.msk [vmem:[#allocation4 + $0x30] sm:$0xff] %vm2097, %v2008
      %2102 = vst.msk [vmem:[#allocation4 + $0x40] sm:$0xff] %vm2097, %v2010
      %2103 = vst.msk [vmem:[#allocation4 + $0x50] sm:$0xff] %vm2097, %v2012
      %2104 = vst.msk [vmem:[#allocation4 + $0x60] sm:$0xff] %vm2097, %v2014
      %2105 = vst.msk [vmem:[#allocation4 + $0x70] sm:$0xff] %vm2097, %v2016
      %2106 = vst.msk [vmem:[#allocation4 + $0x80] sm:$0xff] %vm2097, %v2018
      %2107 = vst.msk [vmem:[#allocation4 + $0x90] sm:$0xff] %vm2097, %v2020
      %2108 = vst.msk [vmem:[#allocation4 + $0xa0] sm:$0xff] %vm2097, %v2022
      %2109 = vst.msk [vmem:[#allocation4 + $0xb0] sm:$0xff] %vm2097, %v2024
      %2110 = vst.msk [vmem:[#allocation4 + $0xc0] sm:$0xff] %vm2097, %v2026
      %2111 = vst.msk [vmem:[#allocation4 + $0xd0] sm:$0xff] %vm2097, %v2028
      %2112 = vst.msk [vmem:[#allocation4 + $0xe0] sm:$0xff] %vm2097, %v2030
      %2113 = vst.msk [vmem:[#allocation4 + $0xf0] sm:$0xff] %vm2097, %v2032
      %2114 = vst.msk [vmem:[#allocation4 + $0x100] sm:$0xff] %vm2097, %v2034
      %2115 = vst.msk [vmem:[#allocation4 + $0x110] sm:$0xff] %vm2097, %v2036
      %2116 = vst.msk [vmem:[#allocation4 + $0x120] sm:$0xff] %vm2097, %v2038
      %2117 = vst.msk [vmem:[#allocation4 + $0x130] sm:$0xff] %vm2097, %v2040
      %2118 = vst.msk [vmem:[#allocation4 + $0x140] sm:$0xff] %vm2097, %v2042
      %2119 = vst.msk [vmem:[#allocation4 + $0x150] sm:$0xff] %vm2097, %v2044
      %2120 = vst.msk [vmem:[#allocation4 + $0x160] sm:$0xff] %vm2097, %v2046
      %2121 = vst.msk [vmem:[#allocation4 + $0x170] sm:$0xff] %vm2097, %v2048
      %2122 = vst.msk [vmem:[#allocation4 + $0x180] sm:$0xff] %vm2097, %v2050
      %2123 = vst.msk [vmem:[#allocation4 + $0x190] sm:$0xff] %vm2097, %v2052
      %2124 = vst.msk [vmem:[#allocation4 + $0x1a0] sm:$0xff] %vm2097, %v2054
      %2125 = vst.msk [vmem:[#allocation4 + $0x1b0] sm:$0xff] %vm2097, %v2056
      %2126 = vst.msk [vmem:[#allocation4 + $0x1c0] sm:$0xff] %vm2097, %v2058
      %2127 = vst.msk [vmem:[#allocation4 + $0x1d0] sm:$0xff] %vm2097, %v2060
      %2128 = vst.msk [vmem:[#allocation4 + $0x1e0] sm:$0xff] %vm2097, %v2062
      %2129 = vst.msk [vmem:[#allocation4 + $0x1f0] sm:$0xff] %vm2097, %v2064
      %v2130 = vld [vmem:[%s862 + $0x2] sm:$0xff]
      %v2131 = vld [vmem:[%s862 + $0xa] sm:$0xff]
      %v2132 = vld [vmem:[%s862 + $0x1a] sm:$0xff]
      %v2133 = vld [vmem:[%s862 + $0x22] sm:$0xff]
      %v2134 = vld [vmem:[%s862 + $0x32] sm:$0xff]
      %v2135 = vld [vmem:[%s862 + $0x3a] sm:$0xff]
      %v2136 = vld [vmem:[%s862 + $0x4a] sm:$0xff]
      %v2137 = vld [vmem:[%s862 + $0x52] sm:$0xff]
      %v2138 = vld [vmem:[%s862 + $0x62] sm:$0xff]
      %v2139 = vld [vmem:[%s862 + $0x6a] sm:$0xff]
      %v2140 = vld [vmem:[%s862 + $0x7a] sm:$0xff]
      %v2141 = vld [vmem:[%s862 + $0x82] sm:$0xff]
      %v2142 = vld [vmem:[%s862 + $0x92] sm:$0xff]
      %v2143 = vld [vmem:[%s862 + $0x9a] sm:$0xff]
      %v2144 = vld [vmem:[%s862 + $0xaa] sm:$0xff]
      %v2145 = vld [vmem:[%s862 + $0xb2] sm:$0xff]
      %v2146 = vld [vmem:[%s862 + $0xc2] sm:$0xff]
      %v2147 = vld [vmem:[%s862 + $0xca] sm:$0xff]
      %v2148 = vld [vmem:[%s862 + $0xda] sm:$0xff]
      %v2149 = vld [vmem:[%s862 + $0xe2] sm:$0xff]
      %v2150 = vld [vmem:[%s862 + $0xf2] sm:$0xff]
      %v2151 = vld [vmem:[%s862 + $0xfa] sm:$0xff]
      %v2152 = vld [vmem:[%s862 + $0x10a] sm:$0xff]
      %v2153 = vld [vmem:[%s862 + $0x112] sm:$0xff]
      %v2154 = vld [vmem:[%s862 + $0x122] sm:$0xff]
      %v2155 = vld [vmem:[%s862 + $0x12a] sm:$0xff]
      %v2156 = vld [vmem:[%s862 + $0x13a] sm:$0xff]
      %v2157 = vld [vmem:[%s862 + $0x142] sm:$0xff]
      %v2158 = vld [vmem:[%s862 + $0x152] sm:$0xff]
      %v2159 = vld [vmem:[%s862 + $0x15a] sm:$0xff]
      %v2160 = vld [vmem:[%s862 + $0x16a] sm:$0xff]
      %v2161 = vld [vmem:[%s862 + $0x172] sm:$0xff]
      %2194 = vrot.lane.b32.xlu0 %v2130, 80
      %v2195 = vpop.permute.xlu0 %2194
      %2196 = vrot.lane.b32.xlu0 %v2131, 80
      %v2197 = vpop.permute.xlu0 %2196
      %2198 = vrot.lane.b32.xlu0 %v2132, 80
      %v2199 = vpop.permute.xlu0 %2198
      %2200 = vrot.lane.b32.xlu0 %v2133, 80
      %v2201 = vpop.permute.xlu0 %2200
      %2202 = vrot.lane.b32.xlu0 %v2134, 80
      %v2203 = vpop.permute.xlu0 %2202
      %2204 = vrot.lane.b32.xlu0 %v2135, 80
      %v2205 = vpop.permute.xlu0 %2204
      %2206 = vrot.lane.b32.xlu0 %v2136, 80
      %v2207 = vpop.permute.xlu0 %2206
      %2208 = vrot.lane.b32.xlu0 %v2137, 80
      %v2209 = vpop.permute.xlu0 %2208
      %2210 = vrot.lane.b32.xlu0 %v2138, 80
      %v2211 = vpop.permute.xlu0 %2210
      %2212 = vrot.lane.b32.xlu0 %v2139, 80
      %v2213 = vpop.permute.xlu0 %2212
      %2214 = vrot.lane.b32.xlu0 %v2140, 80
      %v2215 = vpop.permute.xlu0 %2214
      %2216 = vrot.lane.b32.xlu0 %v2141, 80
      %v2217 = vpop.permute.xlu0 %2216
      %2218 = vrot.lane.b32.xlu0 %v2142, 80
      %v2219 = vpop.permute.xlu0 %2218
      %2220 = vrot.lane.b32.xlu0 %v2143, 80
      %v2221 = vpop.permute.xlu0 %2220
      %2222 = vrot.lane.b32.xlu0 %v2144, 80
      %v2223 = vpop.permute.xlu0 %2222
      %2224 = vrot.lane.b32.xlu0 %v2145, 80
      %v2225 = vpop.permute.xlu0 %2224
      %2226 = vrot.lane.b32.xlu0 %v2146, 80
      %v2227 = vpop.permute.xlu0 %2226
      %2228 = vrot.lane.b32.xlu0 %v2147, 80
      %v2229 = vpop.permute.xlu0 %2228
      %2230 = vrot.lane.b32.xlu0 %v2148, 80
      %v2231 = vpop.permute.xlu0 %2230
      %2232 = vrot.lane.b32.xlu0 %v2149, 80
      %v2233 = vpop.permute.xlu0 %2232
      %2234 = vrot.lane.b32.xlu0 %v2150, 80
      %v2235 = vpop.permute.xlu0 %2234
      %2236 = vrot.lane.b32.xlu0 %v2151, 80
      %v2237 = vpop.permute.xlu0 %2236
      %2238 = vrot.lane.b32.xlu0 %v2152, 80
      %v2239 = vpop.permute.xlu0 %2238
      %2240 = vrot.lane.b32.xlu0 %v2153, 80
      %v2241 = vpop.permute.xlu0 %2240
      %2242 = vrot.lane.b32.xlu0 %v2154, 80
      %v2243 = vpop.permute.xlu0 %2242
      %2244 = vrot.lane.b32.xlu0 %v2155, 80
      %v2245 = vpop.permute.xlu0 %2244
      %2246 = vrot.lane.b32.xlu0 %v2156, 80
      %v2247 = vpop.permute.xlu0 %2246
      %2248 = vrot.lane.b32.xlu0 %v2157, 80
      %v2249 = vpop.permute.xlu0 %2248
      %2250 = vrot.lane.b32.xlu0 %v2158, 80
      %v2251 = vpop.permute.xlu0 %2250
      %2252 = vrot.lane.b32.xlu0 %v2159, 80
      %v2253 = vpop.permute.xlu0 %2252
      %2254 = vrot.lane.b32.xlu0 %v2160, 80
      %v2255 = vpop.permute.xlu0 %2254
      %2256 = vrot.lane.b32.xlu0 %v2161, 80
      %v2257 = vpop.permute.xlu0 %2256
      %vm2290 = vcmask 786048
      %2291 = vst.msk [vmem:[#allocation4] sm:$0xff] %vm2290, %v2195
      %2292 = vst.msk [vmem:[#allocation4 + $0x10] sm:$0xff] %vm2290, %v2197
      %2293 = vst.msk [vmem:[#allocation4 + $0x20] sm:$0xff] %vm2290, %v2199
      %2294 = vst.msk [vmem:[#allocation4 + $0x30] sm:$0xff] %vm2290, %v2201
      %2295 = vst.msk [vmem:[#allocation4 + $0x40] sm:$0xff] %vm2290, %v2203
      %2296 = vst.msk [vmem:[#allocation4 + $0x50] sm:$0xff] %vm2290, %v2205
      %2297 = vst.msk [vmem:[#allocation4 + $0x60] sm:$0xff] %vm2290, %v2207
      %2298 = vst.msk [vmem:[#allocation4 + $0x70] sm:$0xff] %vm2290, %v2209
      %2299 = vst.msk [vmem:[#allocation4 + $0x80] sm:$0xff] %vm2290, %v2211
      %2300 = vst.msk [vmem:[#allocation4 + $0x90] sm:$0xff] %vm2290, %v2213
      %2301 = vst.msk [vmem:[#allocation4 + $0xa0] sm:$0xff] %vm2290, %v2215
      %2302 = vst.msk [vmem:[#allocation4 + $0xb0] sm:$0xff] %vm2290, %v2217
      %2303 = vst.msk [vmem:[#allocation4 + $0xc0] sm:$0xff] %vm2290, %v2219
      %2304 = vst.msk [vmem:[#allocation4 + $0xd0] sm:$0xff] %vm2290, %v2221
      %2305 = vst.msk [vmem:[#allocation4 + $0xe0] sm:$0xff] %vm2290, %v2223
      %2306 = vst.msk [vmem:[#allocation4 + $0xf0] sm:$0xff] %vm2290, %v2225
      %2307 = vst.msk [vmem:[#allocation4 + $0x100] sm:$0xff] %vm2290, %v2227
      %2308 = vst.msk [vmem:[#allocation4 + $0x110] sm:$0xff] %vm2290, %v2229
      %2309 = vst.msk [vmem:[#allocation4 + $0x120] sm:$0xff] %vm2290, %v2231
      %2310 = vst.msk [vmem:[#allocation4 + $0x130] sm:$0xff] %vm2290, %v2233
      %2311 = vst.msk [vmem:[#allocation4 + $0x140] sm:$0xff] %vm2290, %v2235
      %2312 = vst.msk [vmem:[#allocation4 + $0x150] sm:$0xff] %vm2290, %v2237
      %2313 = vst.msk [vmem:[#allocation4 + $0x160] sm:$0xff] %vm2290, %v2239
      %2314 = vst.msk [vmem:[#allocation4 + $0x170] sm:$0xff] %vm2290, %v2241
      %2315 = vst.msk [vmem:[#allocation4 + $0x180] sm:$0xff] %vm2290, %v2243
      %2316 = vst.msk [vmem:[#allocation4 + $0x190] sm:$0xff] %vm2290, %v2245
      %2317 = vst.msk [vmem:[#allocation4 + $0x1a0] sm:$0xff] %vm2290, %v2247
      %2318 = vst.msk [vmem:[#allocation4 + $0x1b0] sm:$0xff] %vm2290, %v2249
      %2319 = vst.msk [vmem:[#allocation4 + $0x1c0] sm:$0xff] %vm2290, %v2251
      %2320 = vst.msk [vmem:[#allocation4 + $0x1d0] sm:$0xff] %vm2290, %v2253
      %2321 = vst.msk [vmem:[#allocation4 + $0x1e0] sm:$0xff] %vm2290, %v2255
      %2322 = vst.msk [vmem:[#allocation4 + $0x1f0] sm:$0xff] %vm2290, %v2257
      %s2323 = scalar_lea.vmem [#allocation2], 48
      %v2324 = vld [vmem:[%s2323] sm:$0xff]
      %v2325 = vld [vmem:[%s2323 + $0x8] sm:$0xff]
      %v2326 = vld [vmem:[%s2323 + $0x18] sm:$0xff]
      %v2327 = vld [vmem:[%s2323 + $0x20] sm:$0xff]
      %v2328 = vld [vmem:[%s2323 + $0x30] sm:$0xff]
      %v2329 = vld [vmem:[%s2323 + $0x38] sm:$0xff]
      %v2330 = vld [vmem:[%s2323 + $0x48] sm:$0xff]
      %v2331 = vld [vmem:[%s2323 + $0x50] sm:$0xff]
      %v2332 = vld [vmem:[%s2323 + $0x60] sm:$0xff]
      %v2333 = vld [vmem:[%s2323 + $0x68] sm:$0xff]
      %v2334 = vld [vmem:[%s2323 + $0x78] sm:$0xff]
      %v2335 = vld [vmem:[%s2323 + $0x80] sm:$0xff]
      %v2336 = vld [vmem:[%s2323 + $0x90] sm:$0xff]
      %v2337 = vld [vmem:[%s2323 + $0x98] sm:$0xff]
      %v2338 = vld [vmem:[%s2323 + $0xa8] sm:$0xff]
      %v2339 = vld [vmem:[%s2323 + $0xb0] sm:$0xff]
      %v2340 = vld [vmem:[%s2323 + $0xc0] sm:$0xff]
      %v2341 = vld [vmem:[%s2323 + $0xc8] sm:$0xff]
      %v2342 = vld [vmem:[%s2323 + $0xd8] sm:$0xff]
      %v2343 = vld [vmem:[%s2323 + $0xe0] sm:$0xff]
      %v2344 = vld [vmem:[%s2323 + $0xf0] sm:$0xff]
      %v2345 = vld [vmem:[%s2323 + $0xf8] sm:$0xff]
      %v2346 = vld [vmem:[%s2323 + $0x108] sm:$0xff]
      %v2347 = vld [vmem:[%s2323 + $0x110] sm:$0xff]
      %v2348 = vld [vmem:[%s2323 + $0x120] sm:$0xff]
      %v2349 = vld [vmem:[%s2323 + $0x128] sm:$0xff]
      %v2350 = vld [vmem:[%s2323 + $0x138] sm:$0xff]
      %v2351 = vld [vmem:[%s2323 + $0x140] sm:$0xff]
      %v2352 = vld [vmem:[%s2323 + $0x150] sm:$0xff]
      %v2353 = vld [vmem:[%s2323 + $0x158] sm:$0xff]
      %v2354 = vld [vmem:[%s2323 + $0x168] sm:$0xff]
      %v2355 = vld [vmem:[%s2323 + $0x170] sm:$0xff]
      %2388 = vrot.lane.b32.xlu0 %v2324, 96
      %v2389 = vpop.permute.xlu0 %2388
      %2390 = vrot.lane.b32.xlu0 %v2325, 96
      %v2391 = vpop.permute.xlu0 %2390
      %2392 = vrot.lane.b32.xlu0 %v2326, 96
      %v2393 = vpop.permute.xlu0 %2392
      %2394 = vrot.lane.b32.xlu0 %v2327, 96
      %v2395 = vpop.permute.xlu0 %2394
      %2396 = vrot.lane.b32.xlu0 %v2328, 96
      %v2397 = vpop.permute.xlu0 %2396
      %2398 = vrot.lane.b32.xlu0 %v2329, 96
      %v2399 = vpop.permute.xlu0 %2398
      %2400 = vrot.lane.b32.xlu0 %v2330, 96
      %v2401 = vpop.permute.xlu0 %2400
      %2402 = vrot.lane.b32.xlu0 %v2331, 96
      %v2403 = vpop.permute.xlu0 %2402
      %2404 = vrot.lane.b32.xlu0 %v2332, 96
      %v2405 = vpop.permute.xlu0 %2404
      %2406 = vrot.lane.b32.xlu0 %v2333, 96
      %v2407 = vpop.permute.xlu0 %2406
      %2408 = vrot.lane.b32.xlu0 %v2334, 96
      %v2409 = vpop.permute.xlu0 %2408
      %2410 = vrot.lane.b32.xlu0 %v2335, 96
      %v2411 = vpop.permute.xlu0 %2410
      %2412 = vrot.lane.b32.xlu0 %v2336, 96
      %v2413 = vpop.permute.xlu0 %2412
      %2414 = vrot.lane.b32.xlu0 %v2337, 96
      %v2415 = vpop.permute.xlu0 %2414
      %2416 = vrot.lane.b32.xlu0 %v2338, 96
      %v2417 = vpop.permute.xlu0 %2416
      %2418 = vrot.lane.b32.xlu0 %v2339, 96
      %v2419 = vpop.permute.xlu0 %2418
      %2420 = vrot.lane.b32.xlu0 %v2340, 96
      %v2421 = vpop.permute.xlu0 %2420
      %2422 = vrot.lane.b32.xlu0 %v2341, 96
      %v2423 = vpop.permute.xlu0 %2422
      %2424 = vrot.lane.b32.xlu0 %v2342, 96
      %v2425 = vpop.permute.xlu0 %2424
      %2426 = vrot.lane.b32.xlu0 %v2343, 96
      %v2427 = vpop.permute.xlu0 %2426
      %2428 = vrot.lane.b32.xlu0 %v2344, 96
      %v2429 = vpop.permute.xlu0 %2428
      %2430 = vrot.lane.b32.xlu0 %v2345, 96
      %v2431 = vpop.permute.xlu0 %2430
      %2432 = vrot.lane.b32.xlu0 %v2346, 96
      %v2433 = vpop.permute.xlu0 %2432
      %2434 = vrot.lane.b32.xlu0 %v2347, 96
      %v2435 = vpop.permute.xlu0 %2434
      %2436 = vrot.lane.b32.xlu0 %v2348, 96
      %v2437 = vpop.permute.xlu0 %2436
      %2438 = vrot.lane.b32.xlu0 %v2349, 96
      %v2439 = vpop.permute.xlu0 %2438
      %2440 = vrot.lane.b32.xlu0 %v2350, 96
      %v2441 = vpop.permute.xlu0 %2440
      %2442 = vrot.lane.b32.xlu0 %v2351, 96
      %v2443 = vpop.permute.xlu0 %2442
      %2444 = vrot.lane.b32.xlu0 %v2352, 96
      %v2445 = vpop.permute.xlu0 %2444
      %2446 = vrot.lane.b32.xlu0 %v2353, 96
      %v2447 = vpop.permute.xlu0 %2446
      %2448 = vrot.lane.b32.xlu0 %v2354, 96
      %v2449 = vpop.permute.xlu0 %2448
      %2450 = vrot.lane.b32.xlu0 %v2355, 96
      %v2451 = vpop.permute.xlu0 %2450
      %vm2484 = vcmask 917248
      %2485 = vst.msk [vmem:[#allocation4] sm:$0xff] %vm2484, %v2389
      %2486 = vst.msk [vmem:[#allocation4 + $0x10] sm:$0xff] %vm2484, %v2391
      %2487 = vst.msk [vmem:[#allocation4 + $0x20] sm:$0xff] %vm2484, %v2393
      %2488 = vst.msk [vmem:[#allocation4 + $0x30] sm:$0xff] %vm2484, %v2395
      %2489 = vst.msk [vmem:[#allocation4 + $0x40] sm:$0xff] %vm2484, %v2397
      %2490 = vst.msk [vmem:[#allocation4 + $0x50] sm:$0xff] %vm2484, %v2399
      %2491 = vst.msk [vmem:[#allocation4 + $0x60] sm:$0xff] %vm2484, %v2401
      %2492 = vst.msk [vmem:[#allocation4 + $0x70] sm:$0xff] %vm2484, %v2403
      %2493 = vst.msk [vmem:[#allocation4 + $0x80] sm:$0xff] %vm2484, %v2405
      %2494 = vst.msk [vmem:[#allocation4 + $0x90] sm:$0xff] %vm2484, %v2407
      %2495 = vst.msk [vmem:[#allocation4 + $0xa0] sm:$0xff] %vm2484, %v2409
      %2496 = vst.msk [vmem:[#allocation4 + $0xb0] sm:$0xff] %vm2484, %v2411
      %2497 = vst.msk [vmem:[#allocation4 + $0xc0] sm:$0xff] %vm2484, %v2413
      %2498 = vst.msk [vmem:[#allocation4 + $0xd0] sm:$0xff] %vm2484, %v2415
      %2499 = vst.msk [vmem:[#allocation4 + $0xe0] sm:$0xff] %vm2484, %v2417
      %2500 = vst.msk [vmem:[#allocation4 + $0xf0] sm:$0xff] %vm2484, %v2419
      %2501 = vst.msk [vmem:[#allocation4 + $0x100] sm:$0xff] %vm2484, %v2421
      %2502 = vst.msk [vmem:[#allocation4 + $0x110] sm:$0xff] %vm2484, %v2423
      %2503 = vst.msk [vmem:[#allocation4 + $0x120] sm:$0xff] %vm2484, %v2425
      %2504 = vst.msk [vmem:[#allocation4 + $0x130] sm:$0xff] %vm2484, %v2427
      %2505 = vst.msk [vmem:[#allocation4 + $0x140] sm:$0xff] %vm2484, %v2429
      %2506 = vst.msk [vmem:[#allocation4 + $0x150] sm:$0xff] %vm2484, %v2431
      %2507 = vst.msk [vmem:[#allocation4 + $0x160] sm:$0xff] %vm2484, %v2433
      %2508 = vst.msk [vmem:[#allocation4 + $0x170] sm:$0xff] %vm2484, %v2435
      %2509 = vst.msk [vmem:[#allocation4 + $0x180] sm:$0xff] %vm2484, %v2437
      %2510 = vst.msk [vmem:[#allocation4 + $0x190] sm:$0xff] %vm2484, %v2439
      %2511 = vst.msk [vmem:[#allocation4 + $0x1a0] sm:$0xff] %vm2484, %v2441
      %2512 = vst.msk [vmem:[#allocation4 + $0x1b0] sm:$0xff] %vm2484, %v2443
      %2513 = vst.msk [vmem:[#allocation4 + $0x1c0] sm:$0xff] %vm2484, %v2445
      %2514 = vst.msk [vmem:[#allocation4 + $0x1d0] sm:$0xff] %vm2484, %v2447
      %2515 = vst.msk [vmem:[#allocation4 + $0x1e0] sm:$0xff] %vm2484, %v2449
      %2516 = vst.msk [vmem:[#allocation4 + $0x1f0] sm:$0xff] %vm2484, %v2451
      %v2517 = vld [vmem:[%s2323 + $0x1] sm:$0xff]
      %v2518 = vld [vmem:[%s2323 + $0x9] sm:$0xff]
      %v2519 = vld [vmem:[%s2323 + $0x19] sm:$0xff]
      %v2520 = vld [vmem:[%s2323 + $0x21] sm:$0xff]
      %v2521 = vld [vmem:[%s2323 + $0x31] sm:$0xff]
      %v2522 = vld [vmem:[%s2323 + $0x39] sm:$0xff]
      %v2523 = vld [vmem:[%s2323 + $0x49] sm:$0xff]
      %v2524 = vld [vmem:[%s2323 + $0x51] sm:$0xff]
      %v2525 = vld [vmem:[%s2323 + $0x61] sm:$0xff]
      %v2526 = vld [vmem:[%s2323 + $0x69] sm:$0xff]
      %v2527 = vld [vmem:[%s2323 + $0x79] sm:$0xff]
      %v2528 = vld [vmem:[%s2323 + $0x81] sm:$0xff]
      %v2529 = vld [vmem:[%s2323 + $0x91] sm:$0xff]
      %v2530 = vld [vmem:[%s2323 + $0x99] sm:$0xff]
      %v2531 = vld [vmem:[%s2323 + $0xa9] sm:$0xff]
      %v2532 = vld [vmem:[%s2323 + $0xb1] sm:$0xff]
      %v2533 = vld [vmem:[%s2323 + $0xc1] sm:$0xff]
      %v2534 = vld [vmem:[%s2323 + $0xc9] sm:$0xff]
      %v2535 = vld [vmem:[%s2323 + $0xd9] sm:$0xff]
      %v2536 = vld [vmem:[%s2323 + $0xe1] sm:$0xff]
      %v2537 = vld [vmem:[%s2323 + $0xf1] sm:$0xff]
      %v2538 = vld [vmem:[%s2323 + $0xf9] sm:$0xff]
      %v2539 = vld [vmem:[%s2323 + $0x109] sm:$0xff]
      %v2540 = vld [vmem:[%s2323 + $0x111] sm:$0xff]
      %v2541 = vld [vmem:[%s2323 + $0x121] sm:$0xff]
      %v2542 = vld [vmem:[%s2323 + $0x129] sm:$0xff]
      %v2543 = vld [vmem:[%s2323 + $0x139] sm:$0xff]
      %v2544 = vld [vmem:[%s2323 + $0x141] sm:$0xff]
      %v2545 = vld [vmem:[%s2323 + $0x151] sm:$0xff]
      %v2546 = vld [vmem:[%s2323 + $0x159] sm:$0xff]
      %v2547 = vld [vmem:[%s2323 + $0x169] sm:$0xff]
      %v2548 = vld [vmem:[%s2323 + $0x171] sm:$0xff]
      %2581 = vrot.lane.b32.xlu0 %v2517, 112
      %v2582 = vpop.permute.xlu0 %2581
      %2583 = vrot.lane.b32.xlu0 %v2518, 112
      %v2584 = vpop.permute.xlu0 %2583
      %2585 = vrot.lane.b32.xlu0 %v2519, 112
      %v2586 = vpop.permute.xlu0 %2585
      %2587 = vrot.lane.b32.xlu0 %v2520, 112
      %v2588 = vpop.permute.xlu0 %2587
      %2589 = vrot.lane.b32.xlu0 %v2521, 112
      %v2590 = vpop.permute.xlu0 %2589
      %2591 = vrot.lane.b32.xlu0 %v2522, 112
      %v2592 = vpop.permute.xlu0 %2591
      %2593 = vrot.lane.b32.xlu0 %v2523, 112
      %v2594 = vpop.permute.xlu0 %2593
      %2595 = vrot.lane.b32.xlu0 %v2524, 112
      %v2596 = vpop.permute.xlu0 %2595
      %2597 = vrot.lane.b32.xlu0 %v2525, 112
      %v2598 = vpop.permute.xlu0 %2597
      %2599 = vrot.lane.b32.xlu0 %v2526, 112
      %v2600 = vpop.permute.xlu0 %2599
      %2601 = vrot.lane.b32.xlu0 %v2527, 112
      %v2602 = vpop.permute.xlu0 %2601
      %2603 = vrot.lane.b32.xlu0 %v2528, 112
      %v2604 = vpop.permute.xlu0 %2603
      %2605 = vrot.lane.b32.xlu0 %v2529, 112
      %v2606 = vpop.permute.xlu0 %2605
      %2607 = vrot.lane.b32.xlu0 %v2530, 112
      %v2608 = vpop.permute.xlu0 %2607
      %2609 = vrot.lane.b32.xlu0 %v2531, 112
      %v2610 = vpop.permute.xlu0 %2609
      %2611 = vrot.lane.b32.xlu0 %v2532, 112
      %v2612 = vpop.permute.xlu0 %2611
      %2613 = vrot.lane.b32.xlu0 %v2533, 112
      %v2614 = vpop.permute.xlu0 %2613
      %2615 = vrot.lane.b32.xlu0 %v2534, 112
      %v2616 = vpop.permute.xlu0 %2615
      %2617 = vrot.lane.b32.xlu0 %v2535, 112
      %v2618 = vpop.permute.xlu0 %2617
      %2619 = vrot.lane.b32.xlu0 %v2536, 112
      %v2620 = vpop.permute.xlu0 %2619
      %2621 = vrot.lane.b32.xlu0 %v2537, 112
      %v2622 = vpop.permute.xlu0 %2621
      %2623 = vrot.lane.b32.xlu0 %v2538, 112
      %v2624 = vpop.permute.xlu0 %2623
      %2625 = vrot.lane.b32.xlu0 %v2539, 112
      %v2626 = vpop.permute.xlu0 %2625
      %2627 = vrot.lane.b32.xlu0 %v2540, 112
      %v2628 = vpop.permute.xlu0 %2627
      %2629 = vrot.lane.b32.xlu0 %v2541, 112
      %v2630 = vpop.permute.xlu0 %2629
      %2631 = vrot.lane.b32.xlu0 %v2542, 112
      %v2632 = vpop.permute.xlu0 %2631
      %2633 = vrot.lane.b32.xlu0 %v2543, 112
      %v2634 = vpop.permute.xlu0 %2633
      %2635 = vrot.lane.b32.xlu0 %v2544, 112
      %v2636 = vpop.permute.xlu0 %2635
      %2637 = vrot.lane.b32.xlu0 %v2545, 112
      %v2638 = vpop.permute.xlu0 %2637
      %2639 = vrot.lane.b32.xlu0 %v2546, 112
      %v2640 = vpop.permute.xlu0 %2639
      %2641 = vrot.lane.b32.xlu0 %v2547, 112
      %v2642 = vpop.permute.xlu0 %2641
      %2643 = vrot.lane.b32.xlu0 %v2548, 112
      %v2644 = vpop.permute.xlu0 %2643
      %vm2677 = vcmask 1048448
      %2678 = vst.msk [vmem:[#allocation4] sm:$0xff] %vm2677, %v2582
      %2679 = vst.msk [vmem:[#allocation4 + $0x10] sm:$0xff] %vm2677, %v2584
      %2680 = vst.msk [vmem:[#allocation4 + $0x20] sm:$0xff] %vm2677, %v2586
      %2681 = vst.msk [vmem:[#allocation4 + $0x30] sm:$0xff] %vm2677, %v2588
      %2682 = vst.msk [vmem:[#allocation4 + $0x40] sm:$0xff] %vm2677, %v2590
      %2683 = vst.msk [vmem:[#allocation4 + $0x50] sm:$0xff] %vm2677, %v2592
      %2684 = vst.msk [vmem:[#allocation4 + $0x60] sm:$0xff] %vm2677, %v2594
      %2685 = vst.msk [vmem:[#allocation4 + $0x70] sm:$0xff] %vm2677, %v2596
      %2686 = vst.msk [vmem:[#allocation4 + $0x80] sm:$0xff] %vm2677, %v2598
      %2687 = vst.msk [vmem:[#allocation4 + $0x90] sm:$0xff] %vm2677, %v2600
      %2688 = vst.msk [vmem:[#allocation4 + $0xa0] sm:$0xff] %vm2677, %v2602
      %2689 = vst.msk [vmem:[#allocation4 + $0xb0] sm:$0xff] %vm2677, %v2604
      %2690 = vst.msk [vmem:[#allocation4 + $0xc0] sm:$0xff] %vm2677, %v2606
      %2691 = vst.msk [vmem:[#allocation4 + $0xd0] sm:$0xff] %vm2677, %v2608
      %2692 = vst.msk [vmem:[#allocation4 + $0xe0] sm:$0xff] %vm2677, %v2610
      %2693 = vst.msk [vmem:[#allocation4 + $0xf0] sm:$0xff] %vm2677, %v2612
      %2694 = vst.msk [vmem:[#allocation4 + $0x100] sm:$0xff] %vm2677, %v2614
      %2695 = vst.msk [vmem:[#allocation4 + $0x110] sm:$0xff] %vm2677, %v2616
      %2696 = vst.msk [vmem:[#allocation4 + $0x120] sm:$0xff] %vm2677, %v2618
      %2697 = vst.msk [vmem:[#allocation4 + $0x130] sm:$0xff] %vm2677, %v2620
      %2698 = vst.msk [vmem:[#allocation4 + $0x140] sm:$0xff] %vm2677, %v2622
      %2699 = vst.msk [vmem:[#allocation4 + $0x150] sm:$0xff] %vm2677, %v2624
      %2700 = vst.msk [vmem:[#allocation4 + $0x160] sm:$0xff] %vm2677, %v2626
      %2701 = vst.msk [vmem:[#allocation4 + $0x170] sm:$0xff] %vm2677, %v2628
      %2702 = vst.msk [vmem:[#allocation4 + $0x180] sm:$0xff] %vm2677, %v2630
      %2703 = vst.msk [vmem:[#allocation4 + $0x190] sm:$0xff] %vm2677, %v2632
      %2704 = vst.msk [vmem:[#allocation4 + $0x1a0] sm:$0xff] %vm2677, %v2634
      %2705 = vst.msk [vmem:[#allocation4 + $0x1b0] sm:$0xff] %vm2677, %v2636
      %2706 = vst.msk [vmem:[#allocation4 + $0x1c0] sm:$0xff] %vm2677, %v2638
      %2707 = vst.msk [vmem:[#allocation4 + $0x1d0] sm:$0xff] %vm2677, %v2640
      %2708 = vst.msk [vmem:[#allocation4 + $0x1e0] sm:$0xff] %vm2677, %v2642
      %2709 = vst.msk [vmem:[#allocation4 + $0x1f0] sm:$0xff] %vm2677, %v2644
      %v2710 = vld [vmem:[%s2323 + $0x2] sm:$0xff]
      %v2711 = vld [vmem:[%s2323 + $0xa] sm:$0xff]
      %v2712 = vld [vmem:[%s2323 + $0x1a] sm:$0xff]
      %v2713 = vld [vmem:[%s2323 + $0x22] sm:$0xff]
      %v2714 = vld [vmem:[%s2323 + $0x32] sm:$0xff]
      %v2715 = vld [vmem:[%s2323 + $0x3a] sm:$0xff]
      %v2716 = vld [vmem:[%s2323 + $0x4a] sm:$0xff]
      %v2717 = vld [vmem:[%s2323 + $0x52] sm:$0xff]
      %v2718 = vld [vmem:[%s2323 + $0x62] sm:$0xff]
      %v2719 = vld [vmem:[%s2323 + $0x6a] sm:$0xff]
      %v2720 = vld [vmem:[%s2323 + $0x7a] sm:$0xff]
      %v2721 = vld [vmem:[%s2323 + $0x82] sm:$0xff]
      %v2722 = vld [vmem:[%s2323 + $0x92] sm:$0xff]
      %v2723 = vld [vmem:[%s2323 + $0x9a] sm:$0xff]
      %v2724 = vld [vmem:[%s2323 + $0xaa] sm:$0xff]
      %v2725 = vld [vmem:[%s2323 + $0xb2] sm:$0xff]
      %v2726 = vld [vmem:[%s2323 + $0xc2] sm:$0xff]
      %v2727 = vld [vmem:[%s2323 + $0xca] sm:$0xff]
      %v2728 = vld [vmem:[%s2323 + $0xda] sm:$0xff]
      %v2729 = vld [vmem:[%s2323 + $0xe2] sm:$0xff]
      %v2730 = vld [vmem:[%s2323 + $0xf2] sm:$0xff]
      %v2731 = vld [vmem:[%s2323 + $0xfa] sm:$0xff]
      %v2732 = vld [vmem:[%s2323 + $0x10a] sm:$0xff]
      %v2733 = vld [vmem:[%s2323 + $0x112] sm:$0xff]
      %v2734 = vld [vmem:[%s2323 + $0x122] sm:$0xff]
      %v2735 = vld [vmem:[%s2323 + $0x12a] sm:$0xff]
      %v2736 = vld [vmem:[%s2323 + $0x13a] sm:$0xff]
      %v2737 = vld [vmem:[%s2323 + $0x142] sm:$0xff]
      %v2738 = vld [vmem:[%s2323 + $0x152] sm:$0xff]
      %v2739 = vld [vmem:[%s2323 + $0x15a] sm:$0xff]
      %v2740 = vld [vmem:[%s2323 + $0x16a] sm:$0xff]
      %v2741 = vld [vmem:[%s2323 + $0x172] sm:$0xff]
      %2742 = vst.msk [vmem:[#allocation4 + $0x8] sm:$0xff] %vm404, %v2710
      %2743 = vst.msk [vmem:[#allocation4 + $0x18] sm:$0xff] %vm404, %v2711
      %2744 = vst.msk [vmem:[#allocation4 + $0x28] sm:$0xff] %vm404, %v2712
      %2745 = vst.msk [vmem:[#allocation4 + $0x38] sm:$0xff] %vm404, %v2713
      %2746 = vst.msk [vmem:[#allocation4 + $0x48] sm:$0xff] %vm404, %v2714
      %2747 = vst.msk [vmem:[#allocation4 + $0x58] sm:$0xff] %vm404, %v2715
      %2748 = vst.msk [vmem:[#allocation4 + $0x68] sm:$0xff] %vm404, %v2716
      %2749 = vst.msk [vmem:[#allocation4 + $0x78] sm:$0xff] %vm404, %v2717
      %2750 = vst.msk [vmem:[#allocation4 + $0x88] sm:$0xff] %vm404, %v2718
      %2751 = vst.msk [vmem:[#allocation4 + $0x98] sm:$0xff] %vm404, %v2719
      %2752 = vst.msk [vmem:[#allocation4 + $0xa8] sm:$0xff] %vm404, %v2720
      %2753 = vst.msk [vmem:[#allocation4 + $0xb8] sm:$0xff] %vm404, %v2721
      %2754 = vst.msk [vmem:[#allocation4 + $0xc8] sm:$0xff] %vm404, %v2722
      %2755 = vst.msk [vmem:[#allocation4 + $0xd8] sm:$0xff] %vm404, %v2723
      %2756 = vst.msk [vmem:[#allocation4 + $0xe8] sm:$0xff] %vm404, %v2724
      %2757 = vst.msk [vmem:[#allocation4 + $0xf8] sm:$0xff] %vm404, %v2725
      %2758 = vst.msk [vmem:[#allocation4 + $0x108] sm:$0xff] %vm404, %v2726
      %2759 = vst.msk [vmem:[#allocation4 + $0x118] sm:$0xff] %vm404, %v2727
      %2760 = vst.msk [vmem:[#allocation4 + $0x128] sm:$0xff] %vm404, %v2728
      %2761 = vst.msk [vmem:[#allocation4 + $0x138] sm:$0xff] %vm404, %v2729
      %2762 = vst.msk [vmem:[#allocation4 + $0x148] sm:$0xff] %vm404, %v2730
      %2763 = vst.msk [vmem:[#allocation4 + $0x158] sm:$0xff] %vm404, %v2731
      %2764 = vst.msk [vmem:[#allocation4 + $0x168] sm:$0xff] %vm404, %v2732
      %2765 = vst.msk [vmem:[#allocation4 + $0x178] sm:$0xff] %vm404, %v2733
      %2766 = vst.msk [vmem:[#allocation4 + $0x188] sm:$0xff] %vm404, %v2734
      %2767 = vst.msk [vmem:[#allocation4 + $0x198] sm:$0xff] %vm404, %v2735
      %2768 = vst.msk [vmem:[#allocation4 + $0x1a8] sm:$0xff] %vm404, %v2736
      %2769 = vst.msk [vmem:[#allocation4 + $0x1b8] sm:$0xff] %vm404, %v2737
      %2770 = vst.msk [vmem:[#allocation4 + $0x1c8] sm:$0xff] %vm404, %v2738
      %2771 = vst.msk [vmem:[#allocation4 + $0x1d8] sm:$0xff] %vm404, %v2739
      %2772 = vst.msk [vmem:[#allocation4 + $0x1e8] sm:$0xff] %vm404, %v2740
      %2773 = vst.msk [vmem:[#allocation4 + $0x1f8] sm:$0xff] %vm404, %v2741
      %v2774 = vld [vmem:[#allocation4] sm:$0xff]
      %v2775 = vld [vmem:[#allocation4 + $0x8] sm:$0xff]
      %v2776 = vld [vmem:[#allocation4 + $0x10] sm:$0xff]
      %v2777 = vld [vmem:[#allocation4 + $0x18] sm:$0xff]
      %v2778 = vld [vmem:[#allocation4 + $0x20] sm:$0xff]
      %v2779 = vld [vmem:[#allocation4 + $0x28] sm:$0xff]
      %v2780 = vld [vmem:[#allocation4 + $0x30] sm:$0xff]
      %v2781 = vld [vmem:[#allocation4 + $0x38] sm:$0xff]
      %v2782 = vld [vmem:[#allocation4 + $0x40] sm:$0xff]
      %v2783 = vld [vmem:[#allocation4 + $0x48] sm:$0xff]
      %v2784 = vld [vmem:[#allocation4 + $0x50] sm:$0xff]
      %v2785 = vld [vmem:[#allocation4 + $0x58] sm:$0xff]
      %v2786 = vld [vmem:[#allocation4 + $0x60] sm:$0xff]
      %v2787 = vld [vmem:[#allocation4 + $0x68] sm:$0xff]
      %v2788 = vld [vmem:[#allocation4 + $0x70] sm:$0xff]
      %v2789 = vld [vmem:[#allocation4 + $0x78] sm:$0xff]
      %v2790 = vld [vmem:[#allocation4 + $0x80] sm:$0xff]
      %v2791 = vld [vmem:[#allocation4 + $0x88] sm:$0xff]
      %v2792 = vld [vmem:[#allocation4 + $0x90] sm:$0xff]
      %v2793 = vld [vmem:[#allocation4 + $0x98] sm:$0xff]
      %v2794 = vld [vmem:[#allocation4 + $0xa0] sm:$0xff]
      %v2795 = vld [vmem:[#allocation4 + $0xa8] sm:$0xff]
      %v2796 = vld [vmem:[#allocation4 + $0xb0] sm:$0xff]
      %v2797 = vld [vmem:[#allocation4 + $0xb8] sm:$0xff]
      %v2798 = vld [vmem:[#allocation4 + $0xc0] sm:$0xff]
      %v2799 = vld [vmem:[#allocation4 + $0xc8] sm:$0xff]
      %v2800 = vld [vmem:[#allocation4 + $0xd0] sm:$0xff]
      %v2801 = vld [vmem:[#allocation4 + $0xd8] sm:$0xff]
      %v2802 = vld [vmem:[#allocation4 + $0xe0] sm:$0xff]
      %v2803 = vld [vmem:[#allocation4 + $0xe8] sm:$0xff]
      %v2804 = vld [vmem:[#allocation4 + $0xf0] sm:$0xff]
      %v2805 = vld [vmem:[#allocation4 + $0xf8] sm:$0xff]
      %v2806 = vld [vmem:[#allocation4 + $0x100] sm:$0xff]
      %v2807 = vld [vmem:[#allocation4 + $0x108] sm:$0xff]
      %v2808 = vld [vmem:[#allocation4 + $0x110] sm:$0xff]
      %v2809 = vld [vmem:[#allocation4 + $0x118] sm:$0xff]
      %v2810 = vld [vmem:[#allocation4 + $0x120] sm:$0xff]
      %v2811 = vld [vmem:[#allocation4 + $0x128] sm:$0xff]
      %v2812 = vld [vmem:[#allocation4 + $0x130] sm:$0xff]
      %v2813 = vld [vmem:[#allocation4 + $0x138] sm:$0xff]
      %v2814 = vld [vmem:[#allocation4 + $0x140] sm:$0xff]
      %v2815 = vld [vmem:[#allocation4 + $0x148] sm:$0xff]
      %v2816 = vld [vmem:[#allocation4 + $0x150] sm:$0xff]
      %v2817 = vld [vmem:[#allocation4 + $0x158] sm:$0xff]
      %v2818 = vld [vmem:[#allocation4 + $0x160] sm:$0xff]
      %v2819 = vld [vmem:[#allocation4 + $0x168] sm:$0xff]
      %v2820 = vld [vmem:[#allocation4 + $0x170] sm:$0xff]
      %v2821 = vld [vmem:[#allocation4 + $0x178] sm:$0xff]
      %v2822 = vld [vmem:[#allocation4 + $0x180] sm:$0xff]
      %v2823 = vld [vmem:[#allocation4 + $0x188] sm:$0xff]
      %v2824 = vld [vmem:[#allocation4 + $0x190] sm:$0xff]
      %v2825 = vld [vmem:[#allocation4 + $0x198] sm:$0xff]
      %v2826 = vld [vmem:[#allocation4 + $0x1a0] sm:$0xff]
      %v2827 = vld [vmem:[#allocation4 + $0x1a8] sm:$0xff]
      %v2828 = vld [vmem:[#allocation4 + $0x1b0] sm:$0xff]
      %v2829 = vld [vmem:[#allocation4 + $0x1b8] sm:$0xff]
      %v2830 = vld [vmem:[#allocation4 + $0x1c0] sm:$0xff]
      %v2831 = vld [vmem:[#allocation4 + $0x1c8] sm:$0xff]
      %v2832 = vld [vmem:[#allocation4 + $0x1d0] sm:$0xff]
      %v2833 = vld [vmem:[#allocation4 + $0x1d8] sm:$0xff]
      %v2834 = vld [vmem:[#allocation4 + $0x1e0] sm:$0xff]
      %v2835 = vld [vmem:[#allocation4 + $0x1e8] sm:$0xff]
      %v2836 = vld [vmem:[#allocation4 + $0x1f0] sm:$0xff]
      %v2837 = vld [vmem:[#allocation4 + $0x1f8] sm:$0xff]
      %v2838 = vld [vmem:[%s7] sm:$0xff]
      %v2839 = vld [vmem:[%s7 + $0x8] sm:$0xff]
      %v2840 = vld [vmem:[%s7 + $0x10] sm:$0xff]
      %v2841 = vld [vmem:[%s7 + $0x18] sm:$0xff]
      %v2842 = vld [vmem:[%s7 + $0x20] sm:$0xff]
      %v2843 = vld [vmem:[%s7 + $0x28] sm:$0xff]
      %v2844 = vld [vmem:[%s7 + $0x30] sm:$0xff]
      %v2845 = vld [vmem:[%s7 + $0x38] sm:$0xff]
      %v2846 = vld [vmem:[%s7 + $0x40] sm:$0xff]
      %v2847 = vld [vmem:[%s7 + $0x48] sm:$0xff]
      %v2848 = vld [vmem:[%s7 + $0x50] sm:$0xff]
      %v2849 = vld [vmem:[%s7 + $0x58] sm:$0xff]
      %v2850 = vld [vmem:[%s7 + $0x60] sm:$0xff]
      %v2851 = vld [vmem:[%s7 + $0x68] sm:$0xff]
      %v2852 = vld [vmem:[%s7 + $0x70] sm:$0xff]
      %v2853 = vld [vmem:[%s7 + $0x78] sm:$0xff]
      %v2854 = vld [vmem:[%s7 + $0x80] sm:$0xff]
      %v2855 = vld [vmem:[%s7 + $0x88] sm:$0xff]
      %v2856 = vld [vmem:[%s8] sm:$0x1]
      %v2858 = vlaneseq
      %v2859 = vshrl.u32 %v2858, 7
      %v2860 = vsub.s32 0, %v2859
      %v2861 = vrot.slane %v2856, %v2860
      %v2864 = vsel %vm404, %v2775, 0
      %v2867 = vsel %vm404, %v2777, 0
      %v2870 = vsel %vm404, %v2779, 0
      %v2873 = vsel %vm404, %v2781, 0
      %v2876 = vsel %vm404, %v2783, 0
      %v2879 = vsel %vm404, %v2785, 0
      %v2882 = vsel %vm404, %v2787, 0
      %v2885 = vsel %vm404, %v2789, 0
      %v2888 = vsel %vm404, %v2791, 0
      %v2891 = vsel %vm404, %v2793, 0
      %v2894 = vsel %vm404, %v2795, 0
      %v2897 = vsel %vm404, %v2797, 0
      %v2900 = vsel %vm404, %v2799, 0
      %v2903 = vsel %vm404, %v2801, 0
      %v2906 = vsel %vm404, %v2803, 0
      %v2909 = vsel %vm404, %v2805, 0
      %v2912 = vsel %vm404, %v2807, 0
      %v2915 = vsel %vm404, %v2809, 0
      %v2918 = vsel %vm404, %v2811, 0
      %v2921 = vsel %vm404, %v2813, 0
      %v2924 = vsel %vm404, %v2815, 0
      %v2927 = vsel %vm404, %v2817, 0
      %v2930 = vsel %vm404, %v2819, 0
      %v2933 = vsel %vm404, %v2821, 0
      %v2936 = vsel %vm404, %v2823, 0
      %v2939 = vsel %vm404, %v2825, 0
      %v2942 = vsel %vm404, %v2827, 0
      %v2945 = vsel %vm404, %v2829, 0
      %v2948 = vsel %vm404, %v2831, 0
      %v2951 = vsel %vm404, %v2833, 0
      %v2954 = vsel %vm404, %v2835, 0
      %v2957 = vsel %vm404, %v2837, 0
      %2959 = vmatprep.subr.mxu0 0.0
      %2960 = vmatpush1.msra.mxu0 %v2838
      %2961 = vmatprep.subr.mxu0 0.0
      %2962 = vmatpush1.msra.mxu0 %v2839
      %2963 = vmatprep.subr.mxu0 0.0
      %2964 = vmatpush1.msra.mxu0 %v2840
      %2965 = vmatprep.subr.mxu0 0.0
      %2966 = vmatpush1.msra.mxu0 %v2841
      %2967 = vmatprep.subr.mxu0 0.0
      %2968 = vmatpush1.msra.mxu0 %v2842
      %2969 = vmatprep.subr.mxu0 0.0
      %2970 = vmatpush1.msra.mxu0 %v2843
      %2971 = vmatprep.subr.mxu0 0.0
      %2972 = vmatpush1.msra.mxu0 %v2844
      %2973 = vmatprep.subr.mxu0 0.0
      %2974 = vmatpush1.msra.mxu0 %v2845
      %2975 = vmatprep.subr.mxu0 0.0
      %2976 = vmatpush1.msra.mxu0 %v2846
      %2977 = vmatprep.subr.mxu0 0.0
      %2978 = vmatpush1.msra.mxu0 %v2847
      %2979 = vmatprep.subr.mxu0 0.0
      %2980 = vmatpush1.msra.mxu0 %v2848
      %2981 = vmatprep.subr.mxu0 0.0
      %2982 = vmatpush1.msra.mxu0 %v2849
      %2983 = vmatprep.subr.mxu0 0.0
      %2984 = vmatpush1.msra.mxu0 %v2850
      %2985 = vmatprep.subr.mxu0 0.0
      %2986 = vmatpush1.msra.mxu0 %v2851
      %2987 = vmatprep.subr.mxu0 0.0
      %2988 = vmatpush1.msra.mxu0 %v2852
      %2989 = vmatprep.subr.mxu0 0.0
      %2990 = vmatpush1.msra.mxu0 %v2853
      %2991 = vmatprep.subr.mxu0 0.0
      %2992 = vmatpush1.msra.mxu0 %v2854
      %2993 = vmatprep.subr.mxu0 0.0
      %2994 = vmatpush1.msra.mxu0 %v2855
      %2995 = vmatprep.subr.mxu0 0.0
      %2996 = vmatpush1.msra.mxu0 0.0
      %2997 = vmatprep.subr.mxu0 0.0
      %2998 = vmatpush1.msra.mxu0 0.0
      %2999 = vmatprep.subr.mxu0 0.0
      %3000 = vmatpush1.msra.mxu0 0.0
      %3001 = vmatprep.subr.mxu0 0.0
      %3002 = vmatpush1.msra.mxu0 0.0
      %3003 = vmatprep.subr.mxu0 0.0
      %3004 = vmatpush1.msra.mxu0 0.0
      %3005 = vmatprep.subr.mxu0 0.0
      %3006 = vmatpush1.msra.mxu0 0.0
      %3007 = vmatprep.subr.mxu0 0.0
      %3008 = vmatpush1.msra.mxu0 0.0
      %3009 = vmatprep.subr.mxu0 0.0
      %3010 = vmatpush1.msra.mxu0 0.0
      %3011 = vmatprep.subr.mxu0 0.0
      %3012 = vmatpush1.msra.mxu0 0.0
      %3013 = vmatprep.subr.mxu0 0.0
      %3014 = vmatpush1.msra.mxu0 0.0
      %3015 = vmatprep.subr.mxu0 0.0
      %3016 = vmatpush1.msra.mxu0 0.0
      %3017 = vmatprep.subr.mxu0 0.0
      %3018 = vmatpush1.msra.mxu0 0.0
      %3019 = vmatprep.subr.mxu0 0.0
      %3020 = vmatpush1.msra.mxu0 0.0
      %3021 = vmatprep.subr.mxu0 0.0
      %3022 = vmatpush1.msra.mxu0 0.0
      %3023 = vmatprep.mubr.f32.mxu0 %v2864
      %3024 = vmatmul.mubr.f32.gmra.mrb[0].mxu0 %v2774
      %v3025 = vpop.f32.mrb[0].mxu0
      %v3026 = vadd.f32 %v2861, %v3025
      %v3027 = vpop.f32.mrb[0].mxu0
      %3028 = vmatprep.mubr.f32.mxu0 %v2867
      %3029 = vmatmul.mubr.f32.gmra.mrb[0].mxu0 %v2776
      %v3030 = vpop.f32.mrb[0].mxu0
      %v3031 = vadd.f32 %v2861, %v3030
      %v3032 = vpop.f32.mrb[0].mxu0
      %3033 = vmatprep.mubr.f32.mxu0 %v2870
      %3034 = vmatmul.mubr.f32.gmra.mrb[0].mxu0 %v2778
      %v3035 = vpop.f32.mrb[0].mxu0
      %v3036 = vadd.f32 %v2861, %v3035
      %v3037 = vpop.f32.mrb[0].mxu0
      %3038 = vmatprep.mubr.f32.mxu0 %v2873
      %3039 = vmatmul.mubr.f32.gmra.mrb[0].mxu0 %v2780
      %v3040 = vpop.f32.mrb[0].mxu0
      %v3041 = vadd.f32 %v2861, %v3040
      %v3042 = vpop.f32.mrb[0].mxu0
      %3043 = vmatprep.mubr.f32.mxu0 %v2876
      %3044 = vmatmul.mubr.f32.gmra.mrb[0].mxu0 %v2782
      %v3045 = vpop.f32.mrb[0].mxu0
      %v3046 = vadd.f32 %v2861, %v3045
      %v3047 = vpop.f32.mrb[0].mxu0
      %3048 = vmatprep.mubr.f32.mxu0 %v2879
      %3049 = vmatmul.mubr.f32.gmra.mrb[0].mxu0 %v2784
      %v3050 = vpop.f32.mrb[0].mxu0
      %v3051 = vadd.f32 %v2861, %v3050
      %v3052 = vpop.f32.mrb[0].mxu0
      %3053 = vmatprep.mubr.f32.mxu0 %v2882
      %3054 = vmatmul.mubr.f32.gmra.mrb[0].mxu0 %v2786
      %v3055 = vpop.f32.mrb[0].mxu0
      %v3056 = vadd.f32 %v2861, %v3055
      %v3057 = vpop.f32.mrb[0].mxu0
      %3058 = vmatprep.mubr.f32.mxu0 %v2885
      %3059 = vmatmul.mubr.f32.gmra.mrb[0].mxu0 %v2788
      %v3060 = vpop.f32.mrb[0].mxu0
      %v3061 = vadd.f32 %v2861, %v3060
      %v3062 = vpop.f32.mrb[0].mxu0
      %3063 = vmatprep.mubr.f32.mxu0 %v2888
      %3064 = vmatmul.mubr.f32.gmra.mrb[0].mxu0 %v2790
      %v3065 = vpop.f32.mrb[0].mxu0
      %v3066 = vadd.f32 %v2861, %v3065
      %v3067 = vpop.f32.mrb[0].mxu0
      %3068 = vmatprep.mubr.f32.mxu0 %v2891
      %3069 = vmatmul.mubr.f32.gmra.mrb[0].mxu0 %v2792
      %v3070 = vpop.f32.mrb[0].mxu0
      %v3071 = vadd.f32 %v2861, %v3070
      %v3072 = vpop.f32.mrb[0].mxu0
      %3073 = vmatprep.mubr.f32.mxu0 %v2894
      %3074 = vmatmul.mubr.f32.gmra.mrb[0].mxu0 %v2794
      %v3075 = vpop.f32.mrb[0].mxu0
      %v3076 = vadd.f32 %v2861, %v3075
      %v3077 = vpop.f32.mrb[0].mxu0
      %3078 = vmatprep.mubr.f32.mxu0 %v2897
      %3079 = vmatmul.mubr.f32.gmra.mrb[0].mxu0 %v2796
      %v3080 = vpop.f32.mrb[0].mxu0
      %v3081 = vadd.f32 %v2861, %v3080
      %v3082 = vpop.f32.mrb[0].mxu0
      %3083 = vmatprep.mubr.f32.mxu0 %v2900
      %3084 = vmatmul.mubr.f32.gmra.mrb[0].mxu0 %v2798
      %v3085 = vpop.f32.mrb[0].mxu0
      %v3086 = vadd.f32 %v2861, %v3085
      %v3087 = vpop.f32.mrb[0].mxu0
      %3088 = vmatprep.mubr.f32.mxu0 %v2903
      %3089 = vmatmul.mubr.f32.gmra.mrb[0].mxu0 %v2800
      %v3090 = vpop.f32.mrb[0].mxu0
      %v3091 = vadd.f32 %v2861, %v3090
      %v3092 = vpop.f32.mrb[0].mxu0
      %3093 = vmatprep.mubr.f32.mxu0 %v2906
      %3094 = vmatmul.mubr.f32.gmra.mrb[0].mxu0 %v2802
      %v3095 = vpop.f32.mrb[0].mxu0
      %v3096 = vadd.f32 %v2861, %v3095
      %v3097 = vpop.f32.mrb[0].mxu0
      %3098 = vmatprep.mubr.f32.mxu0 %v2909
      %3099 = vmatmul.mubr.f32.gmra.mrb[0].mxu0 %v2804
      %v3100 = vpop.f32.mrb[0].mxu0
      %v3101 = vadd.f32 %v2861, %v3100
      %v3102 = vpop.f32.mrb[0].mxu0
      %3103 = vmatprep.mubr.f32.mxu0 %v2912
      %3104 = vmatmul.mubr.f32.gmra.mrb[0].mxu0 %v2806
      %v3105 = vpop.f32.mrb[0].mxu0
      %v3106 = vadd.f32 %v2861, %v3105
      %v3107 = vpop.f32.mrb[0].mxu0
      %3108 = vmatprep.mubr.f32.mxu0 %v2915
      %3109 = vmatmul.mubr.f32.gmra.mrb[0].mxu0 %v2808
      %v3110 = vpop.f32.mrb[0].mxu0
      %v3111 = vadd.f32 %v2861, %v3110
      %v3112 = vpop.f32.mrb[0].mxu0
      %3113 = vmatprep.mubr.f32.mxu0 %v2918
      %3114 = vmatmul.mubr.f32.gmra.mrb[0].mxu0 %v2810
      %v3115 = vpop.f32.mrb[0].mxu0
      %v3116 = vadd.f32 %v2861, %v3115
      %v3117 = vpop.f32.mrb[0].mxu0
      %3118 = vmatprep.mubr.f32.mxu0 %v2921
      %3119 = vmatmul.mubr.f32.gmra.mrb[0].mxu0 %v2812
      %v3120 = vpop.f32.mrb[0].mxu0
      %v3121 = vadd.f32 %v2861, %v3120
      %v3122 = vpop.f32.mrb[0].mxu0
      %3123 = vmatprep.mubr.f32.mxu0 %v2924
      %3124 = vmatmul.mubr.f32.gmra.mrb[0].mxu0 %v2814
      %v3125 = vpop.f32.mrb[0].mxu0
      %v3126 = vadd.f32 %v2861, %v3125
      %v3127 = vpop.f32.mrb[0].mxu0
      %3128 = vmatprep.mubr.f32.mxu0 %v2927
      %3129 = vmatmul.mubr.f32.gmra.mrb[0].mxu0 %v2816
      %v3130 = vpop.f32.mrb[0].mxu0
      %v3131 = vadd.f32 %v2861, %v3130
      %v3132 = vpop.f32.mrb[0].mxu0
      %3133 = vmatprep.mubr.f32.mxu0 %v2930
      %3134 = vmatmul.mubr.f32.gmra.mrb[0].mxu0 %v2818
      %v3135 = vpop.f32.mrb[0].mxu0
      %v3136 = vadd.f32 %v2861, %v3135
      %v3137 = vpop.f32.mrb[0].mxu0
      %3138 = vmatprep.mubr.f32.mxu0 %v2933
      %3139 = vmatmul.mubr.f32.gmra.mrb[0].mxu0 %v2820
      %v3140 = vpop.f32.mrb[0].mxu0
      %v3141 = vadd.f32 %v2861, %v3140
      %v3142 = vpop.f32.mrb[0].mxu0
      %3143 = vmatprep.mubr.f32.mxu0 %v2936
      %3144 = vmatmul.mubr.f32.gmra.mrb[0].mxu0 %v2822
      %v3145 = vpop.f32.mrb[0].mxu0
      %v3146 = vadd.f32 %v2861, %v3145
      %v3147 = vpop.f32.mrb[0].mxu0
      %3148 = vmatprep.mubr.f32.mxu0 %v2939
      %3149 = vmatmul.mubr.f32.gmra.mrb[0].mxu0 %v2824
      %v3150 = vpop.f32.mrb[0].mxu0
      %v3151 = vadd.f32 %v2861, %v3150
      %v3152 = vpop.f32.mrb[0].mxu0
      %3153 = vmatprep.mubr.f32.mxu0 %v2942
      %3154 = vmatmul.mubr.f32.gmra.mrb[0].mxu0 %v2826
      %v3155 = vpop.f32.mrb[0].mxu0
      %v3156 = vadd.f32 %v2861, %v3155
      %v3157 = vpop.f32.mrb[0].mxu0
      %3158 = vmatprep.mubr.f32.mxu0 %v2945
      %3159 = vmatmul.mubr.f32.gmra.mrb[0].mxu0 %v2828
      %v3160 = vpop.f32.mrb[0].mxu0
      %v3161 = vadd.f32 %v2861, %v3160
      %v3162 = vpop.f32.mrb[0].mxu0
      %3163 = vmatprep.mubr.f32.mxu0 %v2948
      %3164 = vmatmul.mubr.f32.gmra.mrb[0].mxu0 %v2830
      %v3165 = vpop.f32.mrb[0].mxu0
      %v3166 = vadd.f32 %v2861, %v3165
      %v3167 = vpop.f32.mrb[0].mxu0
      %3168 = vmatprep.mubr.f32.mxu0 %v2951
      %3169 = vmatmul.mubr.f32.gmra.mrb[0].mxu0 %v2832
      %v3170 = vpop.f32.mrb[0].mxu0
      %v3171 = vadd.f32 %v2861, %v3170
      %v3172 = vpop.f32.mrb[0].mxu0
      %3173 = vmatprep.mubr.f32.mxu0 %v2954
      %3174 = vmatmul.mubr.f32.gmra.mrb[0].mxu0 %v2834
      %v3175 = vpop.f32.mrb[0].mxu0
      %v3176 = vadd.f32 %v2861, %v3175
      %v3177 = vpop.f32.mrb[0].mxu0
      %3178 = vmatprep.mubr.f32.mxu0 %v2957
      %3179 = vmatmul.mubr.f32.gmra.mrb[0].mxu0 %v2836
      %v3180 = vpop.f32.mrb[0].mxu0
      %v3181 = vadd.f32 %v2861, %v3180
      %v3182 = vpop.f32.mrb[0].mxu0
      %3183 = vdwg.mxu0
      %v3184 = vmax.f32 %v3026, 0.0
      %v3185 = vmax.f32 %v3031, 0.0
      %v3186 = vmax.f32 %v3036, 0.0
      %v3187 = vmax.f32 %v3041, 0.0
      %v3188 = vmax.f32 %v3046, 0.0
      %v3189 = vmax.f32 %v3051, 0.0
      %v3190 = vmax.f32 %v3056, 0.0
      %v3191 = vmax.f32 %v3061, 0.0
      %v3192 = vmax.f32 %v3066, 0.0
      %v3193 = vmax.f32 %v3071, 0.0
      %v3194 = vmax.f32 %v3076, 0.0
      %v3195 = vmax.f32 %v3081, 0.0
      %v3196 = vmax.f32 %v3086, 0.0
      %v3197 = vmax.f32 %v3091, 0.0
      %v3198 = vmax.f32 %v3096, 0.0
      %v3199 = vmax.f32 %v3101, 0.0
      %v3200 = vmax.f32 %v3106, 0.0
      %v3201 = vmax.f32 %v3111, 0.0
      %v3202 = vmax.f32 %v3116, 0.0
      %v3203 = vmax.f32 %v3121, 0.0
      %v3204 = vmax.f32 %v3126, 0.0
      %v3205 = vmax.f32 %v3131, 0.0
      %v3206 = vmax.f32 %v3136, 0.0
      %v3207 = vmax.f32 %v3141, 0.0
      %v3208 = vmax.f32 %v3146, 0.0
      %v3209 = vmax.f32 %v3151, 0.0
      %v3210 = vmax.f32 %v3156, 0.0
      %v3211 = vmax.f32 %v3161, 0.0
      %v3212 = vmax.f32 %v3166, 0.0
      %v3213 = vmax.f32 %v3171, 0.0
      %v3214 = vmax.f32 %v3176, 0.0
      %v3215 = vmax.f32 %v3181, 0.0
      %s3216 = scalar_lea.vmem [#allocation3], 24
      %3217 = vst.msk [vmem:[%s3216 + $0x1] sm:$0xff] %vm460, %v3184
      %3218 = vst.msk [vmem:[%s3216 + $0x9] sm:$0xff] %vm460, %v3185
      %3219 = vst.msk [vmem:[%s3216 + $0x19] sm:$0xff] %vm460, %v3186
      %3220 = vst.msk [vmem:[%s3216 + $0x21] sm:$0xff] %vm460, %v3187
      %3221 = vst.msk [vmem:[%s3216 + $0x31] sm:$0xff] %vm460, %v3188
      %3222 = vst.msk [vmem:[%s3216 + $0x39] sm:$0xff] %vm460, %v3189
      %3223 = vst.msk [vmem:[%s3216 + $0x49] sm:$0xff] %vm460, %v3190
      %3224 = vst.msk [vmem:[%s3216 + $0x51] sm:$0xff] %vm460, %v3191
      %3225 = vst.msk [vmem:[%s3216 + $0x61] sm:$0xff] %vm460, %v3192
      %3226 = vst.msk [vmem:[%s3216 + $0x69] sm:$0xff] %vm460, %v3193
      %3227 = vst.msk [vmem:[%s3216 + $0x79] sm:$0xff] %vm460, %v3194
      %3228 = vst.msk [vmem:[%s3216 + $0x81] sm:$0xff] %vm460, %v3195
      %3229 = vst.msk [vmem:[%s3216 + $0x91] sm:$0xff] %vm460, %v3196
      %3230 = vst.msk [vmem:[%s3216 + $0x99] sm:$0xff] %vm460, %v3197
      %3231 = vst.msk [vmem:[%s3216 + $0xa9] sm:$0xff] %vm460, %v3198
      %3232 = vst.msk [vmem:[%s3216 + $0xb1] sm:$0xff] %vm460, %v3199
      %3233 = vst.msk [vmem:[%s3216 + $0xc1] sm:$0xff] %vm460, %v3200
      %3234 = vst.msk [vmem:[%s3216 + $0xc9] sm:$0xff] %vm460, %v3201
      %3235 = vst.msk [vmem:[%s3216 + $0xd9] sm:$0xff] %vm460, %v3202
      %3236 = vst.msk [vmem:[%s3216 + $0xe1] sm:$0xff] %vm460, %v3203
      %3237 = vst.msk [vmem:[%s3216 + $0xf1] sm:$0xff] %vm460, %v3204
      %3238 = vst.msk [vmem:[%s3216 + $0xf9] sm:$0xff] %vm460, %v3205
      %3239 = vst.msk [vmem:[%s3216 + $0x109] sm:$0xff] %vm460, %v3206
      %3240 = vst.msk [vmem:[%s3216 + $0x111] sm:$0xff] %vm460, %v3207
      %3241 = vst.msk [vmem:[%s3216 + $0x121] sm:$0xff] %vm460, %v3208
      %3242 = vst.msk [vmem:[%s3216 + $0x129] sm:$0xff] %vm460, %v3209
      %3243 = vst.msk [vmem:[%s3216 + $0x139] sm:$0xff] %vm460, %v3210
      %3244 = vst.msk [vmem:[%s3216 + $0x141] sm:$0xff] %vm460, %v3211
      %3245 = vst.msk [vmem:[%s3216 + $0x151] sm:$0xff] %vm460, %v3212
      %3246 = vst.msk [vmem:[%s3216 + $0x159] sm:$0xff] %vm460, %v3213
      %3247 = vst.msk [vmem:[%s3216 + $0x169] sm:$0xff] %vm460, %v3214
      %3248 = vst.msk [vmem:[%s3216 + $0x171] sm:$0xff] %vm460, %v3215
      %v3249 = vld [vmem:[#allocation3] sm:$0xff]
      %v3250 = vld [vmem:[#allocation3 + $0x8] sm:$0xff]
      %v3251 = vld [vmem:[#allocation3 + $0x18] sm:$0xff]
      %v3252 = vld [vmem:[#allocation3 + $0x20] sm:$0xff]
      %v3253 = vld [vmem:[#allocation3 + $0x30] sm:$0xff]
      %v3254 = vld [vmem:[#allocation3 + $0x38] sm:$0xff]
      %v3255 = vld [vmem:[#allocation3 + $0x48] sm:$0xff]
      %v3256 = vld [vmem:[#allocation3 + $0x50] sm:$0xff]
      %v3257 = vld [vmem:[#allocation3 + $0x60] sm:$0xff]
      %v3258 = vld [vmem:[#allocation3 + $0x68] sm:$0xff]
      %v3259 = vld [vmem:[#allocation3 + $0x78] sm:$0xff]
      %v3260 = vld [vmem:[#allocation3 + $0x80] sm:$0xff]
      %v3261 = vld [vmem:[#allocation3 + $0x90] sm:$0xff]
      %v3262 = vld [vmem:[#allocation3 + $0x98] sm:$0xff]
      %v3263 = vld [vmem:[#allocation3 + $0xa8] sm:$0xff]
      %v3264 = vld [vmem:[#allocation3 + $0xb0] sm:$0xff]
      %v3265 = vld [vmem:[#allocation3 + $0xc0] sm:$0xff]
      %v3266 = vld [vmem:[#allocation3 + $0xc8] sm:$0xff]
      %v3267 = vld [vmem:[#allocation3 + $0xd8] sm:$0xff]
      %v3268 = vld [vmem:[#allocation3 + $0xe0] sm:$0xff]
      %v3269 = vld [vmem:[#allocation3 + $0xf0] sm:$0xff]
      %v3270 = vld [vmem:[#allocation3 + $0xf8] sm:$0xff]
      %v3271 = vld [vmem:[#allocation3 + $0x108] sm:$0xff]
      %v3272 = vld [vmem:[#allocation3 + $0x110] sm:$0xff]
      %v3273 = vld [vmem:[#allocation3 + $0x120] sm:$0xff]
      %v3274 = vld [vmem:[#allocation3 + $0x128] sm:$0xff]
      %v3275 = vld [vmem:[#allocation3 + $0x138] sm:$0xff]
      %v3276 = vld [vmem:[#allocation3 + $0x140] sm:$0xff]
      %v3277 = vld [vmem:[#allocation3 + $0x150] sm:$0xff]
      %v3278 = vld [vmem:[#allocation3 + $0x158] sm:$0xff]
      %v3279 = vld [vmem:[#allocation3 + $0x168] sm:$0xff]
      %v3280 = vld [vmem:[#allocation3 + $0x170] sm:$0xff]
      %3281 = vst.msk [vmem:[#allocation4] sm:$0xff] %vm460, %v3249
      %3282 = vst.msk [vmem:[#allocation4 + $0x10] sm:$0xff] %vm460, %v3250
      %3283 = vst.msk [vmem:[#allocation4 + $0x20] sm:$0xff] %vm460, %v3251
      %3284 = vst.msk [vmem:[#allocation4 + $0x30] sm:$0xff] %vm460, %v3252
      %3285 = vst.msk [vmem:[#allocation4 + $0x40] sm:$0xff] %vm460, %v3253
      %3286 = vst.msk [vmem:[#allocation4 + $0x50] sm:$0xff] %vm460, %v3254
      %3287 = vst.msk [vmem:[#allocation4 + $0x60] sm:$0xff] %vm460, %v3255
      %3288 = vst.msk [vmem:[#allocation4 + $0x70] sm:$0xff] %vm460, %v3256
      %3289 = vst.msk [vmem:[#allocation4 + $0x80] sm:$0xff] %vm460, %v3257
      %3290 = vst.msk [vmem:[#allocation4 + $0x90] sm:$0xff] %vm460, %v3258
      %3291 = vst.msk [vmem:[#allocation4 + $0xa0] sm:$0xff] %vm460, %v3259
      %3292 = vst.msk [vmem:[#allocation4 + $0xb0] sm:$0xff] %vm460, %v3260
      %3293 = vst.msk [vmem:[#allocation4 + $0xc0] sm:$0xff] %vm460, %v3261
      %3294 = vst.msk [vmem:[#allocation4 + $0xd0] sm:$0xff] %vm460, %v3262
      %3295 = vst.msk [vmem:[#allocation4 + $0xe0] sm:$0xff] %vm460, %v3263
      %3296 = vst.msk [vmem:[#allocation4 + $0xf0] sm:$0xff] %vm460, %v3264
      %3297 = vst.msk [vmem:[#allocation4 + $0x100] sm:$0xff] %vm460, %v3265
      %3298 = vst.msk [vmem:[#allocation4 + $0x110] sm:$0xff] %vm460, %v3266
      %3299 = vst.msk [vmem:[#allocation4 + $0x120] sm:$0xff] %vm460, %v3267
      %3300 = vst.msk [vmem:[#allocation4 + $0x130] sm:$0xff] %vm460, %v3268
      %3301 = vst.msk [vmem:[#allocation4 + $0x140] sm:$0xff] %vm460, %v3269
      %3302 = vst.msk [vmem:[#allocation4 + $0x150] sm:$0xff] %vm460, %v3270
      %3303 = vst.msk [vmem:[#allocation4 + $0x160] sm:$0xff] %vm460, %v3271
      %3304 = vst.msk [vmem:[#allocation4 + $0x170] sm:$0xff] %vm460, %v3272
      %3305 = vst.msk [vmem:[#allocation4 + $0x180] sm:$0xff] %vm460, %v3273
      %3306 = vst.msk [vmem:[#allocation4 + $0x190] sm:$0xff] %vm460, %v3274
      %3307 = vst.msk [vmem:[#allocation4 + $0x1a0] sm:$0xff] %vm460, %v3275
      %3308 = vst.msk [vmem:[#allocation4 + $0x1b0] sm:$0xff] %vm460, %v3276
      %3309 = vst.msk [vmem:[#allocation4 + $0x1c0] sm:$0xff] %vm460, %v3277
      %3310 = vst.msk [vmem:[#allocation4 + $0x1d0] sm:$0xff] %vm460, %v3278
      %3311 = vst.msk [vmem:[#allocation4 + $0x1e0] sm:$0xff] %vm460, %v3279
      %3312 = vst.msk [vmem:[#allocation4 + $0x1f0] sm:$0xff] %vm460, %v3280
      %v3313 = vld [vmem:[#allocation3 + $0x1] sm:$0xff]
      %v3314 = vld [vmem:[#allocation3 + $0x9] sm:$0xff]
      %v3315 = vld [vmem:[#allocation3 + $0x19] sm:$0xff]
      %v3316 = vld [vmem:[#allocation3 + $0x21] sm:$0xff]
      %v3317 = vld [vmem:[#allocation3 + $0x31] sm:$0xff]
      %v3318 = vld [vmem:[#allocation3 + $0x39] sm:$0xff]
      %v3319 = vld [vmem:[#allocation3 + $0x49] sm:$0xff]
      %v3320 = vld [vmem:[#allocation3 + $0x51] sm:$0xff]
      %v3321 = vld [vmem:[#allocation3 + $0x61] sm:$0xff]
      %v3322 = vld [vmem:[#allocation3 + $0x69] sm:$0xff]
      %v3323 = vld [vmem:[#allocation3 + $0x79] sm:$0xff]
      %v3324 = vld [vmem:[#allocation3 + $0x81] sm:$0xff]
      %v3325 = vld [vmem:[#allocation3 + $0x91] sm:$0xff]
      %v3326 = vld [vmem:[#allocation3 + $0x99] sm:$0xff]
      %v3327 = vld [vmem:[#allocation3 + $0xa9] sm:$0xff]
      %v3328 = vld [vmem:[#allocation3 + $0xb1] sm:$0xff]
      %v3329 = vld [vmem:[#allocation3 + $0xc1] sm:$0xff]
      %v3330 = vld [vmem:[#allocation3 + $0xc9] sm:$0xff]
      %v3331 = vld [vmem:[#allocation3 + $0xd9] sm:$0xff]
      %v3332 = vld [vmem:[#allocation3 + $0xe1] sm:$0xff]
      %v3333 = vld [vmem:[#allocation3 + $0xf1] sm:$0xff]
      %v3334 = vld [vmem:[#allocation3 + $0xf9] sm:$0xff]
      %v3335 = vld [vmem:[#allocation3 + $0x109] sm:$0xff]
      %v3336 = vld [vmem:[#allocation3 + $0x111] sm:$0xff]
      %v3337 = vld [vmem:[#allocation3 + $0x121] sm:$0xff]
      %v3338 = vld [vmem:[#allocation3 + $0x129] sm:$0xff]
      %v3339 = vld [vmem:[#allocation3 + $0x139] sm:$0xff]
      %v3340 = vld [vmem:[#allocation3 + $0x141] sm:$0xff]
      %v3341 = vld [vmem:[#allocation3 + $0x151] sm:$0xff]
      %v3342 = vld [vmem:[#allocation3 + $0x159] sm:$0xff]
      %v3343 = vld [vmem:[#allocation3 + $0x169] sm:$0xff]
      %v3344 = vld [vmem:[#allocation3 + $0x171] sm:$0xff]
      %3377 = vrot.lane.b32.xlu0 %v3313, 8
      %v3378 = vpop.permute.xlu0 %3377
      %3379 = vrot.lane.b32.xlu0 %v3314, 8
      %v3380 = vpop.permute.xlu0 %3379
      %3381 = vrot.lane.b32.xlu0 %v3315, 8
      %v3382 = vpop.permute.xlu0 %3381
      %3383 = vrot.lane.b32.xlu0 %v3316, 8
      %v3384 = vpop.permute.xlu0 %3383
      %3385 = vrot.lane.b32.xlu0 %v3317, 8
      %v3386 = vpop.permute.xlu0 %3385
      %3387 = vrot.lane.b32.xlu0 %v3318, 8
      %v3388 = vpop.permute.xlu0 %3387
      %3389 = vrot.lane.b32.xlu0 %v3319, 8
      %v3390 = vpop.permute.xlu0 %3389
      %3391 = vrot.lane.b32.xlu0 %v3320, 8
      %v3392 = vpop.permute.xlu0 %3391
      %3393 = vrot.lane.b32.xlu0 %v3321, 8
      %v3394 = vpop.permute.xlu0 %3393
      %3395 = vrot.lane.b32.xlu0 %v3322, 8
      %v3396 = vpop.permute.xlu0 %3395
      %3397 = vrot.lane.b32.xlu0 %v3323, 8
      %v3398 = vpop.permute.xlu0 %3397
      %3399 = vrot.lane.b32.xlu0 %v3324, 8
      %v3400 = vpop.permute.xlu0 %3399
      %3401 = vrot.lane.b32.xlu0 %v3325, 8
      %v3402 = vpop.permute.xlu0 %3401
      %3403 = vrot.lane.b32.xlu0 %v3326, 8
      %v3404 = vpop.permute.xlu0 %3403
      %3405 = vrot.lane.b32.xlu0 %v3327, 8
      %v3406 = vpop.permute.xlu0 %3405
      %3407 = vrot.lane.b32.xlu0 %v3328, 8
      %v3408 = vpop.permute.xlu0 %3407
      %3409 = vrot.lane.b32.xlu0 %v3329, 8
      %v3410 = vpop.permute.xlu0 %3409
      %3411 = vrot.lane.b32.xlu0 %v3330, 8
      %v3412 = vpop.permute.xlu0 %3411
      %3413 = vrot.lane.b32.xlu0 %v3331, 8
      %v3414 = vpop.permute.xlu0 %3413
      %3415 = vrot.lane.b32.xlu0 %v3332, 8
      %v3416 = vpop.permute.xlu0 %3415
      %3417 = vrot.lane.b32.xlu0 %v3333, 8
      %v3418 = vpop.permute.xlu0 %3417
      %3419 = vrot.lane.b32.xlu0 %v3334, 8
      %v3420 = vpop.permute.xlu0 %3419
      %3421 = vrot.lane.b32.xlu0 %v3335, 8
      %v3422 = vpop.permute.xlu0 %3421
      %3423 = vrot.lane.b32.xlu0 %v3336, 8
      %v3424 = vpop.permute.xlu0 %3423
      %3425 = vrot.lane.b32.xlu0 %v3337, 8
      %v3426 = vpop.permute.xlu0 %3425
      %3427 = vrot.lane.b32.xlu0 %v3338, 8
      %v3428 = vpop.permute.xlu0 %3427
      %3429 = vrot.lane.b32.xlu0 %v3339, 8
      %v3430 = vpop.permute.xlu0 %3429
      %3431 = vrot.lane.b32.xlu0 %v3340, 8
      %v3432 = vpop.permute.xlu0 %3431
      %3433 = vrot.lane.b32.xlu0 %v3341, 8
      %v3434 = vpop.permute.xlu0 %3433
      %3435 = vrot.lane.b32.xlu0 %v3342, 8
      %v3436 = vpop.permute.xlu0 %3435
      %3437 = vrot.lane.b32.xlu0 %v3343, 8
      %v3438 = vpop.permute.xlu0 %3437
      %3439 = vrot.lane.b32.xlu0 %v3344, 8
      %v3440 = vpop.permute.xlu0 %3439
      %3473 = vst.msk [vmem:[#allocation4] sm:$0xff] %vm1261, %v3378
      %3474 = vst.msk [vmem:[#allocation4 + $0x10] sm:$0xff] %vm1261, %v3380
      %3475 = vst.msk [vmem:[#allocation4 + $0x20] sm:$0xff] %vm1261, %v3382
      %3476 = vst.msk [vmem:[#allocation4 + $0x30] sm:$0xff] %vm1261, %v3384
      %3477 = vst.msk [vmem:[#allocation4 + $0x40] sm:$0xff] %vm1261, %v3386
      %3478 = vst.msk [vmem:[#allocation4 + $0x50] sm:$0xff] %vm1261, %v3388
      %3479 = vst.msk [vmem:[#allocation4 + $0x60] sm:$0xff] %vm1261, %v3390
      %3480 = vst.msk [vmem:[#allocation4 + $0x70] sm:$0xff] %vm1261, %v3392
      %3481 = vst.msk [vmem:[#allocation4 + $0x80] sm:$0xff] %vm1261, %v3394
      %3482 = vst.msk [vmem:[#allocation4 + $0x90] sm:$0xff] %vm1261, %v3396
      %3483 = vst.msk [vmem:[#allocation4 + $0xa0] sm:$0xff] %vm1261, %v3398
      %3484 = vst.msk [vmem:[#allocation4 + $0xb0] sm:$0xff] %vm1261, %v3400
      %3485 = vst.msk [vmem:[#allocation4 + $0xc0] sm:$0xff] %vm1261, %v3402
      %3486 = vst.msk [vmem:[#allocation4 + $0xd0] sm:$0xff] %vm1261, %v3404
      %3487 = vst.msk [vmem:[#allocation4 + $0xe0] sm:$0xff] %vm1261, %v3406
      %3488 = vst.msk [vmem:[#allocation4 + $0xf0] sm:$0xff] %vm1261, %v3408
      %3489 = vst.msk [vmem:[#allocation4 + $0x100] sm:$0xff] %vm1261, %v3410
      %3490 = vst.msk [vmem:[#allocation4 + $0x110] sm:$0xff] %vm1261, %v3412
      %3491 = vst.msk [vmem:[#allocation4 + $0x120] sm:$0xff] %vm1261, %v3414
      %3492 = vst.msk [vmem:[#allocation4 + $0x130] sm:$0xff] %vm1261, %v3416
      %3493 = vst.msk [vmem:[#allocation4 + $0x140] sm:$0xff] %vm1261, %v3418
      %3494 = vst.msk [vmem:[#allocation4 + $0x150] sm:$0xff] %vm1261, %v3420
      %3495 = vst.msk [vmem:[#allocation4 + $0x160] sm:$0xff] %vm1261, %v3422
      %3496 = vst.msk [vmem:[#allocation4 + $0x170] sm:$0xff] %vm1261, %v3424
      %3497 = vst.msk [vmem:[#allocation4 + $0x180] sm:$0xff] %vm1261, %v3426
      %3498 = vst.msk [vmem:[#allocation4 + $0x190] sm:$0xff] %vm1261, %v3428
      %3499 = vst.msk [vmem:[#allocation4 + $0x1a0] sm:$0xff] %vm1261, %v3430
      %3500 = vst.msk [vmem:[#allocation4 + $0x1b0] sm:$0xff] %vm1261, %v3432
      %3501 = vst.msk [vmem:[#allocation4 + $0x1c0] sm:$0xff] %vm1261, %v3434
      %3502 = vst.msk [vmem:[#allocation4 + $0x1d0] sm:$0xff] %vm1261, %v3436
      %3503 = vst.msk [vmem:[#allocation4 + $0x1e0] sm:$0xff] %vm1261, %v3438
      %3504 = vst.msk [vmem:[#allocation4 + $0x1f0] sm:$0xff] %vm1261, %v3440
      %v3505 = vld [vmem:[#allocation3 + $0x2] sm:$0xff]
      %v3506 = vld [vmem:[#allocation3 + $0xa] sm:$0xff]
      %v3507 = vld [vmem:[#allocation3 + $0x1a] sm:$0xff]
      %v3508 = vld [vmem:[#allocation3 + $0x22] sm:$0xff]
      %v3509 = vld [vmem:[#allocation3 + $0x32] sm:$0xff]
      %v3510 = vld [vmem:[#allocation3 + $0x3a] sm:$0xff]
      %v3511 = vld [vmem:[#allocation3 + $0x4a] sm:$0xff]
      %v3512 = vld [vmem:[#allocation3 + $0x52] sm:$0xff]
      %v3513 = vld [vmem:[#allocation3 + $0x62] sm:$0xff]
      %v3514 = vld [vmem:[#allocation3 + $0x6a] sm:$0xff]
      %v3515 = vld [vmem:[#allocation3 + $0x7a] sm:$0xff]
      %v3516 = vld [vmem:[#allocation3 + $0x82] sm:$0xff]
      %v3517 = vld [vmem:[#allocation3 + $0x92] sm:$0xff]
      %v3518 = vld [vmem:[#allocation3 + $0x9a] sm:$0xff]
      %v3519 = vld [vmem:[#allocation3 + $0xaa] sm:$0xff]
      %v3520 = vld [vmem:[#allocation3 + $0xb2] sm:$0xff]
      %v3521 = vld [vmem:[#allocation3 + $0xc2] sm:$0xff]
      %v3522 = vld [vmem:[#allocation3 + $0xca] sm:$0xff]
      %v3523 = vld [vmem:[#allocation3 + $0xda] sm:$0xff]
      %v3524 = vld [vmem:[#allocation3 + $0xe2] sm:$0xff]
      %v3525 = vld [vmem:[#allocation3 + $0xf2] sm:$0xff]
      %v3526 = vld [vmem:[#allocation3 + $0xfa] sm:$0xff]
      %v3527 = vld [vmem:[#allocation3 + $0x10a] sm:$0xff]
      %v3528 = vld [vmem:[#allocation3 + $0x112] sm:$0xff]
      %v3529 = vld [vmem:[#allocation3 + $0x122] sm:$0xff]
      %v3530 = vld [vmem:[#allocation3 + $0x12a] sm:$0xff]
      %v3531 = vld [vmem:[#allocation3 + $0x13a] sm:$0xff]
      %v3532 = vld [vmem:[#allocation3 + $0x142] sm:$0xff]
      %v3533 = vld [vmem:[#allocation3 + $0x152] sm:$0xff]
      %v3534 = vld [vmem:[#allocation3 + $0x15a] sm:$0xff]
      %v3535 = vld [vmem:[#allocation3 + $0x16a] sm:$0xff]
      %v3536 = vld [vmem:[#allocation3 + $0x172] sm:$0xff]
      %3569 = vrot.lane.b32.xlu0 %v3505, 16
      %v3570 = vpop.permute.xlu0 %3569
      %3571 = vrot.lane.b32.xlu0 %v3506, 16
      %v3572 = vpop.permute.xlu0 %3571
      %3573 = vrot.lane.b32.xlu0 %v3507, 16
      %v3574 = vpop.permute.xlu0 %3573
      %3575 = vrot.lane.b32.xlu0 %v3508, 16
      %v3576 = vpop.permute.xlu0 %3575
      %3577 = vrot.lane.b32.xlu0 %v3509, 16
      %v3578 = vpop.permute.xlu0 %3577
      %3579 = vrot.lane.b32.xlu0 %v3510, 16
      %v3580 = vpop.permute.xlu0 %3579
      %3581 = vrot.lane.b32.xlu0 %v3511, 16
      %v3582 = vpop.permute.xlu0 %3581
      %3583 = vrot.lane.b32.xlu0 %v3512, 16
      %v3584 = vpop.permute.xlu0 %3583
      %3585 = vrot.lane.b32.xlu0 %v3513, 16
      %v3586 = vpop.permute.xlu0 %3585
      %3587 = vrot.lane.b32.xlu0 %v3514, 16
      %v3588 = vpop.permute.xlu0 %3587
      %3589 = vrot.lane.b32.xlu0 %v3515, 16
      %v3590 = vpop.permute.xlu0 %3589
      %3591 = vrot.lane.b32.xlu0 %v3516, 16
      %v3592 = vpop.permute.xlu0 %3591
      %3593 = vrot.lane.b32.xlu0 %v3517, 16
      %v3594 = vpop.permute.xlu0 %3593
      %3595 = vrot.lane.b32.xlu0 %v3518, 16
      %v3596 = vpop.permute.xlu0 %3595
      %3597 = vrot.lane.b32.xlu0 %v3519, 16
      %v3598 = vpop.permute.xlu0 %3597
      %3599 = vrot.lane.b32.xlu0 %v3520, 16
      %v3600 = vpop.permute.xlu0 %3599
      %3601 = vrot.lane.b32.xlu0 %v3521, 16
      %v3602 = vpop.permute.xlu0 %3601
      %3603 = vrot.lane.b32.xlu0 %v3522, 16
      %v3604 = vpop.permute.xlu0 %3603
      %3605 = vrot.lane.b32.xlu0 %v3523, 16
      %v3606 = vpop.permute.xlu0 %3605
      %3607 = vrot.lane.b32.xlu0 %v3524, 16
      %v3608 = vpop.permute.xlu0 %3607
      %3609 = vrot.lane.b32.xlu0 %v3525, 16
      %v3610 = vpop.permute.xlu0 %3609
      %3611 = vrot.lane.b32.xlu0 %v3526, 16
      %v3612 = vpop.permute.xlu0 %3611
      %3613 = vrot.lane.b32.xlu0 %v3527, 16
      %v3614 = vpop.permute.xlu0 %3613
      %3615 = vrot.lane.b32.xlu0 %v3528, 16
      %v3616 = vpop.permute.xlu0 %3615
      %3617 = vrot.lane.b32.xlu0 %v3529, 16
      %v3618 = vpop.permute.xlu0 %3617
      %3619 = vrot.lane.b32.xlu0 %v3530, 16
      %v3620 = vpop.permute.xlu0 %3619
      %3621 = vrot.lane.b32.xlu0 %v3531, 16
      %v3622 = vpop.permute.xlu0 %3621
      %3623 = vrot.lane.b32.xlu0 %v3532, 16
      %v3624 = vpop.permute.xlu0 %3623
      %3625 = vrot.lane.b32.xlu0 %v3533, 16
      %v3626 = vpop.permute.xlu0 %3625
      %3627 = vrot.lane.b32.xlu0 %v3534, 16
      %v3628 = vpop.permute.xlu0 %3627
      %3629 = vrot.lane.b32.xlu0 %v3535, 16
      %v3630 = vpop.permute.xlu0 %3629
      %3631 = vrot.lane.b32.xlu0 %v3536, 16
      %v3632 = vpop.permute.xlu0 %3631
      %vm3665 = vcmask 195712
      %3666 = vst.msk [vmem:[#allocation4] sm:$0xff] %vm3665, %v3570
      %3667 = vst.msk [vmem:[#allocation4 + $0x10] sm:$0xff] %vm3665, %v3572
      %3668 = vst.msk [vmem:[#allocation4 + $0x20] sm:$0xff] %vm3665, %v3574
      %3669 = vst.msk [vmem:[#allocation4 + $0x30] sm:$0xff] %vm3665, %v3576
      %3670 = vst.msk [vmem:[#allocation4 + $0x40] sm:$0xff] %vm3665, %v3578
      %3671 = vst.msk [vmem:[#allocation4 + $0x50] sm:$0xff] %vm3665, %v3580
      %3672 = vst.msk [vmem:[#allocation4 + $0x60] sm:$0xff] %vm3665, %v3582
      %3673 = vst.msk [vmem:[#allocation4 + $0x70] sm:$0xff] %vm3665, %v3584
      %3674 = vst.msk [vmem:[#allocation4 + $0x80] sm:$0xff] %vm3665, %v3586
      %3675 = vst.msk [vmem:[#allocation4 + $0x90] sm:$0xff] %vm3665, %v3588
      %3676 = vst.msk [vmem:[#allocation4 + $0xa0] sm:$0xff] %vm3665, %v3590
      %3677 = vst.msk [vmem:[#allocation4 + $0xb0] sm:$0xff] %vm3665, %v3592
      %3678 = vst.msk [vmem:[#allocation4 + $0xc0] sm:$0xff] %vm3665, %v3594
      %3679 = vst.msk [vmem:[#allocation4 + $0xd0] sm:$0xff] %vm3665, %v3596
      %3680 = vst.msk [vmem:[#allocation4 + $0xe0] sm:$0xff] %vm3665, %v3598
      %3681 = vst.msk [vmem:[#allocation4 + $0xf0] sm:$0xff] %vm3665, %v3600
      %3682 = vst.msk [vmem:[#allocation4 + $0x100] sm:$0xff] %vm3665, %v3602
      %3683 = vst.msk [vmem:[#allocation4 + $0x110] sm:$0xff] %vm3665, %v3604
      %3684 = vst.msk [vmem:[#allocation4 + $0x120] sm:$0xff] %vm3665, %v3606
      %3685 = vst.msk [vmem:[#allocation4 + $0x130] sm:$0xff] %vm3665, %v3608
      %3686 = vst.msk [vmem:[#allocation4 + $0x140] sm:$0xff] %vm3665, %v3610
      %3687 = vst.msk [vmem:[#allocation4 + $0x150] sm:$0xff] %vm3665, %v3612
      %3688 = vst.msk [vmem:[#allocation4 + $0x160] sm:$0xff] %vm3665, %v3614
      %3689 = vst.msk [vmem:[#allocation4 + $0x170] sm:$0xff] %vm3665, %v3616
      %3690 = vst.msk [vmem:[#allocation4 + $0x180] sm:$0xff] %vm3665, %v3618
      %3691 = vst.msk [vmem:[#allocation4 + $0x190] sm:$0xff] %vm3665, %v3620
      %3692 = vst.msk [vmem:[#allocation4 + $0x1a0] sm:$0xff] %vm3665, %v3622
      %3693 = vst.msk [vmem:[#allocation4 + $0x1b0] sm:$0xff] %vm3665, %v3624
      %3694 = vst.msk [vmem:[#allocation4 + $0x1c0] sm:$0xff] %vm3665, %v3626
      %3695 = vst.msk [vmem:[#allocation4 + $0x1d0] sm:$0xff] %vm3665, %v3628
      %3696 = vst.msk [vmem:[#allocation4 + $0x1e0] sm:$0xff] %vm3665, %v3630
      %3697 = vst.msk [vmem:[#allocation4 + $0x1f0] sm:$0xff] %vm3665, %v3632
      %v3698 = vld [vmem:[%s3216] sm:$0xff]
      %v3699 = vld [vmem:[%s3216 + $0x8] sm:$0xff]
      %v3700 = vld [vmem:[%s3216 + $0x18] sm:$0xff]
      %v3701 = vld [vmem:[%s3216 + $0x20] sm:$0xff]
      %v3702 = vld [vmem:[%s3216 + $0x30] sm:$0xff]
      %v3703 = vld [vmem:[%s3216 + $0x38] sm:$0xff]
      %v3704 = vld [vmem:[%s3216 + $0x48] sm:$0xff]
      %v3705 = vld [vmem:[%s3216 + $0x50] sm:$0xff]
      %v3706 = vld [vmem:[%s3216 + $0x60] sm:$0xff]
      %v3707 = vld [vmem:[%s3216 + $0x68] sm:$0xff]
      %v3708 = vld [vmem:[%s3216 + $0x78] sm:$0xff]
      %v3709 = vld [vmem:[%s3216 + $0x80] sm:$0xff]
      %v3710 = vld [vmem:[%s3216 + $0x90] sm:$0xff]
      %v3711 = vld [vmem:[%s3216 + $0x98] sm:$0xff]
      %v3712 = vld [vmem:[%s3216 + $0xa8] sm:$0xff]
      %v3713 = vld [vmem:[%s3216 + $0xb0] sm:$0xff]
      %v3714 = vld [vmem:[%s3216 + $0xc0] sm:$0xff]
      %v3715 = vld [vmem:[%s3216 + $0xc8] sm:$0xff]
      %v3716 = vld [vmem:[%s3216 + $0xd8] sm:$0xff]
      %v3717 = vld [vmem:[%s3216 + $0xe0] sm:$0xff]
      %v3718 = vld [vmem:[%s3216 + $0xf0] sm:$0xff]
      %v3719 = vld [vmem:[%s3216 + $0xf8] sm:$0xff]
      %v3720 = vld [vmem:[%s3216 + $0x108] sm:$0xff]
      %v3721 = vld [vmem:[%s3216 + $0x110] sm:$0xff]
      %v3722 = vld [vmem:[%s3216 + $0x120] sm:$0xff]
      %v3723 = vld [vmem:[%s3216 + $0x128] sm:$0xff]
      %v3724 = vld [vmem:[%s3216 + $0x138] sm:$0xff]
      %v3725 = vld [vmem:[%s3216 + $0x140] sm:$0xff]
      %v3726 = vld [vmem:[%s3216 + $0x150] sm:$0xff]
      %v3727 = vld [vmem:[%s3216 + $0x158] sm:$0xff]
      %v3728 = vld [vmem:[%s3216 + $0x168] sm:$0xff]
      %v3729 = vld [vmem:[%s3216 + $0x170] sm:$0xff]
      %3762 = vrot.lane.b32.xlu0 %v3698, 24
      %v3763 = vpop.permute.xlu0 %3762
      %3764 = vrot.lane.b32.xlu0 %v3699, 24
      %v3765 = vpop.permute.xlu0 %3764
      %3766 = vrot.lane.b32.xlu0 %v3700, 24
      %v3767 = vpop.permute.xlu0 %3766
      %3768 = vrot.lane.b32.xlu0 %v3701, 24
      %v3769 = vpop.permute.xlu0 %3768
      %3770 = vrot.lane.b32.xlu0 %v3702, 24
      %v3771 = vpop.permute.xlu0 %3770
      %3772 = vrot.lane.b32.xlu0 %v3703, 24
      %v3773 = vpop.permute.xlu0 %3772
      %3774 = vrot.lane.b32.xlu0 %v3704, 24
      %v3775 = vpop.permute.xlu0 %3774
      %3776 = vrot.lane.b32.xlu0 %v3705, 24
      %v3777 = vpop.permute.xlu0 %3776
      %3778 = vrot.lane.b32.xlu0 %v3706, 24
      %v3779 = vpop.permute.xlu0 %3778
      %3780 = vrot.lane.b32.xlu0 %v3707, 24
      %v3781 = vpop.permute.xlu0 %3780
      %3782 = vrot.lane.b32.xlu0 %v3708, 24
      %v3783 = vpop.permute.xlu0 %3782
      %3784 = vrot.lane.b32.xlu0 %v3709, 24
      %v3785 = vpop.permute.xlu0 %3784
      %3786 = vrot.lane.b32.xlu0 %v3710, 24
      %v3787 = vpop.permute.xlu0 %3786
      %3788 = vrot.lane.b32.xlu0 %v3711, 24
      %v3789 = vpop.permute.xlu0 %3788
      %3790 = vrot.lane.b32.xlu0 %v3712, 24
      %v3791 = vpop.permute.xlu0 %3790
      %3792 = vrot.lane.b32.xlu0 %v3713, 24
      %v3793 = vpop.permute.xlu0 %3792
      %3794 = vrot.lane.b32.xlu0 %v3714, 24
      %v3795 = vpop.permute.xlu0 %3794
      %3796 = vrot.lane.b32.xlu0 %v3715, 24
      %v3797 = vpop.permute.xlu0 %3796
      %3798 = vrot.lane.b32.xlu0 %v3716, 24
      %v3799 = vpop.permute.xlu0 %3798
      %3800 = vrot.lane.b32.xlu0 %v3717, 24
      %v3801 = vpop.permute.xlu0 %3800
      %3802 = vrot.lane.b32.xlu0 %v3718, 24
      %v3803 = vpop.permute.xlu0 %3802
      %3804 = vrot.lane.b32.xlu0 %v3719, 24
      %v3805 = vpop.permute.xlu0 %3804
      %3806 = vrot.lane.b32.xlu0 %v3720, 24
      %v3807 = vpop.permute.xlu0 %3806
      %3808 = vrot.lane.b32.xlu0 %v3721, 24
      %v3809 = vpop.permute.xlu0 %3808
      %3810 = vrot.lane.b32.xlu0 %v3722, 24
      %v3811 = vpop.permute.xlu0 %3810
      %3812 = vrot.lane.b32.xlu0 %v3723, 24
      %v3813 = vpop.permute.xlu0 %3812
      %3814 = vrot.lane.b32.xlu0 %v3724, 24
      %v3815 = vpop.permute.xlu0 %3814
      %3816 = vrot.lane.b32.xlu0 %v3725, 24
      %v3817 = vpop.permute.xlu0 %3816
      %3818 = vrot.lane.b32.xlu0 %v3726, 24
      %v3819 = vpop.permute.xlu0 %3818
      %3820 = vrot.lane.b32.xlu0 %v3727, 24
      %v3821 = vpop.permute.xlu0 %3820
      %3822 = vrot.lane.b32.xlu0 %v3728, 24
      %v3823 = vpop.permute.xlu0 %3822
      %3824 = vrot.lane.b32.xlu0 %v3729, 24
      %v3825 = vpop.permute.xlu0 %3824
      %vm3858 = vcmask 261312
      %3859 = vst.msk [vmem:[#allocation4] sm:$0xff] %vm3858, %v3763
      %3860 = vst.msk [vmem:[#allocation4 + $0x10] sm:$0xff] %vm3858, %v3765
      %3861 = vst.msk [vmem:[#allocation4 + $0x20] sm:$0xff] %vm3858, %v3767
      %3862 = vst.msk [vmem:[#allocation4 + $0x30] sm:$0xff] %vm3858, %v3769
      %3863 = vst.msk [vmem:[#allocation4 + $0x40] sm:$0xff] %vm3858, %v3771
      %3864 = vst.msk [vmem:[#allocation4 + $0x50] sm:$0xff] %vm3858, %v3773
      %3865 = vst.msk [vmem:[#allocation4 + $0x60] sm:$0xff] %vm3858, %v3775
      %3866 = vst.msk [vmem:[#allocation4 + $0x70] sm:$0xff] %vm3858, %v3777
      %3867 = vst.msk [vmem:[#allocation4 + $0x80] sm:$0xff] %vm3858, %v3779
      %3868 = vst.msk [vmem:[#allocation4 + $0x90] sm:$0xff] %vm3858, %v3781
      %3869 = vst.msk [vmem:[#allocation4 + $0xa0] sm:$0xff] %vm3858, %v3783
      %3870 = vst.msk [vmem:[#allocation4 + $0xb0] sm:$0xff] %vm3858, %v3785
      %3871 = vst.msk [vmem:[#allocation4 + $0xc0] sm:$0xff] %vm3858, %v3787
      %3872 = vst.msk [vmem:[#allocation4 + $0xd0] sm:$0xff] %vm3858, %v3789
      %3873 = vst.msk [vmem:[#allocation4 + $0xe0] sm:$0xff] %vm3858, %v3791
      %3874 = vst.msk [vmem:[#allocation4 + $0xf0] sm:$0xff] %vm3858, %v3793
      %3875 = vst.msk [vmem:[#allocation4 + $0x100] sm:$0xff] %vm3858, %v3795
      %3876 = vst.msk [vmem:[#allocation4 + $0x110] sm:$0xff] %vm3858, %v3797
      %3877 = vst.msk [vmem:[#allocation4 + $0x120] sm:$0xff] %vm3858, %v3799
      %3878 = vst.msk [vmem:[#allocation4 + $0x130] sm:$0xff] %vm3858, %v3801
      %3879 = vst.msk [vmem:[#allocation4 + $0x140] sm:$0xff] %vm3858, %v3803
      %3880 = vst.msk [vmem:[#allocation4 + $0x150] sm:$0xff] %vm3858, %v3805
      %3881 = vst.msk [vmem:[#allocation4 + $0x160] sm:$0xff] %vm3858, %v3807
      %3882 = vst.msk [vmem:[#allocation4 + $0x170] sm:$0xff] %vm3858, %v3809
      %3883 = vst.msk [vmem:[#allocation4 + $0x180] sm:$0xff] %vm3858, %v3811
      %3884 = vst.msk [vmem:[#allocation4 + $0x190] sm:$0xff] %vm3858, %v3813
      %3885 = vst.msk [vmem:[#allocation4 + $0x1a0] sm:$0xff] %vm3858, %v3815
      %3886 = vst.msk [vmem:[#allocation4 + $0x1b0] sm:$0xff] %vm3858, %v3817
      %3887 = vst.msk [vmem:[#allocation4 + $0x1c0] sm:$0xff] %vm3858, %v3819
      %3888 = vst.msk [vmem:[#allocation4 + $0x1d0] sm:$0xff] %vm3858, %v3821
      %3889 = vst.msk [vmem:[#allocation4 + $0x1e0] sm:$0xff] %vm3858, %v3823
      %3890 = vst.msk [vmem:[#allocation4 + $0x1f0] sm:$0xff] %vm3858, %v3825
      %v3891 = vld [vmem:[%s3216 + $0x1] sm:$0xff]
      %v3892 = vld [vmem:[%s3216 + $0x9] sm:$0xff]
      %v3893 = vld [vmem:[%s3216 + $0x19] sm:$0xff]
      %v3894 = vld [vmem:[%s3216 + $0x21] sm:$0xff]
      %v3895 = vld [vmem:[%s3216 + $0x31] sm:$0xff]
      %v3896 = vld [vmem:[%s3216 + $0x39] sm:$0xff]
      %v3897 = vld [vmem:[%s3216 + $0x49] sm:$0xff]
      %v3898 = vld [vmem:[%s3216 + $0x51] sm:$0xff]
      %v3899 = vld [vmem:[%s3216 + $0x61] sm:$0xff]
      %v3900 = vld [vmem:[%s3216 + $0x69] sm:$0xff]
      %v3901 = vld [vmem:[%s3216 + $0x79] sm:$0xff]
      %v3902 = vld [vmem:[%s3216 + $0x81] sm:$0xff]
      %v3903 = vld [vmem:[%s3216 + $0x91] sm:$0xff]
      %v3904 = vld [vmem:[%s3216 + $0x99] sm:$0xff]
      %v3905 = vld [vmem:[%s3216 + $0xa9] sm:$0xff]
      %v3906 = vld [vmem:[%s3216 + $0xb1] sm:$0xff]
      %v3907 = vld [vmem:[%s3216 + $0xc1] sm:$0xff]
      %v3908 = vld [vmem:[%s3216 + $0xc9] sm:$0xff]
      %v3909 = vld [vmem:[%s3216 + $0xd9] sm:$0xff]
      %v3910 = vld [vmem:[%s3216 + $0xe1] sm:$0xff]
      %v3911 = vld [vmem:[%s3216 + $0xf1] sm:$0xff]
      %v3912 = vld [vmem:[%s3216 + $0xf9] sm:$0xff]
      %v3913 = vld [vmem:[%s3216 + $0x109] sm:$0xff]
      %v3914 = vld [vmem:[%s3216 + $0x111] sm:$0xff]
      %v3915 = vld [vmem:[%s3216 + $0x121] sm:$0xff]
      %v3916 = vld [vmem:[%s3216 + $0x129] sm:$0xff]
      %v3917 = vld [vmem:[%s3216 + $0x139] sm:$0xff]
      %v3918 = vld [vmem:[%s3216 + $0x141] sm:$0xff]
      %v3919 = vld [vmem:[%s3216 + $0x151] sm:$0xff]
      %v3920 = vld [vmem:[%s3216 + $0x159] sm:$0xff]
      %v3921 = vld [vmem:[%s3216 + $0x169] sm:$0xff]
      %v3922 = vld [vmem:[%s3216 + $0x171] sm:$0xff]
      %3955 = vrot.lane.b32.xlu0 %v3891, 32
      %v3956 = vpop.permute.xlu0 %3955
      %3957 = vrot.lane.b32.xlu0 %v3892, 32
      %v3958 = vpop.permute.xlu0 %3957
      %3959 = vrot.lane.b32.xlu0 %v3893, 32
      %v3960 = vpop.permute.xlu0 %3959
      %3961 = vrot.lane.b32.xlu0 %v3894, 32
      %v3962 = vpop.permute.xlu0 %3961
      %3963 = vrot.lane.b32.xlu0 %v3895, 32
      %v3964 = vpop.permute.xlu0 %3963
      %3965 = vrot.lane.b32.xlu0 %v3896, 32
      %v3966 = vpop.permute.xlu0 %3965
      %3967 = vrot.lane.b32.xlu0 %v3897, 32
      %v3968 = vpop.permute.xlu0 %3967
      %3969 = vrot.lane.b32.xlu0 %v3898, 32
      %v3970 = vpop.permute.xlu0 %3969
      %3971 = vrot.lane.b32.xlu0 %v3899, 32
      %v3972 = vpop.permute.xlu0 %3971
      %3973 = vrot.lane.b32.xlu0 %v3900, 32
      %v3974 = vpop.permute.xlu0 %3973
      %3975 = vrot.lane.b32.xlu0 %v3901, 32
      %v3976 = vpop.permute.xlu0 %3975
      %3977 = vrot.lane.b32.xlu0 %v3902, 32
      %v3978 = vpop.permute.xlu0 %3977
      %3979 = vrot.lane.b32.xlu0 %v3903, 32
      %v3980 = vpop.permute.xlu0 %3979
      %3981 = vrot.lane.b32.xlu0 %v3904, 32
      %v3982 = vpop.permute.xlu0 %3981
      %3983 = vrot.lane.b32.xlu0 %v3905, 32
      %v3984 = vpop.permute.xlu0 %3983
      %3985 = vrot.lane.b32.xlu0 %v3906, 32
      %v3986 = vpop.permute.xlu0 %3985
      %3987 = vrot.lane.b32.xlu0 %v3907, 32
      %v3988 = vpop.permute.xlu0 %3987
      %3989 = vrot.lane.b32.xlu0 %v3908, 32
      %v3990 = vpop.permute.xlu0 %3989
      %3991 = vrot.lane.b32.xlu0 %v3909, 32
      %v3992 = vpop.permute.xlu0 %3991
      %3993 = vrot.lane.b32.xlu0 %v3910, 32
      %v3994 = vpop.permute.xlu0 %3993
      %3995 = vrot.lane.b32.xlu0 %v3911, 32
      %v3996 = vpop.permute.xlu0 %3995
      %3997 = vrot.lane.b32.xlu0 %v3912, 32
      %v3998 = vpop.permute.xlu0 %3997
      %3999 = vrot.lane.b32.xlu0 %v3913, 32
      %v4000 = vpop.permute.xlu0 %3999
      %4001 = vrot.lane.b32.xlu0 %v3914, 32
      %v4002 = vpop.permute.xlu0 %4001
      %4003 = vrot.lane.b32.xlu0 %v3915, 32
      %v4004 = vpop.permute.xlu0 %4003
      %4005 = vrot.lane.b32.xlu0 %v3916, 32
      %v4006 = vpop.permute.xlu0 %4005
      %4007 = vrot.lane.b32.xlu0 %v3917, 32
      %v4008 = vpop.permute.xlu0 %4007
      %4009 = vrot.lane.b32.xlu0 %v3918, 32
      %v4010 = vpop.permute.xlu0 %4009
      %4011 = vrot.lane.b32.xlu0 %v3919, 32
      %v4012 = vpop.permute.xlu0 %4011
      %4013 = vrot.lane.b32.xlu0 %v3920, 32
      %v4014 = vpop.permute.xlu0 %4013
      %4015 = vrot.lane.b32.xlu0 %v3921, 32
      %v4016 = vpop.permute.xlu0 %4015
      %4017 = vrot.lane.b32.xlu0 %v3922, 32
      %v4018 = vpop.permute.xlu0 %4017
      %vm4051 = vcmask 326912
      %4052 = vst.msk [vmem:[#allocation4] sm:$0xff] %vm4051, %v3956
      %4053 = vst.msk [vmem:[#allocation4 + $0x10] sm:$0xff] %vm4051, %v3958
      %4054 = vst.msk [vmem:[#allocation4 + $0x20] sm:$0xff] %vm4051, %v3960
      %4055 = vst.msk [vmem:[#allocation4 + $0x30] sm:$0xff] %vm4051, %v3962
      %4056 = vst.msk [vmem:[#allocation4 + $0x40] sm:$0xff] %vm4051, %v3964
      %4057 = vst.msk [vmem:[#allocation4 + $0x50] sm:$0xff] %vm4051, %v3966
      %4058 = vst.msk [vmem:[#allocation4 + $0x60] sm:$0xff] %vm4051, %v3968
      %4059 = vst.msk [vmem:[#allocation4 + $0x70] sm:$0xff] %vm4051, %v3970
      %4060 = vst.msk [vmem:[#allocation4 + $0x80] sm:$0xff] %vm4051, %v3972
      %4061 = vst.msk [vmem:[#allocation4 + $0x90] sm:$0xff] %vm4051, %v3974
      %4062 = vst.msk [vmem:[#allocation4 + $0xa0] sm:$0xff] %vm4051, %v3976
      %4063 = vst.msk [vmem:[#allocation4 + $0xb0] sm:$0xff] %vm4051, %v3978
      %4064 = vst.msk [vmem:[#allocation4 + $0xc0] sm:$0xff] %vm4051, %v3980
      %4065 = vst.msk [vmem:[#allocation4 + $0xd0] sm:$0xff] %vm4051, %v3982
      %4066 = vst.msk [vmem:[#allocation4 + $0xe0] sm:$0xff] %vm4051, %v3984
      %4067 = vst.msk [vmem:[#allocation4 + $0xf0] sm:$0xff] %vm4051, %v3986
      %4068 = vst.msk [vmem:[#allocation4 + $0x100] sm:$0xff] %vm4051, %v3988
      %4069 = vst.msk [vmem:[#allocation4 + $0x110] sm:$0xff] %vm4051, %v3990
      %4070 = vst.msk [vmem:[#allocation4 + $0x120] sm:$0xff] %vm4051, %v3992
      %4071 = vst.msk [vmem:[#allocation4 + $0x130] sm:$0xff] %vm4051, %v3994
      %4072 = vst.msk [vmem:[#allocation4 + $0x140] sm:$0xff] %vm4051, %v3996
      %4073 = vst.msk [vmem:[#allocation4 + $0x150] sm:$0xff] %vm4051, %v3998
      %4074 = vst.msk [vmem:[#allocation4 + $0x160] sm:$0xff] %vm4051, %v4000
      %4075 = vst.msk [vmem:[#allocation4 + $0x170] sm:$0xff] %vm4051, %v4002
      %4076 = vst.msk [vmem:[#allocation4 + $0x180] sm:$0xff] %vm4051, %v4004
      %4077 = vst.msk [vmem:[#allocation4 + $0x190] sm:$0xff] %vm4051, %v4006
      %4078 = vst.msk [vmem:[#allocation4 + $0x1a0] sm:$0xff] %vm4051, %v4008
      %4079 = vst.msk [vmem:[#allocation4 + $0x1b0] sm:$0xff] %vm4051, %v4010
      %4080 = vst.msk [vmem:[#allocation4 + $0x1c0] sm:$0xff] %vm4051, %v4012
      %4081 = vst.msk [vmem:[#allocation4 + $0x1d0] sm:$0xff] %vm4051, %v4014
      %4082 = vst.msk [vmem:[#allocation4 + $0x1e0] sm:$0xff] %vm4051, %v4016
      %4083 = vst.msk [vmem:[#allocation4 + $0x1f0] sm:$0xff] %vm4051, %v4018
      %v4084 = vld [vmem:[%s3216 + $0x2] sm:$0xff]
      %v4085 = vld [vmem:[%s3216 + $0xa] sm:$0xff]
      %v4086 = vld [vmem:[%s3216 + $0x1a] sm:$0xff]
      %v4087 = vld [vmem:[%s3216 + $0x22] sm:$0xff]
      %v4088 = vld [vmem:[%s3216 + $0x32] sm:$0xff]
      %v4089 = vld [vmem:[%s3216 + $0x3a] sm:$0xff]
      %v4090 = vld [vmem:[%s3216 + $0x4a] sm:$0xff]
      %v4091 = vld [vmem:[%s3216 + $0x52] sm:$0xff]
      %v4092 = vld [vmem:[%s3216 + $0x62] sm:$0xff]
      %v4093 = vld [vmem:[%s3216 + $0x6a] sm:$0xff]
      %v4094 = vld [vmem:[%s3216 + $0x7a] sm:$0xff]
      %v4095 = vld [vmem:[%s3216 + $0x82] sm:$0xff]
      %v4096 = vld [vmem:[%s3216 + $0x92] sm:$0xff]
      %v4097 = vld [vmem:[%s3216 + $0x9a] sm:$0xff]
      %v4098 = vld [vmem:[%s3216 + $0xaa] sm:$0xff]
      %v4099 = vld [vmem:[%s3216 + $0xb2] sm:$0xff]
      %v4100 = vld [vmem:[%s3216 + $0xc2] sm:$0xff]
      %v4101 = vld [vmem:[%s3216 + $0xca] sm:$0xff]
      %v4102 = vld [vmem:[%s3216 + $0xda] sm:$0xff]
      %v4103 = vld [vmem:[%s3216 + $0xe2] sm:$0xff]
      %v4104 = vld [vmem:[%s3216 + $0xf2] sm:$0xff]
      %v4105 = vld [vmem:[%s3216 + $0xfa] sm:$0xff]
      %v4106 = vld [vmem:[%s3216 + $0x10a] sm:$0xff]
      %v4107 = vld [vmem:[%s3216 + $0x112] sm:$0xff]
      %v4108 = vld [vmem:[%s3216 + $0x122] sm:$0xff]
      %v4109 = vld [vmem:[%s3216 + $0x12a] sm:$0xff]
      %v4110 = vld [vmem:[%s3216 + $0x13a] sm:$0xff]
      %v4111 = vld [vmem:[%s3216 + $0x142] sm:$0xff]
      %v4112 = vld [vmem:[%s3216 + $0x152] sm:$0xff]
      %v4113 = vld [vmem:[%s3216 + $0x15a] sm:$0xff]
      %v4114 = vld [vmem:[%s3216 + $0x16a] sm:$0xff]
      %v4115 = vld [vmem:[%s3216 + $0x172] sm:$0xff]
      %4148 = vrot.lane.b32.xlu0 %v4084, 40
      %v4149 = vpop.permute.xlu0 %4148
      %4150 = vrot.lane.b32.xlu0 %v4085, 40
      %v4151 = vpop.permute.xlu0 %4150
      %4152 = vrot.lane.b32.xlu0 %v4086, 40
      %v4153 = vpop.permute.xlu0 %4152
      %4154 = vrot.lane.b32.xlu0 %v4087, 40
      %v4155 = vpop.permute.xlu0 %4154
      %4156 = vrot.lane.b32.xlu0 %v4088, 40
      %v4157 = vpop.permute.xlu0 %4156
      %4158 = vrot.lane.b32.xlu0 %v4089, 40
      %v4159 = vpop.permute.xlu0 %4158
      %4160 = vrot.lane.b32.xlu0 %v4090, 40
      %v4161 = vpop.permute.xlu0 %4160
      %4162 = vrot.lane.b32.xlu0 %v4091, 40
      %v4163 = vpop.permute.xlu0 %4162
      %4164 = vrot.lane.b32.xlu0 %v4092, 40
      %v4165 = vpop.permute.xlu0 %4164
      %4166 = vrot.lane.b32.xlu0 %v4093, 40
      %v4167 = vpop.permute.xlu0 %4166
      %4168 = vrot.lane.b32.xlu0 %v4094, 40
      %v4169 = vpop.permute.xlu0 %4168
      %4170 = vrot.lane.b32.xlu0 %v4095, 40
      %v4171 = vpop.permute.xlu0 %4170
      %4172 = vrot.lane.b32.xlu0 %v4096, 40
      %v4173 = vpop.permute.xlu0 %4172
      %4174 = vrot.lane.b32.xlu0 %v4097, 40
      %v4175 = vpop.permute.xlu0 %4174
      %4176 = vrot.lane.b32.xlu0 %v4098, 40
      %v4177 = vpop.permute.xlu0 %4176
      %4178 = vrot.lane.b32.xlu0 %v4099, 40
      %v4179 = vpop.permute.xlu0 %4178
      %4180 = vrot.lane.b32.xlu0 %v4100, 40
      %v4181 = vpop.permute.xlu0 %4180
      %4182 = vrot.lane.b32.xlu0 %v4101, 40
      %v4183 = vpop.permute.xlu0 %4182
      %4184 = vrot.lane.b32.xlu0 %v4102, 40
      %v4185 = vpop.permute.xlu0 %4184
      %4186 = vrot.lane.b32.xlu0 %v4103, 40
      %v4187 = vpop.permute.xlu0 %4186
      %4188 = vrot.lane.b32.xlu0 %v4104, 40
      %v4189 = vpop.permute.xlu0 %4188
      %4190 = vrot.lane.b32.xlu0 %v4105, 40
      %v4191 = vpop.permute.xlu0 %4190
      %4192 = vrot.lane.b32.xlu0 %v4106, 40
      %v4193 = vpop.permute.xlu0 %4192
      %4194 = vrot.lane.b32.xlu0 %v4107, 40
      %v4195 = vpop.permute.xlu0 %4194
      %4196 = vrot.lane.b32.xlu0 %v4108, 40
      %v4197 = vpop.permute.xlu0 %4196
      %4198 = vrot.lane.b32.xlu0 %v4109, 40
      %v4199 = vpop.permute.xlu0 %4198
      %4200 = vrot.lane.b32.xlu0 %v4110, 40
      %v4201 = vpop.permute.xlu0 %4200
      %4202 = vrot.lane.b32.xlu0 %v4111, 40
      %v4203 = vpop.permute.xlu0 %4202
      %4204 = vrot.lane.b32.xlu0 %v4112, 40
      %v4205 = vpop.permute.xlu0 %4204
      %4206 = vrot.lane.b32.xlu0 %v4113, 40
      %v4207 = vpop.permute.xlu0 %4206
      %4208 = vrot.lane.b32.xlu0 %v4114, 40
      %v4209 = vpop.permute.xlu0 %4208
      %4210 = vrot.lane.b32.xlu0 %v4115, 40
      %v4211 = vpop.permute.xlu0 %4210
      %vm4244 = vcmask 392512
      %4245 = vst.msk [vmem:[#allocation4] sm:$0xff] %vm4244, %v4149
      %4246 = vst.msk [vmem:[#allocation4 + $0x10] sm:$0xff] %vm4244, %v4151
      %4247 = vst.msk [vmem:[#allocation4 + $0x20] sm:$0xff] %vm4244, %v4153
      %4248 = vst.msk [vmem:[#allocation4 + $0x30] sm:$0xff] %vm4244, %v4155
      %4249 = vst.msk [vmem:[#allocation4 + $0x40] sm:$0xff] %vm4244, %v4157
      %4250 = vst.msk [vmem:[#allocation4 + $0x50] sm:$0xff] %vm4244, %v4159
      %4251 = vst.msk [vmem:[#allocation4 + $0x60] sm:$0xff] %vm4244, %v4161
      %4252 = vst.msk [vmem:[#allocation4 + $0x70] sm:$0xff] %vm4244, %v4163
      %4253 = vst.msk [vmem:[#allocation4 + $0x80] sm:$0xff] %vm4244, %v4165
      %4254 = vst.msk [vmem:[#allocation4 + $0x90] sm:$0xff] %vm4244, %v4167
      %4255 = vst.msk [vmem:[#allocation4 + $0xa0] sm:$0xff] %vm4244, %v4169
      %4256 = vst.msk [vmem:[#allocation4 + $0xb0] sm:$0xff] %vm4244, %v4171
      %4257 = vst.msk [vmem:[#allocation4 + $0xc0] sm:$0xff] %vm4244, %v4173
      %4258 = vst.msk [vmem:[#allocation4 + $0xd0] sm:$0xff] %vm4244, %v4175
      %4259 = vst.msk [vmem:[#allocation4 + $0xe0] sm:$0xff] %vm4244, %v4177
      %4260 = vst.msk [vmem:[#allocation4 + $0xf0] sm:$0xff] %vm4244, %v4179
      %4261 = vst.msk [vmem:[#allocation4 + $0x100] sm:$0xff] %vm4244, %v4181
      %4262 = vst.msk [vmem:[#allocation4 + $0x110] sm:$0xff] %vm4244, %v4183
      %4263 = vst.msk [vmem:[#allocation4 + $0x120] sm:$0xff] %vm4244, %v4185
      %4264 = vst.msk [vmem:[#allocation4 + $0x130] sm:$0xff] %vm4244, %v4187
      %4265 = vst.msk [vmem:[#allocation4 + $0x140] sm:$0xff] %vm4244, %v4189
      %4266 = vst.msk [vmem:[#allocation4 + $0x150] sm:$0xff] %vm4244, %v4191
      %4267 = vst.msk [vmem:[#allocation4 + $0x160] sm:$0xff] %vm4244, %v4193
      %4268 = vst.msk [vmem:[#allocation4 + $0x170] sm:$0xff] %vm4244, %v4195
      %4269 = vst.msk [vmem:[#allocation4 + $0x180] sm:$0xff] %vm4244, %v4197
      %4270 = vst.msk [vmem:[#allocation4 + $0x190] sm:$0xff] %vm4244, %v4199
      %4271 = vst.msk [vmem:[#allocation4 + $0x1a0] sm:$0xff] %vm4244, %v4201
      %4272 = vst.msk [vmem:[#allocation4 + $0x1b0] sm:$0xff] %vm4244, %v4203
      %4273 = vst.msk [vmem:[#allocation4 + $0x1c0] sm:$0xff] %vm4244, %v4205
      %4274 = vst.msk [vmem:[#allocation4 + $0x1d0] sm:$0xff] %vm4244, %v4207
      %4275 = vst.msk [vmem:[#allocation4 + $0x1e0] sm:$0xff] %vm4244, %v4209
      %4276 = vst.msk [vmem:[#allocation4 + $0x1f0] sm:$0xff] %vm4244, %v4211
      %s4277 = scalar_lea.vmem [#allocation3], 48
      %v4278 = vld [vmem:[%s4277] sm:$0xff]
      %v4279 = vld [vmem:[%s4277 + $0x8] sm:$0xff]
      %v4280 = vld [vmem:[%s4277 + $0x18] sm:$0xff]
      %v4281 = vld [vmem:[%s4277 + $0x20] sm:$0xff]
      %v4282 = vld [vmem:[%s4277 + $0x30] sm:$0xff]
      %v4283 = vld [vmem:[%s4277 + $0x38] sm:$0xff]
      %v4284 = vld [vmem:[%s4277 + $0x48] sm:$0xff]
      %v4285 = vld [vmem:[%s4277 + $0x50] sm:$0xff]
      %v4286 = vld [vmem:[%s4277 + $0x60] sm:$0xff]
      %v4287 = vld [vmem:[%s4277 + $0x68] sm:$0xff]
      %v4288 = vld [vmem:[%s4277 + $0x78] sm:$0xff]
      %v4289 = vld [vmem:[%s4277 + $0x80] sm:$0xff]
      %v4290 = vld [vmem:[%s4277 + $0x90] sm:$0xff]
      %v4291 = vld [vmem:[%s4277 + $0x98] sm:$0xff]
      %v4292 = vld [vmem:[%s4277 + $0xa8] sm:$0xff]
      %v4293 = vld [vmem:[%s4277 + $0xb0] sm:$0xff]
      %v4294 = vld [vmem:[%s4277 + $0xc0] sm:$0xff]
      %v4295 = vld [vmem:[%s4277 + $0xc8] sm:$0xff]
      %v4296 = vld [vmem:[%s4277 + $0xd8] sm:$0xff]
      %v4297 = vld [vmem:[%s4277 + $0xe0] sm:$0xff]
      %v4298 = vld [vmem:[%s4277 + $0xf0] sm:$0xff]
      %v4299 = vld [vmem:[%s4277 + $0xf8] sm:$0xff]
      %v4300 = vld [vmem:[%s4277 + $0x108] sm:$0xff]
      %v4301 = vld [vmem:[%s4277 + $0x110] sm:$0xff]
      %v4302 = vld [vmem:[%s4277 + $0x120] sm:$0xff]
      %v4303 = vld [vmem:[%s4277 + $0x128] sm:$0xff]
      %v4304 = vld [vmem:[%s4277 + $0x138] sm:$0xff]
      %v4305 = vld [vmem:[%s4277 + $0x140] sm:$0xff]
      %v4306 = vld [vmem:[%s4277 + $0x150] sm:$0xff]
      %v4307 = vld [vmem:[%s4277 + $0x158] sm:$0xff]
      %v4308 = vld [vmem:[%s4277 + $0x168] sm:$0xff]
      %v4309 = vld [vmem:[%s4277 + $0x170] sm:$0xff]
      %4342 = vrot.lane.b32.xlu0 %v4278, 48
      %v4343 = vpop.permute.xlu0 %4342
      %4344 = vrot.lane.b32.xlu0 %v4279, 48
      %v4345 = vpop.permute.xlu0 %4344
      %4346 = vrot.lane.b32.xlu0 %v4280, 48
      %v4347 = vpop.permute.xlu0 %4346
      %4348 = vrot.lane.b32.xlu0 %v4281, 48
      %v4349 = vpop.permute.xlu0 %4348
      %4350 = vrot.lane.b32.xlu0 %v4282, 48
      %v4351 = vpop.permute.xlu0 %4350
      %4352 = vrot.lane.b32.xlu0 %v4283, 48
      %v4353 = vpop.permute.xlu0 %4352
      %4354 = vrot.lane.b32.xlu0 %v4284, 48
      %v4355 = vpop.permute.xlu0 %4354
      %4356 = vrot.lane.b32.xlu0 %v4285, 48
      %v4357 = vpop.permute.xlu0 %4356
      %4358 = vrot.lane.b32.xlu0 %v4286, 48
      %v4359 = vpop.permute.xlu0 %4358
      %4360 = vrot.lane.b32.xlu0 %v4287, 48
      %v4361 = vpop.permute.xlu0 %4360
      %4362 = vrot.lane.b32.xlu0 %v4288, 48
      %v4363 = vpop.permute.xlu0 %4362
      %4364 = vrot.lane.b32.xlu0 %v4289, 48
      %v4365 = vpop.permute.xlu0 %4364
      %4366 = vrot.lane.b32.xlu0 %v4290, 48
      %v4367 = vpop.permute.xlu0 %4366
      %4368 = vrot.lane.b32.xlu0 %v4291, 48
      %v4369 = vpop.permute.xlu0 %4368
      %4370 = vrot.lane.b32.xlu0 %v4292, 48
      %v4371 = vpop.permute.xlu0 %4370
      %4372 = vrot.lane.b32.xlu0 %v4293, 48
      %v4373 = vpop.permute.xlu0 %4372
      %4374 = vrot.lane.b32.xlu0 %v4294, 48
      %v4375 = vpop.permute.xlu0 %4374
      %4376 = vrot.lane.b32.xlu0 %v4295, 48
      %v4377 = vpop.permute.xlu0 %4376
      %4378 = vrot.lane.b32.xlu0 %v4296, 48
      %v4379 = vpop.permute.xlu0 %4378
      %4380 = vrot.lane.b32.xlu0 %v4297, 48
      %v4381 = vpop.permute.xlu0 %4380
      %4382 = vrot.lane.b32.xlu0 %v4298, 48
      %v4383 = vpop.permute.xlu0 %4382
      %4384 = vrot.lane.b32.xlu0 %v4299, 48
      %v4385 = vpop.permute.xlu0 %4384
      %4386 = vrot.lane.b32.xlu0 %v4300, 48
      %v4387 = vpop.permute.xlu0 %4386
      %4388 = vrot.lane.b32.xlu0 %v4301, 48
      %v4389 = vpop.permute.xlu0 %4388
      %4390 = vrot.lane.b32.xlu0 %v4302, 48
      %v4391 = vpop.permute.xlu0 %4390
      %4392 = vrot.lane.b32.xlu0 %v4303, 48
      %v4393 = vpop.permute.xlu0 %4392
      %4394 = vrot.lane.b32.xlu0 %v4304, 48
      %v4395 = vpop.permute.xlu0 %4394
      %4396 = vrot.lane.b32.xlu0 %v4305, 48
      %v4397 = vpop.permute.xlu0 %4396
      %4398 = vrot.lane.b32.xlu0 %v4306, 48
      %v4399 = vpop.permute.xlu0 %4398
      %4400 = vrot.lane.b32.xlu0 %v4307, 48
      %v4401 = vpop.permute.xlu0 %4400
      %4402 = vrot.lane.b32.xlu0 %v4308, 48
      %v4403 = vpop.permute.xlu0 %4402
      %4404 = vrot.lane.b32.xlu0 %v4309, 48
      %v4405 = vpop.permute.xlu0 %4404
      %vm4438 = vcmask 458112
      %4439 = vst.msk [vmem:[#allocation4] sm:$0xff] %vm4438, %v4343
      %4440 = vst.msk [vmem:[#allocation4 + $0x10] sm:$0xff] %vm4438, %v4345
      %4441 = vst.msk [vmem:[#allocation4 + $0x20] sm:$0xff] %vm4438, %v4347
      %4442 = vst.msk [vmem:[#allocation4 + $0x30] sm:$0xff] %vm4438, %v4349
      %4443 = vst.msk [vmem:[#allocation4 + $0x40] sm:$0xff] %vm4438, %v4351
      %4444 = vst.msk [vmem:[#allocation4 + $0x50] sm:$0xff] %vm4438, %v4353
      %4445 = vst.msk [vmem:[#allocation4 + $0x60] sm:$0xff] %vm4438, %v4355
      %4446 = vst.msk [vmem:[#allocation4 + $0x70] sm:$0xff] %vm4438, %v4357
      %4447 = vst.msk [vmem:[#allocation4 + $0x80] sm:$0xff] %vm4438, %v4359
      %4448 = vst.msk [vmem:[#allocation4 + $0x90] sm:$0xff] %vm4438, %v4361
      %4449 = vst.msk [vmem:[#allocation4 + $0xa0] sm:$0xff] %vm4438, %v4363
      %4450 = vst.msk [vmem:[#allocation4 + $0xb0] sm:$0xff] %vm4438, %v4365
      %4451 = vst.msk [vmem:[#allocation4 + $0xc0] sm:$0xff] %vm4438, %v4367
      %4452 = vst.msk [vmem:[#allocation4 + $0xd0] sm:$0xff] %vm4438, %v4369
      %4453 = vst.msk [vmem:[#allocation4 + $0xe0] sm:$0xff] %vm4438, %v4371
      %4454 = vst.msk [vmem:[#allocation4 + $0xf0] sm:$0xff] %vm4438, %v4373
      %4455 = vst.msk [vmem:[#allocation4 + $0x100] sm:$0xff] %vm4438, %v4375
      %4456 = vst.msk [vmem:[#allocation4 + $0x110] sm:$0xff] %vm4438, %v4377
      %4457 = vst.msk [vmem:[#allocation4 + $0x120] sm:$0xff] %vm4438, %v4379
      %4458 = vst.msk [vmem:[#allocation4 + $0x130] sm:$0xff] %vm4438, %v4381
      %4459 = vst.msk [vmem:[#allocation4 + $0x140] sm:$0xff] %vm4438, %v4383
      %4460 = vst.msk [vmem:[#allocation4 + $0x150] sm:$0xff] %vm4438, %v4385
      %4461 = vst.msk [vmem:[#allocation4 + $0x160] sm:$0xff] %vm4438, %v4387
      %4462 = vst.msk [vmem:[#allocation4 + $0x170] sm:$0xff] %vm4438, %v4389
      %4463 = vst.msk [vmem:[#allocation4 + $0x180] sm:$0xff] %vm4438, %v4391
      %4464 = vst.msk [vmem:[#allocation4 + $0x190] sm:$0xff] %vm4438, %v4393
      %4465 = vst.msk [vmem:[#allocation4 + $0x1a0] sm:$0xff] %vm4438, %v4395
      %4466 = vst.msk [vmem:[#allocation4 + $0x1b0] sm:$0xff] %vm4438, %v4397
      %4467 = vst.msk [vmem:[#allocation4 + $0x1c0] sm:$0xff] %vm4438, %v4399
      %4468 = vst.msk [vmem:[#allocation4 + $0x1d0] sm:$0xff] %vm4438, %v4401
      %4469 = vst.msk [vmem:[#allocation4 + $0x1e0] sm:$0xff] %vm4438, %v4403
      %4470 = vst.msk [vmem:[#allocation4 + $0x1f0] sm:$0xff] %vm4438, %v4405
      %v4471 = vld [vmem:[%s4277 + $0x1] sm:$0xff]
      %v4472 = vld [vmem:[%s4277 + $0x9] sm:$0xff]
      %v4473 = vld [vmem:[%s4277 + $0x19] sm:$0xff]
      %v4474 = vld [vmem:[%s4277 + $0x21] sm:$0xff]
      %v4475 = vld [vmem:[%s4277 + $0x31] sm:$0xff]
      %v4476 = vld [vmem:[%s4277 + $0x39] sm:$0xff]
      %v4477 = vld [vmem:[%s4277 + $0x49] sm:$0xff]
      %v4478 = vld [vmem:[%s4277 + $0x51] sm:$0xff]
      %v4479 = vld [vmem:[%s4277 + $0x61] sm:$0xff]
      %v4480 = vld [vmem:[%s4277 + $0x69] sm:$0xff]
      %v4481 = vld [vmem:[%s4277 + $0x79] sm:$0xff]
      %v4482 = vld [vmem:[%s4277 + $0x81] sm:$0xff]
      %v4483 = vld [vmem:[%s4277 + $0x91] sm:$0xff]
      %v4484 = vld [vmem:[%s4277 + $0x99] sm:$0xff]
      %v4485 = vld [vmem:[%s4277 + $0xa9] sm:$0xff]
      %v4486 = vld [vmem:[%s4277 + $0xb1] sm:$0xff]
      %v4487 = vld [vmem:[%s4277 + $0xc1] sm:$0xff]
      %v4488 = vld [vmem:[%s4277 + $0xc9] sm:$0xff]
      %v4489 = vld [vmem:[%s4277 + $0xd9] sm:$0xff]
      %v4490 = vld [vmem:[%s4277 + $0xe1] sm:$0xff]
      %v4491 = vld [vmem:[%s4277 + $0xf1] sm:$0xff]
      %v4492 = vld [vmem:[%s4277 + $0xf9] sm:$0xff]
      %v4493 = vld [vmem:[%s4277 + $0x109] sm:$0xff]
      %v4494 = vld [vmem:[%s4277 + $0x111] sm:$0xff]
      %v4495 = vld [vmem:[%s4277 + $0x121] sm:$0xff]
      %v4496 = vld [vmem:[%s4277 + $0x129] sm:$0xff]
      %v4497 = vld [vmem:[%s4277 + $0x139] sm:$0xff]
      %v4498 = vld [vmem:[%s4277 + $0x141] sm:$0xff]
      %v4499 = vld [vmem:[%s4277 + $0x151] sm:$0xff]
      %v4500 = vld [vmem:[%s4277 + $0x159] sm:$0xff]
      %v4501 = vld [vmem:[%s4277 + $0x169] sm:$0xff]
      %v4502 = vld [vmem:[%s4277 + $0x171] sm:$0xff]
      %4535 = vrot.lane.b32.xlu0 %v4471, 56
      %v4536 = vpop.permute.xlu0 %4535
      %4537 = vrot.lane.b32.xlu0 %v4472, 56
      %v4538 = vpop.permute.xlu0 %4537
      %4539 = vrot.lane.b32.xlu0 %v4473, 56
      %v4540 = vpop.permute.xlu0 %4539
      %4541 = vrot.lane.b32.xlu0 %v4474, 56
      %v4542 = vpop.permute.xlu0 %4541
      %4543 = vrot.lane.b32.xlu0 %v4475, 56
      %v4544 = vpop.permute.xlu0 %4543
      %4545 = vrot.lane.b32.xlu0 %v4476, 56
      %v4546 = vpop.permute.xlu0 %4545
      %4547 = vrot.lane.b32.xlu0 %v4477, 56
      %v4548 = vpop.permute.xlu0 %4547
      %4549 = vrot.lane.b32.xlu0 %v4478, 56
      %v4550 = vpop.permute.xlu0 %4549
      %4551 = vrot.lane.b32.xlu0 %v4479, 56
      %v4552 = vpop.permute.xlu0 %4551
      %4553 = vrot.lane.b32.xlu0 %v4480, 56
      %v4554 = vpop.permute.xlu0 %4553
      %4555 = vrot.lane.b32.xlu0 %v4481, 56
      %v4556 = vpop.permute.xlu0 %4555
      %4557 = vrot.lane.b32.xlu0 %v4482, 56
      %v4558 = vpop.permute.xlu0 %4557
      %4559 = vrot.lane.b32.xlu0 %v4483, 56
      %v4560 = vpop.permute.xlu0 %4559
      %4561 = vrot.lane.b32.xlu0 %v4484, 56
      %v4562 = vpop.permute.xlu0 %4561
      %4563 = vrot.lane.b32.xlu0 %v4485, 56
      %v4564 = vpop.permute.xlu0 %4563
      %4565 = vrot.lane.b32.xlu0 %v4486, 56
      %v4566 = vpop.permute.xlu0 %4565
      %4567 = vrot.lane.b32.xlu0 %v4487, 56
      %v4568 = vpop.permute.xlu0 %4567
      %4569 = vrot.lane.b32.xlu0 %v4488, 56
      %v4570 = vpop.permute.xlu0 %4569
      %4571 = vrot.lane.b32.xlu0 %v4489, 56
      %v4572 = vpop.permute.xlu0 %4571
      %4573 = vrot.lane.b32.xlu0 %v4490, 56
      %v4574 = vpop.permute.xlu0 %4573
      %4575 = vrot.lane.b32.xlu0 %v4491, 56
      %v4576 = vpop.permute.xlu0 %4575
      %4577 = vrot.lane.b32.xlu0 %v4492, 56
      %v4578 = vpop.permute.xlu0 %4577
      %4579 = vrot.lane.b32.xlu0 %v4493, 56
      %v4580 = vpop.permute.xlu0 %4579
      %4581 = vrot.lane.b32.xlu0 %v4494, 56
      %v4582 = vpop.permute.xlu0 %4581
      %4583 = vrot.lane.b32.xlu0 %v4495, 56
      %v4584 = vpop.permute.xlu0 %4583
      %4585 = vrot.lane.b32.xlu0 %v4496, 56
      %v4586 = vpop.permute.xlu0 %4585
      %4587 = vrot.lane.b32.xlu0 %v4497, 56
      %v4588 = vpop.permute.xlu0 %4587
      %4589 = vrot.lane.b32.xlu0 %v4498, 56
      %v4590 = vpop.permute.xlu0 %4589
      %4591 = vrot.lane.b32.xlu0 %v4499, 56
      %v4592 = vpop.permute.xlu0 %4591
      %4593 = vrot.lane.b32.xlu0 %v4500, 56
      %v4594 = vpop.permute.xlu0 %4593
      %4595 = vrot.lane.b32.xlu0 %v4501, 56
      %v4596 = vpop.permute.xlu0 %4595
      %4597 = vrot.lane.b32.xlu0 %v4502, 56
      %v4598 = vpop.permute.xlu0 %4597
      %vm4631 = vcmask 523712
      %4632 = vst.msk [vmem:[#allocation4] sm:$0xff] %vm4631, %v4536
      %4633 = vst.msk [vmem:[#allocation4 + $0x10] sm:$0xff] %vm4631, %v4538
      %4634 = vst.msk [vmem:[#allocation4 + $0x20] sm:$0xff] %vm4631, %v4540
      %4635 = vst.msk [vmem:[#allocation4 + $0x30] sm:$0xff] %vm4631, %v4542
      %4636 = vst.msk [vmem:[#allocation4 + $0x40] sm:$0xff] %vm4631, %v4544
      %4637 = vst.msk [vmem:[#allocation4 + $0x50] sm:$0xff] %vm4631, %v4546
      %4638 = vst.msk [vmem:[#allocation4 + $0x60] sm:$0xff] %vm4631, %v4548
      %4639 = vst.msk [vmem:[#allocation4 + $0x70] sm:$0xff] %vm4631, %v4550
      %4640 = vst.msk [vmem:[#allocation4 + $0x80] sm:$0xff] %vm4631, %v4552
      %4641 = vst.msk [vmem:[#allocation4 + $0x90] sm:$0xff] %vm4631, %v4554
      %4642 = vst.msk [vmem:[#allocation4 + $0xa0] sm:$0xff] %vm4631, %v4556
      %4643 = vst.msk [vmem:[#allocation4 + $0xb0] sm:$0xff] %vm4631, %v4558
      %4644 = vst.msk [vmem:[#allocation4 + $0xc0] sm:$0xff] %vm4631, %v4560
      %4645 = vst.msk [vmem:[#allocation4 + $0xd0] sm:$0xff] %vm4631, %v4562
      %4646 = vst.msk [vmem:[#allocation4 + $0xe0] sm:$0xff] %vm4631, %v4564
      %4647 = vst.msk [vmem:[#allocation4 + $0xf0] sm:$0xff] %vm4631, %v4566
      %4648 = vst.msk [vmem:[#allocation4 + $0x100] sm:$0xff] %vm4631, %v4568
      %4649 = vst.msk [vmem:[#allocation4 + $0x110] sm:$0xff] %vm4631, %v4570
      %4650 = vst.msk [vmem:[#allocation4 + $0x120] sm:$0xff] %vm4631, %v4572
      %4651 = vst.msk [vmem:[#allocation4 + $0x130] sm:$0xff] %vm4631, %v4574
      %4652 = vst.msk [vmem:[#allocation4 + $0x140] sm:$0xff] %vm4631, %v4576
      %4653 = vst.msk [vmem:[#allocation4 + $0x150] sm:$0xff] %vm4631, %v4578
      %4654 = vst.msk [vmem:[#allocation4 + $0x160] sm:$0xff] %vm4631, %v4580
      %4655 = vst.msk [vmem:[#allocation4 + $0x170] sm:$0xff] %vm4631, %v4582
      %4656 = vst.msk [vmem:[#allocation4 + $0x180] sm:$0xff] %vm4631, %v4584
      %4657 = vst.msk [vmem:[#allocation4 + $0x190] sm:$0xff] %vm4631, %v4586
      %4658 = vst.msk [vmem:[#allocation4 + $0x1a0] sm:$0xff] %vm4631, %v4588
      %4659 = vst.msk [vmem:[#allocation4 + $0x1b0] sm:$0xff] %vm4631, %v4590
      %4660 = vst.msk [vmem:[#allocation4 + $0x1c0] sm:$0xff] %vm4631, %v4592
      %4661 = vst.msk [vmem:[#allocation4 + $0x1d0] sm:$0xff] %vm4631, %v4594
      %4662 = vst.msk [vmem:[#allocation4 + $0x1e0] sm:$0xff] %vm4631, %v4596
      %4663 = vst.msk [vmem:[#allocation4 + $0x1f0] sm:$0xff] %vm4631, %v4598
      %v4664 = vld [vmem:[%s4277 + $0x2] sm:$0xff]
      %v4665 = vld [vmem:[%s4277 + $0xa] sm:$0xff]
      %v4666 = vld [vmem:[%s4277 + $0x1a] sm:$0xff]
      %v4667 = vld [vmem:[%s4277 + $0x22] sm:$0xff]
      %v4668 = vld [vmem:[%s4277 + $0x32] sm:$0xff]
      %v4669 = vld [vmem:[%s4277 + $0x3a] sm:$0xff]
      %v4670 = vld [vmem:[%s4277 + $0x4a] sm:$0xff]
      %v4671 = vld [vmem:[%s4277 + $0x52] sm:$0xff]
      %v4672 = vld [vmem:[%s4277 + $0x62] sm:$0xff]
      %v4673 = vld [vmem:[%s4277 + $0x6a] sm:$0xff]
      %v4674 = vld [vmem:[%s4277 + $0x7a] sm:$0xff]
      %v4675 = vld [vmem:[%s4277 + $0x82] sm:$0xff]
      %v4676 = vld [vmem:[%s4277 + $0x92] sm:$0xff]
      %v4677 = vld [vmem:[%s4277 + $0x9a] sm:$0xff]
      %v4678 = vld [vmem:[%s4277 + $0xaa] sm:$0xff]
      %v4679 = vld [vmem:[%s4277 + $0xb2] sm:$0xff]
      %v4680 = vld [vmem:[%s4277 + $0xc2] sm:$0xff]
      %v4681 = vld [vmem:[%s4277 + $0xca] sm:$0xff]
      %v4682 = vld [vmem:[%s4277 + $0xda] sm:$0xff]
      %v4683 = vld [vmem:[%s4277 + $0xe2] sm:$0xff]
      %v4684 = vld [vmem:[%s4277 + $0xf2] sm:$0xff]
      %v4685 = vld [vmem:[%s4277 + $0xfa] sm:$0xff]
      %v4686 = vld [vmem:[%s4277 + $0x10a] sm:$0xff]
      %v4687 = vld [vmem:[%s4277 + $0x112] sm:$0xff]
      %v4688 = vld [vmem:[%s4277 + $0x122] sm:$0xff]
      %v4689 = vld [vmem:[%s4277 + $0x12a] sm:$0xff]
      %v4690 = vld [vmem:[%s4277 + $0x13a] sm:$0xff]
      %v4691 = vld [vmem:[%s4277 + $0x142] sm:$0xff]
      %v4692 = vld [vmem:[%s4277 + $0x152] sm:$0xff]
      %v4693 = vld [vmem:[%s4277 + $0x15a] sm:$0xff]
      %v4694 = vld [vmem:[%s4277 + $0x16a] sm:$0xff]
      %v4695 = vld [vmem:[%s4277 + $0x172] sm:$0xff]
      %4728 = vrot.lane.b32.xlu0 %v4664, 64
      %v4729 = vpop.permute.xlu0 %4728
      %4730 = vrot.lane.b32.xlu0 %v4665, 64
      %v4731 = vpop.permute.xlu0 %4730
      %4732 = vrot.lane.b32.xlu0 %v4666, 64
      %v4733 = vpop.permute.xlu0 %4732
      %4734 = vrot.lane.b32.xlu0 %v4667, 64
      %v4735 = vpop.permute.xlu0 %4734
      %4736 = vrot.lane.b32.xlu0 %v4668, 64
      %v4737 = vpop.permute.xlu0 %4736
      %4738 = vrot.lane.b32.xlu0 %v4669, 64
      %v4739 = vpop.permute.xlu0 %4738
      %4740 = vrot.lane.b32.xlu0 %v4670, 64
      %v4741 = vpop.permute.xlu0 %4740
      %4742 = vrot.lane.b32.xlu0 %v4671, 64
      %v4743 = vpop.permute.xlu0 %4742
      %4744 = vrot.lane.b32.xlu0 %v4672, 64
      %v4745 = vpop.permute.xlu0 %4744
      %4746 = vrot.lane.b32.xlu0 %v4673, 64
      %v4747 = vpop.permute.xlu0 %4746
      %4748 = vrot.lane.b32.xlu0 %v4674, 64
      %v4749 = vpop.permute.xlu0 %4748
      %4750 = vrot.lane.b32.xlu0 %v4675, 64
      %v4751 = vpop.permute.xlu0 %4750
      %4752 = vrot.lane.b32.xlu0 %v4676, 64
      %v4753 = vpop.permute.xlu0 %4752
      %4754 = vrot.lane.b32.xlu0 %v4677, 64
      %v4755 = vpop.permute.xlu0 %4754
      %4756 = vrot.lane.b32.xlu0 %v4678, 64
      %v4757 = vpop.permute.xlu0 %4756
      %4758 = vrot.lane.b32.xlu0 %v4679, 64
      %v4759 = vpop.permute.xlu0 %4758
      %4760 = vrot.lane.b32.xlu0 %v4680, 64
      %v4761 = vpop.permute.xlu0 %4760
      %4762 = vrot.lane.b32.xlu0 %v4681, 64
      %v4763 = vpop.permute.xlu0 %4762
      %4764 = vrot.lane.b32.xlu0 %v4682, 64
      %v4765 = vpop.permute.xlu0 %4764
      %4766 = vrot.lane.b32.xlu0 %v4683, 64
      %v4767 = vpop.permute.xlu0 %4766
      %4768 = vrot.lane.b32.xlu0 %v4684, 64
      %v4769 = vpop.permute.xlu0 %4768
      %4770 = vrot.lane.b32.xlu0 %v4685, 64
      %v4771 = vpop.permute.xlu0 %4770
      %4772 = vrot.lane.b32.xlu0 %v4686, 64
      %v4773 = vpop.permute.xlu0 %4772
      %4774 = vrot.lane.b32.xlu0 %v4687, 64
      %v4775 = vpop.permute.xlu0 %4774
      %4776 = vrot.lane.b32.xlu0 %v4688, 64
      %v4777 = vpop.permute.xlu0 %4776
      %4778 = vrot.lane.b32.xlu0 %v4689, 64
      %v4779 = vpop.permute.xlu0 %4778
      %4780 = vrot.lane.b32.xlu0 %v4690, 64
      %v4781 = vpop.permute.xlu0 %4780
      %4782 = vrot.lane.b32.xlu0 %v4691, 64
      %v4783 = vpop.permute.xlu0 %4782
      %4784 = vrot.lane.b32.xlu0 %v4692, 64
      %v4785 = vpop.permute.xlu0 %4784
      %4786 = vrot.lane.b32.xlu0 %v4693, 64
      %v4787 = vpop.permute.xlu0 %4786
      %4788 = vrot.lane.b32.xlu0 %v4694, 64
      %v4789 = vpop.permute.xlu0 %4788
      %4790 = vrot.lane.b32.xlu0 %v4695, 64
      %v4791 = vpop.permute.xlu0 %4790
      %vm4824 = vcmask 589312
      %4825 = vst.msk [vmem:[#allocation4] sm:$0xff] %vm4824, %v4729
      %4826 = vst.msk [vmem:[#allocation4 + $0x10] sm:$0xff] %vm4824, %v4731
      %4827 = vst.msk [vmem:[#allocation4 + $0x20] sm:$0xff] %vm4824, %v4733
      %4828 = vst.msk [vmem:[#allocation4 + $0x30] sm:$0xff] %vm4824, %v4735
      %4829 = vst.msk [vmem:[#allocation4 + $0x40] sm:$0xff] %vm4824, %v4737
      %4830 = vst.msk [vmem:[#allocation4 + $0x50] sm:$0xff] %vm4824, %v4739
      %4831 = vst.msk [vmem:[#allocation4 + $0x60] sm:$0xff] %vm4824, %v4741
      %4832 = vst.msk [vmem:[#allocation4 + $0x70] sm:$0xff] %vm4824, %v4743
      %4833 = vst.msk [vmem:[#allocation4 + $0x80] sm:$0xff] %vm4824, %v4745
      %4834 = vst.msk [vmem:[#allocation4 + $0x90] sm:$0xff] %vm4824, %v4747
      %4835 = vst.msk [vmem:[#allocation4 + $0xa0] sm:$0xff] %vm4824, %v4749
      %4836 = vst.msk [vmem:[#allocation4 + $0xb0] sm:$0xff] %vm4824, %v4751
      %4837 = vst.msk [vmem:[#allocation4 + $0xc0] sm:$0xff] %vm4824, %v4753
      %4838 = vst.msk [vmem:[#allocation4 + $0xd0] sm:$0xff] %vm4824, %v4755
      %4839 = vst.msk [vmem:[#allocation4 + $0xe0] sm:$0xff] %vm4824, %v4757
      %4840 = vst.msk [vmem:[#allocation4 + $0xf0] sm:$0xff] %vm4824, %v4759
      %4841 = vst.msk [vmem:[#allocation4 + $0x100] sm:$0xff] %vm4824, %v4761
      %4842 = vst.msk [vmem:[#allocation4 + $0x110] sm:$0xff] %vm4824, %v4763
      %4843 = vst.msk [vmem:[#allocation4 + $0x120] sm:$0xff] %vm4824, %v4765
      %4844 = vst.msk [vmem:[#allocation4 + $0x130] sm:$0xff] %vm4824, %v4767
      %4845 = vst.msk [vmem:[#allocation4 + $0x140] sm:$0xff] %vm4824, %v4769
      %4846 = vst.msk [vmem:[#allocation4 + $0x150] sm:$0xff] %vm4824, %v4771
      %4847 = vst.msk [vmem:[#allocation4 + $0x160] sm:$0xff] %vm4824, %v4773
      %4848 = vst.msk [vmem:[#allocation4 + $0x170] sm:$0xff] %vm4824, %v4775
      %4849 = vst.msk [vmem:[#allocation4 + $0x180] sm:$0xff] %vm4824, %v4777
      %4850 = vst.msk [vmem:[#allocation4 + $0x190] sm:$0xff] %vm4824, %v4779
      %4851 = vst.msk [vmem:[#allocation4 + $0x1a0] sm:$0xff] %vm4824, %v4781
      %4852 = vst.msk [vmem:[#allocation4 + $0x1b0] sm:$0xff] %vm4824, %v4783
      %4853 = vst.msk [vmem:[#allocation4 + $0x1c0] sm:$0xff] %vm4824, %v4785
      %4854 = vst.msk [vmem:[#allocation4 + $0x1d0] sm:$0xff] %vm4824, %v4787
      %4855 = vst.msk [vmem:[#allocation4 + $0x1e0] sm:$0xff] %vm4824, %v4789
      %4856 = vst.msk [vmem:[#allocation4 + $0x1f0] sm:$0xff] %vm4824, %v4791
      %v4857 = vld [vmem:[#allocation4] sm:$0xff]
      %v4858 = vld [vmem:[#allocation4 + $0x10] sm:$0xff]
      %v4859 = vld [vmem:[#allocation4 + $0x20] sm:$0xff]
      %v4860 = vld [vmem:[#allocation4 + $0x30] sm:$0xff]
      %v4861 = vld [vmem:[#allocation4 + $0x40] sm:$0xff]
      %v4862 = vld [vmem:[#allocation4 + $0x50] sm:$0xff]
      %v4863 = vld [vmem:[#allocation4 + $0x60] sm:$0xff]
      %v4864 = vld [vmem:[#allocation4 + $0x70] sm:$0xff]
      %v4865 = vld [vmem:[#allocation4 + $0x80] sm:$0xff]
      %v4866 = vld [vmem:[#allocation4 + $0x90] sm:$0xff]
      %v4867 = vld [vmem:[#allocation4 + $0xa0] sm:$0xff]
      %v4868 = vld [vmem:[#allocation4 + $0xb0] sm:$0xff]
      %v4869 = vld [vmem:[#allocation4 + $0xc0] sm:$0xff]
      %v4870 = vld [vmem:[#allocation4 + $0xd0] sm:$0xff]
      %v4871 = vld [vmem:[#allocation4 + $0xe0] sm:$0xff]
      %v4872 = vld [vmem:[#allocation4 + $0xf0] sm:$0xff]
      %v4873 = vld [vmem:[#allocation4 + $0x100] sm:$0xff]
      %v4874 = vld [vmem:[#allocation4 + $0x110] sm:$0xff]
      %v4875 = vld [vmem:[#allocation4 + $0x120] sm:$0xff]
      %v4876 = vld [vmem:[#allocation4 + $0x130] sm:$0xff]
      %v4877 = vld [vmem:[#allocation4 + $0x140] sm:$0xff]
      %v4878 = vld [vmem:[#allocation4 + $0x150] sm:$0xff]
      %v4879 = vld [vmem:[#allocation4 + $0x160] sm:$0xff]
      %v4880 = vld [vmem:[#allocation4 + $0x170] sm:$0xff]
      %v4881 = vld [vmem:[#allocation4 + $0x180] sm:$0xff]
      %v4882 = vld [vmem:[#allocation4 + $0x190] sm:$0xff]
      %v4883 = vld [vmem:[#allocation4 + $0x1a0] sm:$0xff]
      %v4884 = vld [vmem:[#allocation4 + $0x1b0] sm:$0xff]
      %v4885 = vld [vmem:[#allocation4 + $0x1c0] sm:$0xff]
      %v4886 = vld [vmem:[#allocation4 + $0x1d0] sm:$0xff]
      %v4887 = vld [vmem:[#allocation4 + $0x1e0] sm:$0xff]
      %v4888 = vld [vmem:[#allocation4 + $0x1f0] sm:$0xff]
      %v4889 = vld [vmem:[%s9] sm:$0xff]
      %v4890 = vld [vmem:[%s9 + $0x8] sm:$0xff]
      %v4891 = vld [vmem:[%s9 + $0x10] sm:$0xff]
      %v4892 = vld [vmem:[%s9 + $0x18] sm:$0xff]
      %v4893 = vld [vmem:[%s9 + $0x20] sm:$0xff]
      %v4894 = vld [vmem:[%s9 + $0x28] sm:$0xff]
      %v4895 = vld [vmem:[%s9 + $0x30] sm:$0xff]
      %v4896 = vld [vmem:[%s9 + $0x38] sm:$0xff]
      %v4897 = vld [vmem:[%s9 + $0x40] sm:$0xff]
      %v4898 = vld [vmem:[%s10] sm:$0x1]
      %v4900 = vlaneseq
      %v4901 = vshrl.u32 %v4900, 7
      %v4902 = vsub.s32 0, %v4901
      %v4903 = vrot.slane %v4898, %v4902
      %vm4905 = vcmask 588800
      %v4907 = vsel %vm4905, %v4857, 0
      %v4910 = vsel %vm4905, %v4858, 0
      %v4913 = vsel %vm4905, %v4859, 0
      %v4916 = vsel %vm4905, %v4860, 0
      %v4919 = vsel %vm4905, %v4861, 0
      %v4922 = vsel %vm4905, %v4862, 0
      %v4925 = vsel %vm4905, %v4863, 0
      %v4928 = vsel %vm4905, %v4864, 0
      %v4931 = vsel %vm4905, %v4865, 0
      %v4934 = vsel %vm4905, %v4866, 0
      %v4937 = vsel %vm4905, %v4867, 0
      %v4940 = vsel %vm4905, %v4868, 0
      %v4943 = vsel %vm4905, %v4869, 0
      %v4946 = vsel %vm4905, %v4870, 0
      %v4949 = vsel %vm4905, %v4871, 0
      %v4952 = vsel %vm4905, %v4872, 0
      %v4955 = vsel %vm4905, %v4873, 0
      %v4958 = vsel %vm4905, %v4874, 0
      %v4961 = vsel %vm4905, %v4875, 0
      %v4964 = vsel %vm4905, %v4876, 0
      %v4967 = vsel %vm4905, %v4877, 0
      %v4970 = vsel %vm4905, %v4878, 0
      %v4973 = vsel %vm4905, %v4879, 0
      %v4976 = vsel %vm4905, %v4880, 0
      %v4979 = vsel %vm4905, %v4881, 0
      %v4982 = vsel %vm4905, %v4882, 0
      %v4985 = vsel %vm4905, %v4883, 0
      %v4988 = vsel %vm4905, %v4884, 0
      %v4991 = vsel %vm4905, %v4885, 0
      %v4994 = vsel %vm4905, %v4886, 0
      %v4997 = vsel %vm4905, %v4887, 0
      %v5000 = vsel %vm4905, %v4888, 0
      %5002 = vmatprep.subr.mxu0 0.0
      %5003 = vmatpush1.msra.mxu0 %v4889
      %5004 = vmatprep.subr.mxu0 0.0
      %5005 = vmatpush1.msra.mxu0 %v4890
      %5006 = vmatprep.subr.mxu0 0.0
      %5007 = vmatpush1.msra.mxu0 %v4891
      %5008 = vmatprep.subr.mxu0 0.0
      %5009 = vmatpush1.msra.mxu0 %v4892
      %5010 = vmatprep.subr.mxu0 0.0
      %5011 = vmatpush1.msra.mxu0 %v4893
      %5012 = vmatprep.subr.mxu0 0.0
      %5013 = vmatpush1.msra.mxu0 %v4894
      %5014 = vmatprep.subr.mxu0 0.0
      %5015 = vmatpush1.msra.mxu0 %v4895
      %5016 = vmatprep.subr.mxu0 0.0
      %5017 = vmatpush1.msra.mxu0 %v4896
      %5018 = vmatprep.subr.mxu0 0.0
      %5019 = vmatpush1.msra.mxu0 %v4897
      %5020 = vmatprep.subr.mxu0 0.0
      %5021 = vmatpush1.msra.mxu0 0.0
      %5022 = vmatprep.subr.mxu0 0.0
      %5023 = vmatpush1.msra.mxu0 0.0
      %5024 = vmatprep.subr.mxu0 0.0
      %5025 = vmatpush1.msra.mxu0 0.0
      %5026 = vmatprep.subr.mxu0 0.0
      %5027 = vmatpush1.msra.mxu0 0.0
      %5028 = vmatprep.subr.mxu0 0.0
      %5029 = vmatpush1.msra.mxu0 0.0
      %5030 = vmatprep.subr.mxu0 0.0
      %5031 = vmatpush1.msra.mxu0 0.0
      %5032 = vmatprep.subr.mxu0 0.0
      %5033 = vmatpush1.msra.mxu0 0.0
      %5034 = vmatprep.subr.mxu0 0.0
      %5035 = vmatpush1.msra.mxu0 0.0
      %5036 = vmatprep.subr.mxu0 0.0
      %5037 = vmatpush1.msra.mxu0 0.0
      %5038 = vmatprep.subr.mxu0 0.0
      %5039 = vmatpush1.msra.mxu0 0.0
      %5040 = vmatprep.subr.mxu0 0.0
      %5041 = vmatpush1.msra.mxu0 0.0
      %5042 = vmatprep.subr.mxu0 0.0
      %5043 = vmatpush1.msra.mxu0 0.0
      %5044 = vmatprep.subr.mxu0 0.0
      %5045 = vmatpush1.msra.mxu0 0.0
      %5046 = vmatprep.subr.mxu0 0.0
      %5047 = vmatpush1.msra.mxu0 0.0
      %5048 = vmatprep.subr.mxu0 0.0
      %5049 = vmatpush1.msra.mxu0 0.0
      %5050 = vmatprep.subr.mxu0 0.0
      %5051 = vmatpush1.msra.mxu0 0.0
      %5052 = vmatprep.subr.mxu0 0.0
      %5053 = vmatpush1.msra.mxu0 0.0
      %5054 = vmatprep.subr.mxu0 0.0
      %5055 = vmatpush1.msra.mxu0 0.0
      %5056 = vmatprep.subr.mxu0 0.0
      %5057 = vmatpush1.msra.mxu0 0.0
      %5058 = vmatprep.subr.mxu0 0.0
      %5059 = vmatpush1.msra.mxu0 0.0
      %5060 = vmatprep.subr.mxu0 0.0
      %5061 = vmatpush1.msra.mxu0 0.0
      %5062 = vmatprep.subr.mxu0 0.0
      %5063 = vmatpush1.msra.mxu0 0.0
      %5064 = vmatprep.subr.mxu0 0.0
      %5065 = vmatpush1.msra.mxu0 0.0
      %5066 = vmatprep.mubr.f32.mxu0 0.0
      %5067 = vmatmul.mubr.f32.gmra.mrb[0].mxu0 %v4907
      %v5068 = vpop.f32.mrb[0].mxu0
      %v5069 = vadd.f32 %v4903, %v5068
      %v5070 = vpop.f32.mrb[0].mxu0
      %5071 = vmatprep.mubr.f32.mxu0 0.0
      %5072 = vmatmul.mubr.f32.gmra.mrb[0].mxu0 %v4910
      %v5073 = vpop.f32.mrb[0].mxu0
      %v5074 = vadd.f32 %v4903, %v5073
      %v5075 = vpop.f32.mrb[0].mxu0
      %5076 = vmatprep.mubr.f32.mxu0 0.0
      %5077 = vmatmul.mubr.f32.gmra.mrb[0].mxu0 %v4913
      %v5078 = vpop.f32.mrb[0].mxu0
      %v5079 = vadd.f32 %v4903, %v5078
      %v5080 = vpop.f32.mrb[0].mxu0
      %5081 = vmatprep.mubr.f32.mxu0 0.0
      %5082 = vmatmul.mubr.f32.gmra.mrb[0].mxu0 %v4916
      %v5083 = vpop.f32.mrb[0].mxu0
      %v5084 = vadd.f32 %v4903, %v5083
      %v5085 = vpop.f32.mrb[0].mxu0
      %5086 = vmatprep.mubr.f32.mxu0 0.0
      %5087 = vmatmul.mubr.f32.gmra.mrb[0].mxu0 %v4919
      %v5088 = vpop.f32.mrb[0].mxu0
      %v5089 = vadd.f32 %v4903, %v5088
      %v5090 = vpop.f32.mrb[0].mxu0
      %5091 = vmatprep.mubr.f32.mxu0 0.0
      %5092 = vmatmul.mubr.f32.gmra.mrb[0].mxu0 %v4922
      %v5093 = vpop.f32.mrb[0].mxu0
      %v5094 = vadd.f32 %v4903, %v5093
      %v5095 = vpop.f32.mrb[0].mxu0
      %5096 = vmatprep.mubr.f32.mxu0 0.0
      %5097 = vmatmul.mubr.f32.gmra.mrb[0].mxu0 %v4925
      %v5098 = vpop.f32.mrb[0].mxu0
      %v5099 = vadd.f32 %v4903, %v5098
      %v5100 = vpop.f32.mrb[0].mxu0
      %5101 = vmatprep.mubr.f32.mxu0 0.0
      %5102 = vmatmul.mubr.f32.gmra.mrb[0].mxu0 %v4928
      %v5103 = vpop.f32.mrb[0].mxu0
      %v5104 = vadd.f32 %v4903, %v5103
      %v5105 = vpop.f32.mrb[0].mxu0
      %5106 = vmatprep.mubr.f32.mxu0 0.0
      %5107 = vmatmul.mubr.f32.gmra.mrb[0].mxu0 %v4931
      %v5108 = vpop.f32.mrb[0].mxu0
      %v5109 = vadd.f32 %v4903, %v5108
      %v5110 = vpop.f32.mrb[0].mxu0
      %5111 = vmatprep.mubr.f32.mxu0 0.0
      %5112 = vmatmul.mubr.f32.gmra.mrb[0].mxu0 %v4934
      %v5113 = vpop.f32.mrb[0].mxu0
      %v5114 = vadd.f32 %v4903, %v5113
      %v5115 = vpop.f32.mrb[0].mxu0
      %5116 = vmatprep.mubr.f32.mxu0 0.0
      %5117 = vmatmul.mubr.f32.gmra.mrb[0].mxu0 %v4937
      %v5118 = vpop.f32.mrb[0].mxu0
      %v5119 = vadd.f32 %v4903, %v5118
      %v5120 = vpop.f32.mrb[0].mxu0
      %5121 = vmatprep.mubr.f32.mxu0 0.0
      %5122 = vmatmul.mubr.f32.gmra.mrb[0].mxu0 %v4940
      %v5123 = vpop.f32.mrb[0].mxu0
      %v5124 = vadd.f32 %v4903, %v5123
      %v5125 = vpop.f32.mrb[0].mxu0
      %5126 = vmatprep.mubr.f32.mxu0 0.0
      %5127 = vmatmul.mubr.f32.gmra.mrb[0].mxu0 %v4943
      %v5128 = vpop.f32.mrb[0].mxu0
      %v5129 = vadd.f32 %v4903, %v5128
      %v5130 = vpop.f32.mrb[0].mxu0
      %5131 = vmatprep.mubr.f32.mxu0 0.0
      %5132 = vmatmul.mubr.f32.gmra.mrb[0].mxu0 %v4946
      %v5133 = vpop.f32.mrb[0].mxu0
      %v5134 = vadd.f32 %v4903, %v5133
      %v5135 = vpop.f32.mrb[0].mxu0
      %5136 = vmatprep.mubr.f32.mxu0 0.0
      %5137 = vmatmul.mubr.f32.gmra.mrb[0].mxu0 %v4949
      %v5138 = vpop.f32.mrb[0].mxu0
      %v5139 = vadd.f32 %v4903, %v5138
      %v5140 = vpop.f32.mrb[0].mxu0
      %5141 = vmatprep.mubr.f32.mxu0 0.0
      %5142 = vmatmul.mubr.f32.gmra.mrb[0].mxu0 %v4952
      %v5143 = vpop.f32.mrb[0].mxu0
      %v5144 = vadd.f32 %v4903, %v5143
      %v5145 = vpop.f32.mrb[0].mxu0
      %5146 = vmatprep.mubr.f32.mxu0 0.0
      %5147 = vmatmul.mubr.f32.gmra.mrb[0].mxu0 %v4955
      %v5148 = vpop.f32.mrb[0].mxu0
      %v5149 = vadd.f32 %v4903, %v5148
      %v5150 = vpop.f32.mrb[0].mxu0
      %5151 = vmatprep.mubr.f32.mxu0 0.0
      %5152 = vmatmul.mubr.f32.gmra.mrb[0].mxu0 %v4958
      %v5153 = vpop.f32.mrb[0].mxu0
      %v5154 = vadd.f32 %v4903, %v5153
      %v5155 = vpop.f32.mrb[0].mxu0
      %5156 = vmatprep.mubr.f32.mxu0 0.0
      %5157 = vmatmul.mubr.f32.gmra.mrb[0].mxu0 %v4961
      %v5158 = vpop.f32.mrb[0].mxu0
      %v5159 = vadd.f32 %v4903, %v5158
      %v5160 = vpop.f32.mrb[0].mxu0
      %5161 = vmatprep.mubr.f32.mxu0 0.0
      %5162 = vmatmul.mubr.f32.gmra.mrb[0].mxu0 %v4964
      %v5163 = vpop.f32.mrb[0].mxu0
      %v5164 = vadd.f32 %v4903, %v5163
      %v5165 = vpop.f32.mrb[0].mxu0
      %5166 = vmatprep.mubr.f32.mxu0 0.0
      %5167 = vmatmul.mubr.f32.gmra.mrb[0].mxu0 %v4967
      %v5168 = vpop.f32.mrb[0].mxu0
      %v5169 = vadd.f32 %v4903, %v5168
      %v5170 = vpop.f32.mrb[0].mxu0
      %5171 = vmatprep.mubr.f32.mxu0 0.0
      %5172 = vmatmul.mubr.f32.gmra.mrb[0].mxu0 %v4970
      %v5173 = vpop.f32.mrb[0].mxu0
      %v5174 = vadd.f32 %v4903, %v5173
      %v5175 = vpop.f32.mrb[0].mxu0
      %5176 = vmatprep.mubr.f32.mxu0 0.0
      %5177 = vmatmul.mubr.f32.gmra.mrb[0].mxu0 %v4973
      %v5178 = vpop.f32.mrb[0].mxu0
      %v5179 = vadd.f32 %v4903, %v5178
      %v5180 = vpop.f32.mrb[0].mxu0
      %5181 = vmatprep.mubr.f32.mxu0 0.0
      %5182 = vmatmul.mubr.f32.gmra.mrb[0].mxu0 %v4976
      %v5183 = vpop.f32.mrb[0].mxu0
      %v5184 = vadd.f32 %v4903, %v5183
      %v5185 = vpop.f32.mrb[0].mxu0
      %5186 = vmatprep.mubr.f32.mxu0 0.0
      %5187 = vmatmul.mubr.f32.gmra.mrb[0].mxu0 %v4979
      %v5188 = vpop.f32.mrb[0].mxu0
      %v5189 = vadd.f32 %v4903, %v5188
      %v5190 = vpop.f32.mrb[0].mxu0
      %5191 = vmatprep.mubr.f32.mxu0 0.0
      %5192 = vmatmul.mubr.f32.gmra.mrb[0].mxu0 %v4982
      %v5193 = vpop.f32.mrb[0].mxu0
      %v5194 = vadd.f32 %v4903, %v5193
      %v5195 = vpop.f32.mrb[0].mxu0
      %5196 = vmatprep.mubr.f32.mxu0 0.0
      %5197 = vmatmul.mubr.f32.gmra.mrb[0].mxu0 %v4985
      %v5198 = vpop.f32.mrb[0].mxu0
      %v5199 = vadd.f32 %v4903, %v5198
      %v5200 = vpop.f32.mrb[0].mxu0
      %5201 = vmatprep.mubr.f32.mxu0 0.0
      %5202 = vmatmul.mubr.f32.gmra.mrb[0].mxu0 %v4988
      %v5203 = vpop.f32.mrb[0].mxu0
      %v5204 = vadd.f32 %v4903, %v5203
      %v5205 = vpop.f32.mrb[0].mxu0
      %5206 = vmatprep.mubr.f32.mxu0 0.0
      %5207 = vmatmul.mubr.f32.gmra.mrb[0].mxu0 %v4991
      %v5208 = vpop.f32.mrb[0].mxu0
      %v5209 = vadd.f32 %v4903, %v5208
      %v5210 = vpop.f32.mrb[0].mxu0
      %5211 = vmatprep.mubr.f32.mxu0 0.0
      %5212 = vmatmul.mubr.f32.gmra.mrb[0].mxu0 %v4994
      %v5213 = vpop.f32.mrb[0].mxu0
      %v5214 = vadd.f32 %v4903, %v5213
      %v5215 = vpop.f32.mrb[0].mxu0
      %5216 = vmatprep.mubr.f32.mxu0 0.0
      %5217 = vmatmul.mubr.f32.gmra.mrb[0].mxu0 %v4997
      %v5218 = vpop.f32.mrb[0].mxu0
      %v5219 = vadd.f32 %v4903, %v5218
      %v5220 = vpop.f32.mrb[0].mxu0
      %5221 = vmatprep.mubr.f32.mxu0 0.0
      %5222 = vmatmul.mubr.f32.gmra.mrb[0].mxu0 %v5000
      %v5223 = vpop.f32.mrb[0].mxu0
      %v5224 = vadd.f32 %v4903, %v5223
      %v5225 = vpop.f32.mrb[0].mxu0
      %5226 = vdwg.mxu0
      %v5227 = vmax.f32 %v5069, 0.0
      %v5228 = vmax.f32 %v5074, 0.0
      %v5229 = vmax.f32 %v5079, 0.0
      %v5230 = vmax.f32 %v5084, 0.0
      %v5231 = vmax.f32 %v5089, 0.0
      %v5232 = vmax.f32 %v5094, 0.0
      %v5233 = vmax.f32 %v5099, 0.0
      %v5234 = vmax.f32 %v5104, 0.0
      %v5235 = vmax.f32 %v5109, 0.0
      %v5236 = vmax.f32 %v5114, 0.0
      %v5237 = vmax.f32 %v5119, 0.0
      %v5238 = vmax.f32 %v5124, 0.0
      %v5239 = vmax.f32 %v5129, 0.0
      %v5240 = vmax.f32 %v5134, 0.0
      %v5241 = vmax.f32 %v5139, 0.0
      %v5242 = vmax.f32 %v5144, 0.0
      %v5243 = vmax.f32 %v5149, 0.0
      %v5244 = vmax.f32 %v5154, 0.0
      %v5245 = vmax.f32 %v5159, 0.0
      %v5246 = vmax.f32 %v5164, 0.0
      %v5247 = vmax.f32 %v5169, 0.0
      %v5248 = vmax.f32 %v5174, 0.0
      %v5249 = vmax.f32 %v5179, 0.0
      %v5250 = vmax.f32 %v5184, 0.0
      %v5251 = vmax.f32 %v5189, 0.0
      %v5252 = vmax.f32 %v5194, 0.0
      %v5253 = vmax.f32 %v5199, 0.0
      %v5254 = vmax.f32 %v5204, 0.0
      %v5255 = vmax.f32 %v5209, 0.0
      %v5256 = vmax.f32 %v5214, 0.0
      %v5257 = vmax.f32 %v5219, 0.0
      %v5258 = vmax.f32 %v5224, 0.0
      %5259 = vxpose.xlu0.b32.start [1/16] %v5227, 128
      %5260 = vxpose.xlu0.b32.cont [2/16] %v5228, 128
      %5261 = vxpose.xlu0.b32.cont [3/16] %v5229, 128
      %5262 = vxpose.xlu0.b32.cont [4/16] %v5230, 128
      %5263 = vxpose.xlu0.b32.cont [5/16] %v5231, 128
      %5264 = vxpose.xlu0.b32.cont [6/16] %v5232, 128
      %5265 = vxpose.xlu0.b32.cont [7/16] %v5233, 128
      %5266 = vxpose.xlu0.b32.cont [8/16] %v5234, 128
      %5267 = vxpose.xlu0.b32.cont [9/16] %v5235, 128
      %5268 = vxpose.xlu0.b32.cont [10/16] %v5236, 128
      %5269 = vxpose.xlu0.b32.cont [11/16] %v5237, 128
      %5270 = vxpose.xlu0.b32.cont [12/16] %v5238, 128
      %5271 = vxpose.xlu0.b32.cont [13/16] %v5239, 128
      %5272 = vxpose.xlu0.b32.cont [14/16] %v5240, 128
      %5273 = vxpose.xlu0.b32.cont [15/16] %v5241, 128
      %5274 = vxpose.xlu0.b32.end [16/16] %v5242, 128
      %v5275 = vpop.trf.xlu0
      %v5276 = vpop.trf.xlu0
      %v5277 = vpop.trf.xlu0
      %v5278 = vpop.trf.xlu0
      %v5279 = vpop.trf.xlu0
      %v5280 = vpop.trf.xlu0
      %v5281 = vpop.trf.xlu0
      %v5282 = vpop.trf.xlu0
      %v5283 = vpop.trf.xlu0
      %v5284 = vpop.trf.xlu0
      %v5285 = vpop.trf.xlu0
      %v5286 = vpop.trf.xlu0
      %v5287 = vpop.trf.xlu0
      %v5288 = vpop.trf.xlu0
      %v5289 = vpop.trf.xlu0
      %v5290 = vpop.trf.xlu0
      %5291 = vxpose.xlu0.b32.start [1/16] %v5243, 128
      %5292 = vxpose.xlu0.b32.cont [2/16] %v5244, 128
      %5293 = vxpose.xlu0.b32.cont [3/16] %v5245, 128
      %5294 = vxpose.xlu0.b32.cont [4/16] %v5246, 128
      %5295 = vxpose.xlu0.b32.cont [5/16] %v5247, 128
      %5296 = vxpose.xlu0.b32.cont [6/16] %v5248, 128
      %5297 = vxpose.xlu0.b32.cont [7/16] %v5249, 128
      %5298 = vxpose.xlu0.b32.cont [8/16] %v5250, 128
      %5299 = vxpose.xlu0.b32.cont [9/16] %v5251, 128
      %5300 = vxpose.xlu0.b32.cont [10/16] %v5252, 128
      %5301 = vxpose.xlu0.b32.cont [11/16] %v5253, 128
      %5302 = vxpose.xlu0.b32.cont [12/16] %v5254, 128
      %5303 = vxpose.xlu0.b32.cont [13/16] %v5255, 128
      %5304 = vxpose.xlu0.b32.cont [14/16] %v5256, 128
      %5305 = vxpose.xlu0.b32.cont [15/16] %v5257, 128
      %5306 = vxpose.xlu0.b32.end [16/16] %v5258, 128
      %v5307 = vpop.trf.xlu0
      %v5308 = vpop.trf.xlu0
      %v5309 = vpop.trf.xlu0
      %v5310 = vpop.trf.xlu0
      %v5311 = vpop.trf.xlu0
      %v5312 = vpop.trf.xlu0
      %v5313 = vpop.trf.xlu0
      %v5314 = vpop.trf.xlu0
      %v5315 = vpop.trf.xlu0
      %v5316 = vpop.trf.xlu0
      %v5317 = vpop.trf.xlu0
      %v5318 = vpop.trf.xlu0
      %v5319 = vpop.trf.xlu0
      %v5320 = vpop.trf.xlu0
      %v5321 = vpop.trf.xlu0
      %v5322 = vpop.trf.xlu0
      %5323 = vst [vmem:[%s403] sm:$0xff] %v5275
      %5324 = vst [vmem:[%s403 + $0x8] sm:$0xff] %v5307
      %p5325 = scmp.lt.s32.totalorder %s22, 1
      %s5326 = scalar_select %p5325, %s22, 1
      %s5327 = smul.addr %s5326, 2
      %s5328 = smul.addr %s5327, 8
      %s5329 = scalar_lea.vmem %s11, %s5328
      // Predicated region
      $region65: #{upconv_block_forward.1} parent=63 // pred_check
        %p5330 = pneg %p281
      $region66: #{upconv_block_forward.1} parent=63 // pred_check_branch
        %5332 = sbr.rel (%p5330) target = $region68
      $region67: #{upconv_block_forward.1} parent=63 // pred_region
        _
      $region68: #{upconv_block_forward.1} parent=63 // pred_fallthru
        _
    $region64: #{upconv_block_forward.1} parent=5 // pred_fallthru
      _
    %p5333 = scmp.le.s32.totalorder 2, %s17
    // Predicated region
    $region69: #{upconv_block_forward.1} parent=5 // pred_check
      %p5334 = pneg %p5333
    $region70: #{upconv_block_forward.1} parent=5 // pred_check_branch
      %5336 = sbr.rel (%p5334) target = $region72
    $region71: #{upconv_block_forward.1} parent=5 // pred_region
      %s5337 = ssub.s32 %s17, 2
      // Predicated region
      $region73: #{upconv_block_forward.1} parent=71 // pred_check
        %p5338 = pneg %p287
      $region74: #{upconv_block_forward.1} parent=71 // pred_check_branch
        %5340 = sbr.rel (%p5338) target = $region76
      $region75: #{upconv_block_forward.1} parent=71 // pred_region
        %p5341 = scmp.lt.s32.totalorder %s23, 1
        %s5342 = scalar_select %p5341, %s23, 1
        %s5343 = smul.addr %s5342, 2
        %s5344 = smul.addr %s5343, 8
        %s5345 = scalar_lea.vmem %s11, %s5344
      $region76: #{upconv_block_forward.1} parent=71 // pred_fallthru
        _
    $region72: #{upconv_block_forward.1} parent=5 // pred_fallthru
      _
  $region6: #{upconv_block_forward.1} parent=0 // loop_footer
    %s21 = sadd.s32 1, %s17
  $region7: #{upconv_block_forward.1} parent=0 // loop_footer_branch
    %16 = sbr.rel target = $region3
  $region8: #{upconv_block_forward.1} parent=0 // loop_exit
    _

</llo_original>
